<compile_context>
chip_gen: v7x
topology: tpu7x:2x2x1
jax: 0.10.0
libtpu: 0.0.40
codegen_flags: <defaults>
</compile_context>

<pallas_src>
import functools

import jax
import jax.numpy as jnp
from jax import lax
from jax.experimental import pallas as pl
from jax.experimental.pallas import tpu as pltpu

NEG_SLOPE = 0.01   # nn.LeakyReLU default
LN_EPS = 1e-5      # nn.LayerNorm default


def _leaky_relu(x):
    return jnp.where(x >= 0, x, NEG_SLOPE * x)


def _layernorm(x, gamma, beta):
    mu = jnp.mean(x, axis=-1, keepdims=True)
    var = jnp.mean((x - mu) ** 2, axis=-1, keepdims=True)
    return (x - mu) * lax.rsqrt(var + LN_EPS) * gamma + beta


def _round_up(n, m):
    return ((n + m - 1) // m) * m


# ---------------------------------------------------------------------------
# Kernel
# ---------------------------------------------------------------------------
def dense_transformer_kernel(
    x_ref,
    wqkv_ref, bqkv_ref,        # fused q/k/v projection (scale folded into q part)
    wo_ref, bo_ref,            # MHA out_proj
    g1_ref, be1_ref, g2_ref, be2_ref,   # LayerNorms
    wffn_ref, bffn_ref,        # FFN: fused [x|attended] contributions of all three layers
    wl1_ref,                   # FFN: l1 -> (l2 | l3) contributions (fused)
    wl2_ref,                   # FFN: l2 -> l3 contribution
    out_ref,
    qkv_ref,                   # VMEM scratch: bf16 staged q|k|v (S, 3E)
    heads_ref,                 # VMEM scratch: bf16 concat of attention head outputs (S, E)
    *, num_heads, head_dim):
  x = x_ref[0].astype(jnp.float32)                       # (S, E)
  S, E = x.shape
  d1p = wl1_ref.shape[0]
  d2p = wl2_ref.shape[0]
  xb = x.astype(jnp.bfloat16)                            # bf16 at the MXU boundary only

  # --- single wide fused q/k/v projection, staged to bf16 VMEM scratch -----
  qkv = jnp.dot(xb, wqkv_ref[...],
                preferred_element_type=jnp.float32) + bqkv_ref[...]   # (S, 3E) f32
  qkv_ref[...] = qkv.astype(jnp.bfloat16)   # q part already scaled by 1/sqrt(Dh) (host-folded)

  # causal mask (True == disallowed, triu diag=1)
  row = lax.broadcasted_iota(jnp.int32, (S, S), 0)
  col = lax.broadcasted_iota(jnp.int32, (S, S), 1)
  disallow = col > row

  # --- attention per head; heads written into concat bf16 scratch ----------
  contract_last = (((1,), (1,)), ((), ()))
  for h in range(num_heads):                             # static per-head loop
    lo = h * head_dim
    hi = lo + head_dim
    q_h = qkv_ref[:, lo:hi]                              # (S, Dh) bf16
    k_h = qkv_ref[:, E + lo:E + hi]
    v_h = qkv_ref[:, 2 * E + lo:2 * E + hi]
    scores = lax.dot_general(q_h, k_h, contract_last,
                             preferred_element_type=jnp.float32)      # (S, S) f32
    scores = jnp.where(disallow, -1e30, scores)
    m = jnp.max(scores, axis=-1, keepdims=True)
    p = jnp.exp(scores - m)                              # unnormalized probs, f32
    denom = jnp.sum(p, axis=-1, keepdims=True)
    o = jnp.dot(p.astype(jnp.bfloat16), v_h,
                preferred_element_type=jnp.float32)      # (S, Dh) f32
    o = o * pl.reciprocal(denom, approx=True)            # normalize AFTER PV matmul
    heads_ref[:, lo:hi] = o.astype(jnp.bfloat16)

  # one full-K out-projection matmul instead of H narrow accumulations
  attended = (jnp.dot(heads_ref[...], wo_ref[...],
                      preferred_element_type=jnp.float32) + bo_ref[...])

  temp1 = x + attended
  norm_temp = _layernorm(temp1, g1_ref[...], be1_ref[...])

  # --- DenseFFN (concats folded into split/fused weights, 128-padded dims) -
  ab = attended.astype(jnp.bfloat16)
  xa = jnp.concatenate([xb, ab], axis=-1)                # (S, 2E) bf16
  base = (jnp.dot(xa, wffn_ref[...], preferred_element_type=jnp.float32)
          + bffn_ref[...])                               # (S, d1p + d2p + E) f32
  l1 = _leaky_relu(base[:, :d1p])                                        # (S, d1p)
  l1c = jnp.dot(l1.astype(jnp.bfloat16), wl1_ref[...],
                preferred_element_type=jnp.float32)                      # (S, d2p + E)
  l2 = _leaky_relu(base[:, d1p:d1p + d2p] + l1c[:, :d2p])                # (S, d2p)
  dense_out = _leaky_relu(base[:, d1p + d2p:] + l1c[:, d2p:]
                          + jnp.dot(l2.astype(jnp.bfloat16), wl2_ref[...],
                                    preferred_element_type=jnp.float32)) # (S, E)

  temp2 = norm_temp + dense_out + x
  out_ref[0] = _layernorm(temp2, g2_ref[...], be2_ref[...]).astype(out_ref.dtype)


# ---------------------------------------------------------------------------
# Host-side weight fusion / padding (mathematically exact)
# ---------------------------------------------------------------------------
_FUSED_ORDER = ('w_qkv', 'b_qkv', 'wo', 'bo', 'g1', 'be1', 'g2', 'be2',
                'w_ffn_xa', 'b_ffn', 'w_l1', 'w_l2')


def _fuse_and_pad_params(params, num_heads):
  E = params['wq'].shape[0]
  head_dim = E // num_heads
  scale = 1.0 / (head_dim ** 0.5)
  bf16, f32 = jnp.bfloat16, jnp.float32

  # chained projection folding, 1/sqrt(Dh) folded into q
  wq_f = (params['wq'] @ params['wiq']) * scale
  bq_f = (params['bq'] @ params['wiq'] + params['biq']) * scale
  wk_f = params['wk'] @ params['wik']
  bk_f = params['bk'] @ params['wik'] + params['bik']
  wv_f = params['wv'] @ params['wiv']
  bv_f = params['bv'] @ params['wiv'] + params['biv']
  w_qkv = jnp.concatenate([wq_f, wk_f, wv_f], axis=1).astype(bf16)      # (E, 3E)
  b_qkv = jnp.concatenate([bq_f, bk_f, bv_f], axis=1).astype(f32)       # (1, 3E)

  d1 = params['w1u'].shape[1]
  d2 = params['w2u'].shape[1]
  d1p = _round_up(d1, 128)
  d2p = _round_up(d2, 128)

  def padc(w, to):   # zero-pad columns (last dim) up to `to`
    return jnp.pad(w, ((0, 0), (0, to - w.shape[1])))

  def padr(w, to):   # zero-pad rows (first dim) up to `to`
    return jnp.pad(w, ((0, to - w.shape[0]), (0, 0)))

  # fused [x | attended] -> (l1 | l2 | l3) contributions, rows match kernel's concat order
  w_ffn_x = jnp.concatenate([padc(params['w1u'], d1p),
                             padc(params['w2u'], d2p),
                             params['w3u']], axis=1)                    # (E, d1p+d2p+E)
  w_ffn_a = jnp.concatenate([padc(params['w1a'], d1p),
                             padc(params['w2a'], d2p),
                             params['w3a']], axis=1)                    # (E, d1p+d2p+E)
  w_ffn_xa = jnp.concatenate([w_ffn_x, w_ffn_a], axis=0).astype(bf16)   # (2E, d1p+d2p+E)
  b_ffn = jnp.concatenate([padc(params['bf1'], d1p),
                           padc(params['bf2'], d2p),
                           params['bf3']], axis=1).astype(f32)          # (1, d1p+d2p+E)
  w_l1 = jnp.concatenate([padr(padc(params['w2l1'], d2p), d1p),
                          padr(params['w3l1'], d1p)], axis=1).astype(bf16)  # (d1p, d2p+E)
  w_l2 = padr(params['w3l2'], d2p).astype(bf16)                             # (d2p, E)

  return {
      'w_qkv': w_qkv, 'b_qkv': b_qkv,
      'wo': params['wo'].astype(bf16), 'bo': params['bo'].astype(f32),
      'g1': params['g1'].astype(f32), 'be1': params['be1'].astype(f32),
      'g2': params['g2'].astype(f32), 'be2': params['be2'].astype(f32),
      'w_ffn_xa': w_ffn_xa, 'b_ffn': b_ffn,
      'w_l1': w_l1, 'w_l2': w_l2,
  }


# ---------------------------------------------------------------------------
# Wrapper
# ---------------------------------------------------------------------------
def _vmem_limit_bytes():
  """Generation-aware VMEM budget: ~3/4 of physical (96 MiB on v5e/v6e, 48 MiB on v7x)."""
  try:
    info = pltpu.get_tpu_info()
    cap = getattr(info, 'vmem_capacity_bytes', None)
    if cap:
      return max(32 * 1024 * 1024, (int(cap) * 3) // 4)
  except Exception:
    pass
  return 64 * 1024 * 1024


def _build_in_specs(x_shape, ordered, single_buffer_weights):
  _, S, E = x_shape
  in_specs = [pl.BlockSpec((1, S, E), lambda b: (b, 0, 0))]
  for p in ordered:
    nd = p.ndim
    idx = lambda b, nd=nd: (0,) * nd          # constant index_map: weights stay resident
    if single_buffer_weights:
      # Constant blocks have nothing to pipeline -> single-buffer them (halves weight VMEM).
      in_specs.append(pl.BlockSpec(p.shape, idx, pipeline_mode=pl.Buffered(1)))
    else:
      in_specs.append(pl.BlockSpec(p.shape, idx))
  return in_specs


def dense_transformer_forward(x, params, num_heads):
  B, S, E = x.shape
  assert E % num_heads == 0
  head_dim = E // num_heads
  fused = _fuse_and_pad_params(params, num_heads)
  ordered = [fused[name] for name in _FUSED_ORDER]

  kernel = functools.partial(dense_transformer_kernel,
                             num_heads=num_heads, head_dim=head_dim)
  out_shape = jax.ShapeDtypeStruct((B, S, E), x.dtype)
  scratch_shapes = [pltpu.VMEM((S, 3 * E), jnp.bfloat16),   # staged q|k|v
                    pltpu.VMEM((S, E), jnp.bfloat16)]       # concat-of-heads buffer
  compiler_params = pltpu.CompilerParams(
      dimension_semantics=("parallel",),                    # batch is independent
      vmem_limit_bytes=_vmem_limit_bytes())

  def run(single_buffer_weights):
    return pl.pallas_call(
        kernel,
        out_shape=out_shape,
        grid=(B,),
        in_specs=_build_in_specs(x.shape, ordered, single_buffer_weights),
        out_specs=pl.BlockSpec((1, S, E), lambda b: (b, 0, 0)),
        scratch_shapes=scratch_shapes,
        compiler_params=compiler_params,
    )(x, *ordered)

  try:
    return run(True)
  except Exception:
    # Fallback if this JAX/Mosaic version rejects single-buffered BlockSpecs.
    return run(False)


# ---------------------------------------------------------------------------
# Parameter init (raw / unfused layout, weights stored as (in, out))
# ---------------------------------------------------------------------------
def init_params(key, embed_dim, growth_rate=32):
  E, G = embed_dim, growth_rate
  d1 = 2 * E + G                # layer1 out
  d2 = 4 * E + 2 * G            # layer2 out
  names_shapes = [
      ('wq', (E, E)), ('bq', (1, E)),
      ('wk', (E, E)), ('bk', (1, E)),
      ('wv', (E, E)), ('bv', (1, E)),
      ('wiq', (E, E)), ('biq', (1, E)),
      ('wik', (E, E)), ('bik', (1, E)),
      ('wiv', (E, E)), ('biv', (1, E)),
      ('wo', (E, E)), ('bo', (1, E)),
      # DenseFFN layer1: in = cat(x, attended) -> split (E + E)
      ('w1u', (E, d1)), ('w1a', (E, d1)), ('bf1', (1, d1)),
      # DenseFFN layer2: in = cat(x, attended, l1_out) -> split (E + E + d1)
      ('w2u', (E, d2)), ('w2a', (E, d2)), ('w2l1', (d1, d2)), ('bf2', (1, d2)),
      # DenseFFN layer3: in = cat(x, attended, l1_out, l2_out) -> split (E + E + d1 + d2)
      ('w3u', (E, E)), ('w3a', (E, E)), ('w3l1', (d1, E)), ('w3l2', (d2, E)),
      ('bf3', (1, E)),
  ]
  keys = jax.random.split(key, len(names_shapes))
  params = {n: 0.02 * jax.random.normal(k, s, jnp.float32)
            for (n, s), k in zip(names_shapes, keys)}
  params['g1'] = jnp.ones((1, E), jnp.float32)
  params['be1'] = jnp.zeros((1, E), jnp.float32)
  params['g2'] = jnp.ones((1, E), jnp.float32)
  params['be2'] = jnp.zeros((1, E), jnp.float32)
  return params


# ---------------------------------------------------------------------------
# Pure-JAX f32 reference of the same module math (uses the unfused params)
# ---------------------------------------------------------------------------
def reference_forward(x, params, num_heads):
  B, S, E = x.shape
  Dh = E // num_heads
  lin = lambda z, w, b: jnp.dot(z, w) + b
  q = lin(x, params['wq'], params['bq'])
  k = lin(x, params['wk'], params['bk'])
  v = lin(x, params['wv'], params['bv'])
  qp = lin(q, params['wiq'], params['biq']).reshape(B, S, num_heads, Dh).transpose(0, 2, 1, 3)
  kp = lin(k, params['wik'], params['bik']).reshape(B, S, num_heads, Dh).transpose(0, 2, 1, 3)
  vp = lin(v, params['wiv'], params['biv']).reshape(B, S, num_heads, Dh).transpose(0, 2, 1, 3)
  scores = jnp.einsum('bhqd,bhkd->bhqk', qp, kp) / (Dh ** 0.5)
  mask = jnp.triu(jnp.ones((S, S), bool), 1)
  scores = jnp.where(mask, -1e30, scores)
  p = jax.nn.softmax(scores, axis=-1)
  o = jnp.einsum('bhqk,bhkd->bhqd', p, vp).transpose(0, 2, 1, 3).reshape(B, S, E)
  attended = jnp.dot(o, params['wo']) + params['bo']
  temp1 = x + attended
  norm_temp = _layernorm(temp1, params['g1'], params['be1'])
  l1 = _leaky_relu(jnp.dot(x, params['w1u']) + jnp.dot(attended, params['w1a']) + params['bf1'])
  l2 = _leaky_relu(jnp.dot(x, params['w2u']) + jnp.dot(attended, params['w2a'])
                   + jnp.dot(l1, params['w2l1']) + params['bf2'])
  dense_out = _leaky_relu(jnp.dot(x, params['w3u']) + jnp.dot(attended, params['w3a'])
                          + jnp.dot(l1, params['w3l1']) + jnp.dot(l2, params['w3l2'])
                          + params['bf3'])
  temp2 = norm_temp + dense_out + x
  return _layernorm(temp2, params['g2'], params['be2'])


if __name__ == "__main__":
  B, S, E, H = 2, 8, 32, 4
  key = jax.random.PRNGKey(0)
  kx, kp = jax.random.split(key)
  x = jax.random.normal(kx, (B, S, E), jnp.float32)
  params = init_params(kp, E)

  out = dense_transformer_forward(x, params, num_heads=H)
  out = jax.block_until_ready(out)
  assert out.shape == (B, S, E)

  ref = reference_forward(x, params, H)
  # tolerance accounts for bf16 MXU inputs + approx reciprocal in the kernel
  if not bool(jnp.allclose(out, ref, atol=5e-2, rtol=5e-2)):
    raise AssertionError(
        f"Pallas/ref mismatch, max abs diff = {float(jnp.max(jnp.abs(out - ref)))}")
  print("KERNEL_OK")
</pallas_src>

<mosaic_0001>
module attributes {stable_mosaic.version = 11 : i64} {
  func.func @dense_transformer_kernel(%arg0: i32, %arg1: memref<1x8x32xf32, #tpu.memory_space<vmem>>, %arg2: memref<32x96xbf16, #tpu.memory_space<vmem>>, %arg3: memref<1x96xf32, #tpu.memory_space<vmem>>, %arg4: memref<32x32xbf16, #tpu.memory_space<vmem>>, %arg5: memref<1x32xf32, #tpu.memory_space<vmem>>, %arg6: memref<1x32xf32, #tpu.memory_space<vmem>>, %arg7: memref<1x32xf32, #tpu.memory_space<vmem>>, %arg8: memref<1x32xf32, #tpu.memory_space<vmem>>, %arg9: memref<1x32xf32, #tpu.memory_space<vmem>>, %arg10: memref<64x416xbf16, #tpu.memory_space<vmem>>, %arg11: memref<1x416xf32, #tpu.memory_space<vmem>>, %arg12: memref<128x288xbf16, #tpu.memory_space<vmem>>, %arg13: memref<256x32xbf16, #tpu.memory_space<vmem>>, %arg14: memref<1x8x32xf32, #tpu.memory_space<vmem>>, %arg15: memref<8x96xbf16, #tpu.memory_space<vmem>>, %arg16: memref<8x32xbf16, #tpu.memory_space<vmem>>) attributes {dimension_semantics = [#tpu.dimension_semantics<parallel>], iteration_bounds = array<i64: 2>, scalar_prefetch = 0 : i64, scratch_operands = 2 : i64, tpu.core_type = #tpu.core_type<tc>, window_params = [{transform_indices = @transform_0, window_bounds = array<i64: 1, 8, 32>}, {pipeline_mode = #tpu.pipeline_mode<synchronous>, transform_indices = @transform_1, window_bounds = array<i64: 32, 96>}, {pipeline_mode = #tpu.pipeline_mode<synchronous>, transform_indices = @transform_2, window_bounds = array<i64: 1, 96>}, {pipeline_mode = #tpu.pipeline_mode<synchronous>, transform_indices = @transform_3, window_bounds = array<i64: 32, 32>}, {pipeline_mode = #tpu.pipeline_mode<synchronous>, transform_indices = @transform_4, window_bounds = array<i64: 1, 32>}, {pipeline_mode = #tpu.pipeline_mode<synchronous>, transform_indices = @transform_5, window_bounds = array<i64: 1, 32>}, {pipeline_mode = #tpu.pipeline_mode<synchronous>, transform_indices = @transform_6, window_bounds = array<i64: 1, 32>}, {pipeline_mode = #tpu.pipeline_mode<synchronous>, transform_indices = @transform_7, window_bounds = array<i64: 1, 32>}, {pipeline_mode = #tpu.pipeline_mode<synchronous>, transform_indices = @transform_8, window_bounds = array<i64: 1, 32>}, {pipeline_mode = #tpu.pipeline_mode<synchronous>, transform_indices = @transform_9, window_bounds = array<i64: 64, 416>}, {pipeline_mode = #tpu.pipeline_mode<synchronous>, transform_indices = @transform_10, window_bounds = array<i64: 1, 416>}, {pipeline_mode = #tpu.pipeline_mode<synchronous>, transform_indices = @transform_11, window_bounds = array<i64: 128, 288>}, {pipeline_mode = #tpu.pipeline_mode<synchronous>, transform_indices = @transform_12, window_bounds = array<i64: 256, 32>}, {transform_indices = @transform_13, window_bounds = array<i64: 1, 8, 32>}]} {
    %c0 = arith.constant 0 : index
    %c0_0 = arith.constant 0 : index
    %c0_1 = arith.constant 0 : index
    %0 = vector.load %arg1[%c0, %c0_0, %c0_1] : memref<1x8x32xf32, #tpu.memory_space<vmem>>, vector<1x8x32xf32>
    %1 = vector.shape_cast %0 : vector<1x8x32xf32> to vector<8x32xf32>
    %2 = arith.truncf %1 : vector<8x32xf32> to vector<8x32xbf16>
    %c0_2 = arith.constant 0 : index
    %c0_3 = arith.constant 0 : index
    %3 = vector.load %arg2[%c0_2, %c0_3] : memref<32x96xbf16, #tpu.memory_space<vmem>>, vector<32x96xbf16>
    %cst = arith.constant dense<0.000000e+00> : vector<8x96xf32>
    %4 = tpu.matmul %2, %3, %cst {dimension_numbers = #tpu.dot_dimension_numbers<[1], [0], [0], [1], [0, 0, 1, 1], [], []>} : vector<8x32xbf16>, vector<32x96xbf16>, vector<8x96xf32> -> vector<8x96xf32>
    %c0_4 = arith.constant 0 : index
    %c0_5 = arith.constant 0 : index
    %5 = vector.load %arg3[%c0_4, %c0_5] : memref<1x96xf32, #tpu.memory_space<vmem>>, vector<1x96xf32>
    %6 = vector.broadcast %5 : vector<1x96xf32> to vector<8x96xf32>
    %7 = arith.addf %4, %6 : vector<8x96xf32>
    %8 = arith.truncf %7 : vector<8x96xf32> to vector<8x96xbf16>
    %c0_6 = arith.constant 0 : index
    %c0_7 = arith.constant 0 : index
    %9 = vector.load %arg15[%c0_6, %c0_7] : memref<8x96xbf16, #tpu.memory_space<vmem>>, vector<8x96xbf16>
    tpu.vector_store %arg15[%c0_6, %c0_7], %8 {strides = array<i32>} : memref<8x96xbf16, #tpu.memory_space<vmem>>, vector<8x96xbf16>,
    %10 = tpu.iota {dimensions = array<i32: 0>} : vector<8x8xi32>
    %11 = tpu.iota {dimensions = array<i32: 1>} : vector<8x8xi32>
    %12 = arith.cmpi sgt, %11, %10 : vector<8x8xi32>
    %c0_8 = arith.constant 0 : index
    %c0_9 = arith.constant 0 : index
    %13 = vector.load %arg15[%c0_8, %c0_9] : memref<8x96xbf16, #tpu.memory_space<vmem>>, vector<8x8xbf16>
    %c0_10 = arith.constant 0 : index
    %c32 = arith.constant 32 : index
    %14 = vector.load %arg15[%c0_10, %c32] : memref<8x96xbf16, #tpu.memory_space<vmem>>, vector<8x8xbf16>
    %c0_11 = arith.constant 0 : index
    %c64 = arith.constant 64 : index
    %15 = vector.load %arg15[%c0_11, %c64] : memref<8x96xbf16, #tpu.memory_space<vmem>>, vector<8x8xbf16>
    %cst_12 = arith.constant dense<0.000000e+00> : vector<8x8xf32>
    %16 = tpu.matmul %13, %14, %cst_12 {dimension_numbers = #tpu.dot_dimension_numbers<[1], [1], [0], [0], [0, 0, 1, 0], [], []>} : vector<8x8xbf16>, vector<8x8xbf16>, vector<8x8xf32> -> vector<8x8xf32>
    %cst_13 = arith.constant -1.000000e+30 : f32
    %17 = vector.broadcast %cst_13 : f32 to vector<8x8xf32>
    %18 = arith.select %12, %17, %16 : vector<8x8xi1>, vector<8x8xf32>
    %cst_14 = arith.constant dense<0xFF800000> : vector<8xf32>
    %19 = vector.multi_reduction <maximumf>, %18, %cst_14 [1] : vector<8x8xf32> to vector<8xf32>
    %20 = vector.shape_cast %19 : vector<8xf32> to vector<8x1xf32>
    %21 = vector.broadcast %20 : vector<8x1xf32> to vector<8x8xf32>
    %22 = arith.subf %18, %21 : vector<8x8xf32>
    %23 = math.exp %22 : vector<8x8xf32>
    %cst_15 = arith.constant dense<0.000000e+00> : vector<8xf32>
    %24 = vector.multi_reduction <add>, %23, %cst_15 [1] : vector<8x8xf32> to vector<8xf32>
    %25 = vector.shape_cast %24 : vector<8xf32> to vector<8x1xf32>
    %26 = arith.truncf %23 : vector<8x8xf32> to vector<8x8xbf16>
    %cst_16 = arith.constant dense<0.000000e+00> : vector<8x8xf32>
    %27 = tpu.matmul %26, %15, %cst_16 {dimension_numbers = #tpu.dot_dimension_numbers<[1], [0], [0], [1], [0, 0, 1, 1], [], []>} : vector<8x8xbf16>, vector<8x8xbf16>, vector<8x8xf32> -> vector<8x8xf32>
    %28 = tpu.reciprocal %25 {approx = true} : vector<8x1xf32> -> vector<8x1xf32>
    %29 = vector.broadcast %28 : vector<8x1xf32> to vector<8x8xf32>
    %30 = arith.mulf %27, %29 : vector<8x8xf32>
    %31 = arith.truncf %30 : vector<8x8xf32> to vector<8x8xbf16>
    %c0_17 = arith.constant 0 : index
    %c0_18 = arith.constant 0 : index
    %32 = vector.load %arg16[%c0_17, %c0_18] : memref<8x32xbf16, #tpu.memory_space<vmem>>, vector<8x8xbf16>
    tpu.vector_store %arg16[%c0_17, %c0_18], %31 {strides = array<i32>} : memref<8x32xbf16, #tpu.memory_space<vmem>>, vector<8x8xbf16>,
    %c0_19 = arith.constant 0 : index
    %c8 = arith.constant 8 : index
    %33 = vector.load %arg15[%c0_19, %c8] : memref<8x96xbf16, #tpu.memory_space<vmem>>, vector<8x8xbf16>
    %c0_20 = arith.constant 0 : index
    %c40 = arith.constant 40 : index
    %34 = vector.load %arg15[%c0_20, %c40] : memref<8x96xbf16, #tpu.memory_space<vmem>>, vector<8x8xbf16>
    %c0_21 = arith.constant 0 : index
    %c72 = arith.constant 72 : index
    %35 = vector.load %arg15[%c0_21, %c72] : memref<8x96xbf16, #tpu.memory_space<vmem>>, vector<8x8xbf16>
    %cst_22 = arith.constant dense<0.000000e+00> : vector<8x8xf32>
    %36 = tpu.matmul %33, %34, %cst_22 {dimension_numbers = #tpu.dot_dimension_numbers<[1], [1], [0], [0], [0, 0, 1, 0], [], []>} : vector<8x8xbf16>, vector<8x8xbf16>, vector<8x8xf32> -> vector<8x8xf32>
    %cst_23 = arith.constant -1.000000e+30 : f32
    %37 = vector.broadcast %cst_23 : f32 to vector<8x8xf32>
    %38 = arith.select %12, %37, %36 : vector<8x8xi1>, vector<8x8xf32>
    %cst_24 = arith.constant dense<0xFF800000> : vector<8xf32>
    %39 = vector.multi_reduction <maximumf>, %38, %cst_24 [1] : vector<8x8xf32> to vector<8xf32>
    %40 = vector.shape_cast %39 : vector<8xf32> to vector<8x1xf32>
    %41 = vector.broadcast %40 : vector<8x1xf32> to vector<8x8xf32>
    %42 = arith.subf %38, %41 : vector<8x8xf32>
    %43 = math.exp %42 : vector<8x8xf32>
    %cst_25 = arith.constant dense<0.000000e+00> : vector<8xf32>
    %44 = vector.multi_reduction <add>, %43, %cst_25 [1] : vector<8x8xf32> to vector<8xf32>
    %45 = vector.shape_cast %44 : vector<8xf32> to vector<8x1xf32>
    %46 = arith.truncf %43 : vector<8x8xf32> to vector<8x8xbf16>
    %cst_26 = arith.constant dense<0.000000e+00> : vector<8x8xf32>
    %47 = tpu.matmul %46, %35, %cst_26 {dimension_numbers = #tpu.dot_dimension_numbers<[1], [0], [0], [1], [0, 0, 1, 1], [], []>} : vector<8x8xbf16>, vector<8x8xbf16>, vector<8x8xf32> -> vector<8x8xf32>
    %48 = tpu.reciprocal %45 {approx = true} : vector<8x1xf32> -> vector<8x1xf32>
    %49 = vector.broadcast %48 : vector<8x1xf32> to vector<8x8xf32>
    %50 = arith.mulf %47, %49 : vector<8x8xf32>
    %51 = arith.truncf %50 : vector<8x8xf32> to vector<8x8xbf16>
    %c0_27 = arith.constant 0 : index
    %c8_28 = arith.constant 8 : index
    %52 = vector.load %arg16[%c0_27, %c8_28] : memref<8x32xbf16, #tpu.memory_space<vmem>>, vector<8x8xbf16>
    tpu.vector_store %arg16[%c0_27, %c8_28], %51 {strides = array<i32>} : memref<8x32xbf16, #tpu.memory_space<vmem>>, vector<8x8xbf16>,
    %c0_29 = arith.constant 0 : index
    %c16 = arith.constant 16 : index
    %53 = vector.load %arg15[%c0_29, %c16] : memref<8x96xbf16, #tpu.memory_space<vmem>>, vector<8x8xbf16>
    %c0_30 = arith.constant 0 : index
    %c48 = arith.constant 48 : index
    %54 = vector.load %arg15[%c0_30, %c48] : memref<8x96xbf16, #tpu.memory_space<vmem>>, vector<8x8xbf16>
    %c0_31 = arith.constant 0 : index
    %c80 = arith.constant 80 : index
    %55 = vector.load %arg15[%c0_31, %c80] : memref<8x96xbf16, #tpu.memory_space<vmem>>, vector<8x8xbf16>
    %cst_32 = arith.constant dense<0.000000e+00> : vector<8x8xf32>
    %56 = tpu.matmul %53, %54, %cst_32 {dimension_numbers = #tpu.dot_dimension_numbers<[1], [1], [0], [0], [0, 0, 1, 0], [], []>} : vector<8x8xbf16>, vector<8x8xbf16>, vector<8x8xf32> -> vector<8x8xf32>
    %cst_33 = arith.constant -1.000000e+30 : f32
    %57 = vector.broadcast %cst_33 : f32 to vector<8x8xf32>
    %58 = arith.select %12, %57, %56 : vector<8x8xi1>, vector<8x8xf32>
    %cst_34 = arith.constant dense<0xFF800000> : vector<8xf32>
    %59 = vector.multi_reduction <maximumf>, %58, %cst_34 [1] : vector<8x8xf32> to vector<8xf32>
    %60 = vector.shape_cast %59 : vector<8xf32> to vector<8x1xf32>
    %61 = vector.broadcast %60 : vector<8x1xf32> to vector<8x8xf32>
    %62 = arith.subf %58, %61 : vector<8x8xf32>
    %63 = math.exp %62 : vector<8x8xf32>
    %cst_35 = arith.constant dense<0.000000e+00> : vector<8xf32>
    %64 = vector.multi_reduction <add>, %63, %cst_35 [1] : vector<8x8xf32> to vector<8xf32>
    %65 = vector.shape_cast %64 : vector<8xf32> to vector<8x1xf32>
    %66 = arith.truncf %63 : vector<8x8xf32> to vector<8x8xbf16>
    %cst_36 = arith.constant dense<0.000000e+00> : vector<8x8xf32>
    %67 = tpu.matmul %66, %55, %cst_36 {dimension_numbers = #tpu.dot_dimension_numbers<[1], [0], [0], [1], [0, 0, 1, 1], [], []>} : vector<8x8xbf16>, vector<8x8xbf16>, vector<8x8xf32> -> vector<8x8xf32>
    %68 = tpu.reciprocal %65 {approx = true} : vector<8x1xf32> -> vector<8x1xf32>
    %69 = vector.broadcast %68 : vector<8x1xf32> to vector<8x8xf32>
    %70 = arith.mulf %67, %69 : vector<8x8xf32>
    %71 = arith.truncf %70 : vector<8x8xf32> to vector<8x8xbf16>
    %c0_37 = arith.constant 0 : index
    %c16_38 = arith.constant 16 : index
    %72 = vector.load %arg16[%c0_37, %c16_38] : memref<8x32xbf16, #tpu.memory_space<vmem>>, vector<8x8xbf16>
    tpu.vector_store %arg16[%c0_37, %c16_38], %71 {strides = array<i32>} : memref<8x32xbf16, #tpu.memory_space<vmem>>, vector<8x8xbf16>,
    %c0_39 = arith.constant 0 : index
    %c24 = arith.constant 24 : index
    %73 = vector.load %arg15[%c0_39, %c24] : memref<8x96xbf16, #tpu.memory_space<vmem>>, vector<8x8xbf16>
    %c0_40 = arith.constant 0 : index
    %c56 = arith.constant 56 : index
    %74 = vector.load %arg15[%c0_40, %c56] : memref<8x96xbf16, #tpu.memory_space<vmem>>, vector<8x8xbf16>
    %c0_41 = arith.constant 0 : index
    %c88 = arith.constant 88 : index
    %75 = vector.load %arg15[%c0_41, %c88] : memref<8x96xbf16, #tpu.memory_space<vmem>>, vector<8x8xbf16>
    %cst_42 = arith.constant dense<0.000000e+00> : vector<8x8xf32>
    %76 = tpu.matmul %73, %74, %cst_42 {dimension_numbers = #tpu.dot_dimension_numbers<[1], [1], [0], [0], [0, 0, 1, 0], [], []>} : vector<8x8xbf16>, vector<8x8xbf16>, vector<8x8xf32> -> vector<8x8xf32>
    %cst_43 = arith.constant -1.000000e+30 : f32
    %77 = vector.broadcast %cst_43 : f32 to vector<8x8xf32>
    %78 = arith.select %12, %77, %76 : vector<8x8xi1>, vector<8x8xf32>
    %cst_44 = arith.constant dense<0xFF800000> : vector<8xf32>
    %79 = vector.multi_reduction <maximumf>, %78, %cst_44 [1] : vector<8x8xf32> to vector<8xf32>
    %80 = vector.shape_cast %79 : vector<8xf32> to vector<8x1xf32>
    %81 = vector.broadcast %80 : vector<8x1xf32> to vector<8x8xf32>
    %82 = arith.subf %78, %81 : vector<8x8xf32>
    %83 = math.exp %82 : vector<8x8xf32>
    %cst_45 = arith.constant dense<0.000000e+00> : vector<8xf32>
    %84 = vector.multi_reduction <add>, %83, %cst_45 [1] : vector<8x8xf32> to vector<8xf32>
    %85 = vector.shape_cast %84 : vector<8xf32> to vector<8x1xf32>
    %86 = arith.truncf %83 : vector<8x8xf32> to vector<8x8xbf16>
    %cst_46 = arith.constant dense<0.000000e+00> : vector<8x8xf32>
    %87 = tpu.matmul %86, %75, %cst_46 {dimension_numbers = #tpu.dot_dimension_numbers<[1], [0], [0], [1], [0, 0, 1, 1], [], []>} : vector<8x8xbf16>, vector<8x8xbf16>, vector<8x8xf32> -> vector<8x8xf32>
    %88 = tpu.reciprocal %85 {approx = true} : vector<8x1xf32> -> vector<8x1xf32>
    %89 = vector.broadcast %88 : vector<8x1xf32> to vector<8x8xf32>
    %90 = arith.mulf %87, %89 : vector<8x8xf32>
    %91 = arith.truncf %90 : vector<8x8xf32> to vector<8x8xbf16>
    %c0_47 = arith.constant 0 : index
    %c24_48 = arith.constant 24 : index
    %92 = vector.load %arg16[%c0_47, %c24_48] : memref<8x32xbf16, #tpu.memory_space<vmem>>, vector<8x8xbf16>
    tpu.vector_store %arg16[%c0_47, %c24_48], %91 {strides = array<i32>} : memref<8x32xbf16, #tpu.memory_space<vmem>>, vector<8x8xbf16>,
    %c0_49 = arith.constant 0 : index
    %c0_50 = arith.constant 0 : index
    %93 = vector.load %arg16[%c0_49, %c0_50] : memref<8x32xbf16, #tpu.memory_space<vmem>>, vector<8x32xbf16>
    %c0_51 = arith.constant 0 : index
    %c0_52 = arith.constant 0 : index
    %94 = vector.load %arg4[%c0_51, %c0_52] : memref<32x32xbf16, #tpu.memory_space<vmem>>, vector<32x32xbf16>
    %cst_53 = arith.constant dense<0.000000e+00> : vector<8x32xf32>
    %95 = tpu.matmul %93, %94, %cst_53 {dimension_numbers = #tpu.dot_dimension_numbers<[1], [0], [0], [1], [0, 0, 1, 1], [], []>} : vector<8x32xbf16>, vector<32x32xbf16>, vector<8x32xf32> -> vector<8x32xf32>
    %c0_54 = arith.constant 0 : index
    %c0_55 = arith.constant 0 : index
    %96 = vector.load %arg5[%c0_54, %c0_55] : memref<1x32xf32, #tpu.memory_space<vmem>>, vector<1x32xf32>
    %97 = vector.broadcast %96 : vector<1x32xf32> to vector<8x32xf32>
    %98 = arith.addf %95, %97 : vector<8x32xf32>
    %99 = arith.addf %1, %98 : vector<8x32xf32>
    %c0_56 = arith.constant 0 : index
    %c0_57 = arith.constant 0 : index
    %100 = vector.load %arg6[%c0_56, %c0_57] : memref<1x32xf32, #tpu.memory_space<vmem>>, vector<1x32xf32>
    %c0_58 = arith.constant 0 : index
    %c0_59 = arith.constant 0 : index
    %101 = vector.load %arg7[%c0_58, %c0_59] : memref<1x32xf32, #tpu.memory_space<vmem>>, vector<1x32xf32>
    %cst_60 = arith.constant dense<0.000000e+00> : vector<8xf32>
    %102 = vector.multi_reduction <add>, %99, %cst_60 [1] : vector<8x32xf32> to vector<8xf32>
    %103 = vector.shape_cast %102 : vector<8xf32> to vector<8x1xf32>
    %cst_61 = arith.constant 3.200000e+01 : f32
    %104 = vector.broadcast %cst_61 : f32 to vector<8x1xf32>
    %105 = arith.divf %103, %104 : vector<8x1xf32>
    %106 = vector.broadcast %105 : vector<8x1xf32> to vector<8x32xf32>
    %107 = arith.subf %99, %106 : vector<8x32xf32>
    %108 = arith.mulf %107, %107 : vector<8x32xf32>
    %cst_62 = arith.constant dense<0.000000e+00> : vector<8xf32>
    %109 = vector.multi_reduction <add>, %108, %cst_62 [1] : vector<8x32xf32> to vector<8xf32>
    %110 = vector.shape_cast %109 : vector<8xf32> to vector<8x1xf32>
    %cst_63 = arith.constant 3.200000e+01 : f32
    %111 = vector.broadcast %cst_63 : f32 to vector<8x1xf32>
    %112 = arith.divf %110, %111 : vector<8x1xf32>
    %113 = vector.broadcast %105 : vector<8x1xf32> to vector<8x32xf32>
    %114 = arith.subf %99, %113 : vector<8x32xf32>
    %cst_64 = arith.constant 9.99999974E-6 : f32
    %115 = vector.broadcast %cst_64 : f32 to vector<8x1xf32>
    %116 = arith.addf %112, %115 : vector<8x1xf32>
    %117 = math.rsqrt %116 : vector<8x1xf32>
    %118 = vector.broadcast %117 : vector<8x1xf32> to vector<8x32xf32>
    %119 = arith.mulf %114, %118 : vector<8x32xf32>
    %120 = vector.broadcast %100 : vector<1x32xf32> to vector<8x32xf32>
    %121 = arith.mulf %119, %120 : vector<8x32xf32>
    %122 = vector.broadcast %101 : vector<1x32xf32> to vector<8x32xf32>
    %123 = arith.addf %121, %122 : vector<8x32xf32>
    %124 = arith.truncf %98 : vector<8x32xf32> to vector<8x32xbf16>
    %125 = tpu.concatenate %2, %124 in 1 : vector<8x32xbf16>, vector<8x32xbf16> -> vector<8x64xbf16>
    %c0_65 = arith.constant 0 : index
    %c0_66 = arith.constant 0 : index
    %126 = vector.load %arg10[%c0_65, %c0_66] : memref<64x416xbf16, #tpu.memory_space<vmem>>, vector<64x416xbf16>
    %cst_67 = arith.constant dense<0.000000e+00> : vector<8x416xf32>
    %127 = tpu.matmul %125, %126, %cst_67 {dimension_numbers = #tpu.dot_dimension_numbers<[1], [0], [0], [1], [0, 0, 1, 1], [], []>} : vector<8x64xbf16>, vector<64x416xbf16>, vector<8x416xf32> -> vector<8x416xf32>
    %c0_68 = arith.constant 0 : index
    %c0_69 = arith.constant 0 : index
    %128 = vector.load %arg11[%c0_68, %c0_69] : memref<1x416xf32, #tpu.memory_space<vmem>>, vector<1x416xf32>
    %129 = vector.broadcast %128 : vector<1x416xf32> to vector<8x416xf32>
    %130 = arith.addf %127, %129 : vector<8x416xf32>
    %131 = vector.extract_strided_slice %130 {offsets = [0, 0], sizes = [8, 128], strides = [1, 1]} : vector<8x416xf32> to vector<8x128xf32>
    %cst_70 = arith.constant 0.000000e+00 : f32
    %132 = vector.broadcast %cst_70 : f32 to vector<8x128xf32>
    %133 = arith.cmpf oge, %131, %132 : vector<8x128xf32>
    %cst_71 = arith.constant 0.00999999977 : f32
    %134 = vector.broadcast %cst_71 : f32 to vector<8x128xf32>
    %135 = arith.mulf %134, %131 : vector<8x128xf32>
    %136 = arith.select %133, %131, %135 : vector<8x128xi1>, vector<8x128xf32>
    %137 = arith.truncf %136 : vector<8x128xf32> to vector<8x128xbf16>
    %c0_72 = arith.constant 0 : index
    %c0_73 = arith.constant 0 : index
    %138 = vector.load %arg12[%c0_72, %c0_73] : memref<128x288xbf16, #tpu.memory_space<vmem>>, vector<128x288xbf16>
    %cst_74 = arith.constant dense<0.000000e+00> : vector<8x288xf32>
    %139 = tpu.matmul %137, %138, %cst_74 {dimension_numbers = #tpu.dot_dimension_numbers<[1], [0], [0], [1], [0, 0, 1, 1], [], []>} : vector<8x128xbf16>, vector<128x288xbf16>, vector<8x288xf32> -> vector<8x288xf32>
    %140 = vector.extract_strided_slice %130 {offsets = [0, 128], sizes = [8, 256], strides = [1, 1]} : vector<8x416xf32> to vector<8x256xf32>
    %141 = vector.extract_strided_slice %139 {offsets = [0, 0], sizes = [8, 256], strides = [1, 1]} : vector<8x288xf32> to vector<8x256xf32>
    %142 = arith.addf %140, %141 : vector<8x256xf32>
    %cst_75 = arith.constant 0.000000e+00 : f32
    %143 = vector.broadcast %cst_75 : f32 to vector<8x256xf32>
    %144 = arith.cmpf oge, %142, %143 : vector<8x256xf32>
    %cst_76 = arith.constant 0.00999999977 : f32
    %145 = vector.broadcast %cst_76 : f32 to vector<8x256xf32>
    %146 = arith.mulf %145, %142 : vector<8x256xf32>
    %147 = arith.select %144, %142, %146 : vector<8x256xi1>, vector<8x256xf32>
    %148 = vector.extract_strided_slice %130 {offsets = [0, 384], sizes = [8, 32], strides = [1, 1]} : vector<8x416xf32> to vector<8x32xf32>
    %149 = vector.extract_strided_slice %139 {offsets = [0, 256], sizes = [8, 32], strides = [1, 1]} : vector<8x288xf32> to vector<8x32xf32>
    %150 = arith.addf %148, %149 : vector<8x32xf32>
    %151 = arith.truncf %147 : vector<8x256xf32> to vector<8x256xbf16>
    %c0_77 = arith.constant 0 : index
    %c0_78 = arith.constant 0 : index
    %152 = vector.load %arg13[%c0_77, %c0_78] : memref<256x32xbf16, #tpu.memory_space<vmem>>, vector<256x32xbf16>
    %cst_79 = arith.constant dense<0.000000e+00> : vector<8x32xf32>
    %153 = tpu.matmul %151, %152, %cst_79 {dimension_numbers = #tpu.dot_dimension_numbers<[1], [0], [0], [1], [0, 0, 1, 1], [], []>} : vector<8x256xbf16>, vector<256x32xbf16>, vector<8x32xf32> -> vector<8x32xf32>
    %154 = arith.addf %150, %153 : vector<8x32xf32>
    %cst_80 = arith.constant 0.000000e+00 : f32
    %155 = vector.broadcast %cst_80 : f32 to vector<8x32xf32>
    %156 = arith.cmpf oge, %154, %155 : vector<8x32xf32>
    %cst_81 = arith.constant 0.00999999977 : f32
    %157 = vector.broadcast %cst_81 : f32 to vector<8x32xf32>
    %158 = arith.mulf %157, %154 : vector<8x32xf32>
    %159 = arith.select %156, %154, %158 : vector<8x32xi1>, vector<8x32xf32>
    %160 = arith.addf %123, %159 : vector<8x32xf32>
    %161 = arith.addf %160, %1 : vector<8x32xf32>
    %c0_82 = arith.constant 0 : index
    %c0_83 = arith.constant 0 : index
    %162 = vector.load %arg8[%c0_82, %c0_83] : memref<1x32xf32, #tpu.memory_space<vmem>>, vector<1x32xf32>
    %c0_84 = arith.constant 0 : index
    %c0_85 = arith.constant 0 : index
    %163 = vector.load %arg9[%c0_84, %c0_85] : memref<1x32xf32, #tpu.memory_space<vmem>>, vector<1x32xf32>
    %cst_86 = arith.constant dense<0.000000e+00> : vector<8xf32>
    %164 = vector.multi_reduction <add>, %161, %cst_86 [1] : vector<8x32xf32> to vector<8xf32>
    %165 = vector.shape_cast %164 : vector<8xf32> to vector<8x1xf32>
    %cst_87 = arith.constant 3.200000e+01 : f32
    %166 = vector.broadcast %cst_87 : f32 to vector<8x1xf32>
    %167 = arith.divf %165, %166 : vector<8x1xf32>
    %168 = vector.broadcast %167 : vector<8x1xf32> to vector<8x32xf32>
    %169 = arith.subf %161, %168 : vector<8x32xf32>
    %170 = arith.mulf %169, %169 : vector<8x32xf32>
    %cst_88 = arith.constant dense<0.000000e+00> : vector<8xf32>
    %171 = vector.multi_reduction <add>, %170, %cst_88 [1] : vector<8x32xf32> to vector<8xf32>
    %172 = vector.shape_cast %171 : vector<8xf32> to vector<8x1xf32>
    %cst_89 = arith.constant 3.200000e+01 : f32
    %173 = vector.broadcast %cst_89 : f32 to vector<8x1xf32>
    %174 = arith.divf %172, %173 : vector<8x1xf32>
    %175 = vector.broadcast %167 : vector<8x1xf32> to vector<8x32xf32>
    %176 = arith.subf %161, %175 : vector<8x32xf32>
    %cst_90 = arith.constant 9.99999974E-6 : f32
    %177 = vector.broadcast %cst_90 : f32 to vector<8x1xf32>
    %178 = arith.addf %174, %177 : vector<8x1xf32>
    %179 = math.rsqrt %178 : vector<8x1xf32>
    %180 = vector.broadcast %179 : vector<8x1xf32> to vector<8x32xf32>
    %181 = arith.mulf %176, %180 : vector<8x32xf32>
    %182 = vector.broadcast %162 : vector<1x32xf32> to vector<8x32xf32>
    %183 = arith.mulf %181, %182 : vector<8x32xf32>
    %184 = vector.broadcast %163 : vector<1x32xf32> to vector<8x32xf32>
    %185 = arith.addf %183, %184 : vector<8x32xf32>
    %c0_91 = arith.constant 0 : index
    %c0_92 = arith.constant 0 : index
    %c0_93 = arith.constant 0 : index
    %186 = vector.load %arg14[%c0_91, %c0_92, %c0_93] : memref<1x8x32xf32, #tpu.memory_space<vmem>>, vector<1x8x32xf32>
    %187 = vector.shape_cast %186 : vector<1x8x32xf32> to vector<8x32xf32>
    %188 = vector.shape_cast %185 : vector<8x32xf32> to vector<1x8x32xf32>
    tpu.vector_store %arg14[%c0_91, %c0_92, %c0_93], %188 {strides = array<i32>} : memref<1x8x32xf32, #tpu.memory_space<vmem>>, vector<1x8x32xf32>,
    return
  }
  func.func @transform_0(%arg0: i32) -> (i32, i32, i32) {
    %c0_i32 = arith.constant 0 : i32
    %c0_i32_0 = arith.constant 0 : i32
    %c0_i32_1 = arith.constant 0 : i32
    return %arg0, %c0_i32, %c0_i32_0 : i32, i32, i32
  }
  func.func @transform_1(%arg0: i32) -> (i32, i32) {
    %c0_i32 = arith.constant 0 : i32
    %c0_i32_0 = arith.constant 0 : i32
    %c0_i32_1 = arith.constant 0 : i32
    return %c0_i32, %c0_i32_0 : i32, i32
  }
  func.func @transform_2(%arg0: i32) -> (i32, i32) {
    %c0_i32 = arith.constant 0 : i32
    %c0_i32_0 = arith.constant 0 : i32
    %c0_i32_1 = arith.constant 0 : i32
    return %c0_i32, %c0_i32_0 : i32, i32
  }
  func.func @transform_3(%arg0: i32) -> (i32, i32) {
    %c0_i32 = arith.constant 0 : i32
    %c0_i32_0 = arith.constant 0 : i32
    %c0_i32_1 = arith.constant 0 : i32
    return %c0_i32, %c0_i32_0 : i32, i32
  }
  func.func @transform_4(%arg0: i32) -> (i32, i32) {
    %c0_i32 = arith.constant 0 : i32
    %c0_i32_0 = arith.constant 0 : i32
    %c0_i32_1 = arith.constant 0 : i32
    return %c0_i32, %c0_i32_0 : i32, i32
  }
  func.func @transform_5(%arg0: i32) -> (i32, i32) {
    %c0_i32 = arith.constant 0 : i32
    %c0_i32_0 = arith.constant 0 : i32
    %c0_i32_1 = arith.constant 0 : i32
    return %c0_i32, %c0_i32_0 : i32, i32
  }
  func.func @transform_6(%arg0: i32) -> (i32, i32) {
    %c0_i32 = arith.constant 0 : i32
    %c0_i32_0 = arith.constant 0 : i32
    %c0_i32_1 = arith.constant 0 : i32
    return %c0_i32, %c0_i32_0 : i32, i32
  }
  func.func @transform_7(%arg0: i32) -> (i32, i32) {
    %c0_i32 = arith.constant 0 : i32
    %c0_i32_0 = arith.constant 0 : i32
    %c0_i32_1 = arith.constant 0 : i32
    return %c0_i32, %c0_i32_0 : i32, i32
  }
  func.func @transform_8(%arg0: i32) -> (i32, i32) {
    %c0_i32 = arith.constant 0 : i32
    %c0_i32_0 = arith.constant 0 : i32
    %c0_i32_1 = arith.constant 0 : i32
    return %c0_i32, %c0_i32_0 : i32, i32
  }
  func.func @transform_9(%arg0: i32) -> (i32, i32) {
    %c0_i32 = arith.constant 0 : i32
    %c0_i32_0 = arith.constant 0 : i32
    %c0_i32_1 = arith.constant 0 : i32
    return %c0_i32, %c0_i32_0 : i32, i32
  }
  func.func @transform_10(%arg0: i32) -> (i32, i32) {
    %c0_i32 = arith.constant 0 : i32
    %c0_i32_0 = arith.constant 0 : i32
    %c0_i32_1 = arith.constant 0 : i32
    return %c0_i32, %c0_i32_0 : i32, i32
  }
  func.func @transform_11(%arg0: i32) -> (i32, i32) {
    %c0_i32 = arith.constant 0 : i32
    %c0_i32_0 = arith.constant 0 : i32
    %c0_i32_1 = arith.constant 0 : i32
    return %c0_i32, %c0_i32_0 : i32, i32
  }
  func.func @transform_12(%arg0: i32) -> (i32, i32) {
    %c0_i32 = arith.constant 0 : i32
    %c0_i32_0 = arith.constant 0 : i32
    %c0_i32_1 = arith.constant 0 : i32
    return %c0_i32, %c0_i32_0 : i32, i32
  }
  func.func @transform_13(%arg0: i32) -> (i32, i32, i32) {
    %c0_i32 = arith.constant 0 : i32
    %c0_i32_0 = arith.constant 0 : i32
    %c0_i32_1 = arith.constant 0 : i32
    return %arg0, %c0_i32, %c0_i32_0 : i32, i32, i32
  }
}

module attributes {stable_mosaic.version = 11 : i64} {
  func.func @dense_transformer_kernel(%arg0: i32, %arg1: memref<1x8x32xf32, #tpu.memory_space<vmem>>, %arg2: memref<32x96xbf16, #tpu.memory_space<vmem>>, %arg3: memref<1x96xf32, #tpu.memory_space<vmem>>, %arg4: memref<32x32xbf16, #tpu.memory_space<vmem>>, %arg5: memref<1x32xf32, #tpu.memory_space<vmem>>, %arg6: memref<1x32xf32, #tpu.memory_space<vmem>>, %arg7: memref<1x32xf32, #tpu.memory_space<vmem>>, %arg8: memref<1x32xf32, #tpu.memory_space<vmem>>, %arg9: memref<1x32xf32, #tpu.memory_space<vmem>>, %arg10: memref<64x416xbf16, #tpu.memory_space<vmem>>, %arg11: memref<1x416xf32, #tpu.memory_space<vmem>>, %arg12: memref<128x288xbf16, #tpu.memory_space<vmem>>, %arg13: memref<256x32xbf16, #tpu.memory_space<vmem>>, %arg14: memref<1x8x32xf32, #tpu.memory_space<vmem>>, %arg15: memref<8x96xbf16, #tpu.memory_space<vmem>>, %arg16: memref<8x32xbf16, #tpu.memory_space<vmem>>) attributes {dimension_semantics = [#tpu.dimension_semantics<parallel>], iteration_bounds = array<i64: 2>, scalar_prefetch = 0 : i64, scratch_operands = 2 : i64, tpu.core_type = #tpu.core_type<tc>, window_params = [{transform_indices = @transform_0, window_bounds = array<i64: 1, 8, 32>}, {pipeline_mode = #tpu.pipeline_mode<synchronous>, transform_indices = @transform_1, window_bounds = array<i64: 32, 96>}, {pipeline_mode = #tpu.pipeline_mode<synchronous>, transform_indices = @transform_2, window_bounds = array<i64: 1, 96>}, {pipeline_mode = #tpu.pipeline_mode<synchronous>, transform_indices = @transform_3, window_bounds = array<i64: 32, 32>}, {pipeline_mode = #tpu.pipeline_mode<synchronous>, transform_indices = @transform_4, window_bounds = array<i64: 1, 32>}, {pipeline_mode = #tpu.pipeline_mode<synchronous>, transform_indices = @transform_5, window_bounds = array<i64: 1, 32>}, {pipeline_mode = #tpu.pipeline_mode<synchronous>, transform_indices = @transform_6, window_bounds = array<i64: 1, 32>}, {pipeline_mode = #tpu.pipeline_mode<synchronous>, transform_indices = @transform_7, window_bounds = array<i64: 1, 32>}, {pipeline_mode = #tpu.pipeline_mode<synchronous>, transform_indices = @transform_8, window_bounds = array<i64: 1, 32>}, {pipeline_mode = #tpu.pipeline_mode<synchronous>, transform_indices = @transform_9, window_bounds = array<i64: 64, 416>}, {pipeline_mode = #tpu.pipeline_mode<synchronous>, transform_indices = @transform_10, window_bounds = array<i64: 1, 416>}, {pipeline_mode = #tpu.pipeline_mode<synchronous>, transform_indices = @transform_11, window_bounds = array<i64: 128, 288>}, {pipeline_mode = #tpu.pipeline_mode<synchronous>, transform_indices = @transform_12, window_bounds = array<i64: 256, 32>}, {transform_indices = @transform_13, window_bounds = array<i64: 1, 8, 32>}]} {
    %c0 = arith.constant 0 : index
    %c0_0 = arith.constant 0 : index
    %c0_1 = arith.constant 0 : index
    %0 = vector.load %arg1[%c0, %c0_0, %c0_1] : memref<1x8x32xf32, #tpu.memory_space<vmem>>, vector<1x8x32xf32>
    %1 = vector.shape_cast %0 : vector<1x8x32xf32> to vector<8x32xf32>
    %2 = arith.truncf %1 : vector<8x32xf32> to vector<8x32xbf16>
    %c0_2 = arith.constant 0 : index
    %c0_3 = arith.constant 0 : index
    %3 = vector.load %arg2[%c0_2, %c0_3] : memref<32x96xbf16, #tpu.memory_space<vmem>>, vector<32x96xbf16>
    %cst = arith.constant dense<0.000000e+00> : vector<8x96xf32>
    %4 = tpu.matmul %2, %3, %cst {dimension_numbers = #tpu.dot_dimension_numbers<[1], [0], [0], [1], [0, 0, 1, 1], [], []>} : vector<8x32xbf16>, vector<32x96xbf16>, vector<8x96xf32> -> vector<8x96xf32>
    %c0_4 = arith.constant 0 : index
    %c0_5 = arith.constant 0 : index
    %5 = vector.load %arg3[%c0_4, %c0_5] : memref<1x96xf32, #tpu.memory_space<vmem>>, vector<1x96xf32>
    %6 = vector.broadcast %5 : vector<1x96xf32> to vector<8x96xf32>
    %7 = arith.addf %4, %6 : vector<8x96xf32>
    %8 = arith.truncf %7 : vector<8x96xf32> to vector<8x96xbf16>
    %c0_6 = arith.constant 0 : index
    %c0_7 = arith.constant 0 : index
    %9 = vector.load %arg15[%c0_6, %c0_7] : memref<8x96xbf16, #tpu.memory_space<vmem>>, vector<8x96xbf16>
    tpu.vector_store %arg15[%c0_6, %c0_7], %8 {strides = array<i32>} : memref<8x96xbf16, #tpu.memory_space<vmem>>, vector<8x96xbf16>,
    %10 = tpu.iota {dimensions = array<i32: 0>} : vector<8x8xi32>
    %11 = tpu.iota {dimensions = array<i32: 1>} : vector<8x8xi32>
    %12 = arith.cmpi sgt, %11, %10 : vector<8x8xi32>
    %c0_8 = arith.constant 0 : index
    %c0_9 = arith.constant 0 : index
    %13 = vector.load %arg15[%c0_8, %c0_9] : memref<8x96xbf16, #tpu.memory_space<vmem>>, vector<8x8xbf16>
    %c0_10 = arith.constant 0 : index
    %c32 = arith.constant 32 : index
    %14 = vector.load %arg15[%c0_10, %c32] : memref<8x96xbf16, #tpu.memory_space<vmem>>, vector<8x8xbf16>
    %c0_11 = arith.constant 0 : index
    %c64 = arith.constant 64 : index
    %15 = vector.load %arg15[%c0_11, %c64] : memref<8x96xbf16, #tpu.memory_space<vmem>>, vector<8x8xbf16>
    %cst_12 = arith.constant dense<0.000000e+00> : vector<8x8xf32>
    %16 = tpu.matmul %13, %14, %cst_12 {dimension_numbers = #tpu.dot_dimension_numbers<[1], [1], [0], [0], [0, 0, 1, 0], [], []>} : vector<8x8xbf16>, vector<8x8xbf16>, vector<8x8xf32> -> vector<8x8xf32>
    %cst_13 = arith.constant -1.000000e+30 : f32
    %17 = vector.broadcast %cst_13 : f32 to vector<8x8xf32>
    %18 = arith.select %12, %17, %16 : vector<8x8xi1>, vector<8x8xf32>
    %cst_14 = arith.constant dense<0xFF800000> : vector<8xf32>
    %19 = vector.multi_reduction <maximumf>, %18, %cst_14 [1] : vector<8x8xf32> to vector<8xf32>
    %20 = vector.shape_cast %19 : vector<8xf32> to vector<8x1xf32>
    %21 = vector.broadcast %20 : vector<8x1xf32> to vector<8x8xf32>
    %22 = arith.subf %18, %21 : vector<8x8xf32>
    %23 = math.exp %22 : vector<8x8xf32>
    %cst_15 = arith.constant dense<0.000000e+00> : vector<8xf32>
    %24 = vector.multi_reduction <add>, %23, %cst_15 [1] : vector<8x8xf32> to vector<8xf32>
    %25 = vector.shape_cast %24 : vector<8xf32> to vector<8x1xf32>
    %26 = arith.truncf %23 : vector<8x8xf32> to vector<8x8xbf16>
    %cst_16 = arith.constant dense<0.000000e+00> : vector<8x8xf32>
    %27 = tpu.matmul %26, %15, %cst_16 {dimension_numbers = #tpu.dot_dimension_numbers<[1], [0], [0], [1], [0, 0, 1, 1], [], []>} : vector<8x8xbf16>, vector<8x8xbf16>, vector<8x8xf32> -> vector<8x8xf32>
    %28 = tpu.reciprocal %25 {approx = true} : vector<8x1xf32> -> vector<8x1xf32>
    %29 = vector.broadcast %28 : vector<8x1xf32> to vector<8x8xf32>
    %30 = arith.mulf %27, %29 : vector<8x8xf32>
    %31 = arith.truncf %30 : vector<8x8xf32> to vector<8x8xbf16>
    %c0_17 = arith.constant 0 : index
    %c0_18 = arith.constant 0 : index
    %32 = vector.load %arg16[%c0_17, %c0_18] : memref<8x32xbf16, #tpu.memory_space<vmem>>, vector<8x8xbf16>
    tpu.vector_store %arg16[%c0_17, %c0_18], %31 {strides = array<i32>} : memref<8x32xbf16, #tpu.memory_space<vmem>>, vector<8x8xbf16>,
    %c0_19 = arith.constant 0 : index
    %c8 = arith.constant 8 : index
    %33 = vector.load %arg15[%c0_19, %c8] : memref<8x96xbf16, #tpu.memory_space<vmem>>, vector<8x8xbf16>
    %c0_20 = arith.constant 0 : index
    %c40 = arith.constant 40 : index
    %34 = vector.load %arg15[%c0_20, %c40] : memref<8x96xbf16, #tpu.memory_space<vmem>>, vector<8x8xbf16>
    %c0_21 = arith.constant 0 : index
    %c72 = arith.constant 72 : index
    %35 = vector.load %arg15[%c0_21, %c72] : memref<8x96xbf16, #tpu.memory_space<vmem>>, vector<8x8xbf16>
    %cst_22 = arith.constant dense<0.000000e+00> : vector<8x8xf32>
    %36 = tpu.matmul %33, %34, %cst_22 {dimension_numbers = #tpu.dot_dimension_numbers<[1], [1], [0], [0], [0, 0, 1, 0], [], []>} : vector<8x8xbf16>, vector<8x8xbf16>, vector<8x8xf32> -> vector<8x8xf32>
    %cst_23 = arith.constant -1.000000e+30 : f32
    %37 = vector.broadcast %cst_23 : f32 to vector<8x8xf32>
    %38 = arith.select %12, %37, %36 : vector<8x8xi1>, vector<8x8xf32>
    %cst_24 = arith.constant dense<0xFF800000> : vector<8xf32>
    %39 = vector.multi_reduction <maximumf>, %38, %cst_24 [1] : vector<8x8xf32> to vector<8xf32>
    %40 = vector.shape_cast %39 : vector<8xf32> to vector<8x1xf32>
    %41 = vector.broadcast %40 : vector<8x1xf32> to vector<8x8xf32>
    %42 = arith.subf %38, %41 : vector<8x8xf32>
    %43 = math.exp %42 : vector<8x8xf32>
    %cst_25 = arith.constant dense<0.000000e+00> : vector<8xf32>
    %44 = vector.multi_reduction <add>, %43, %cst_25 [1] : vector<8x8xf32> to vector<8xf32>
    %45 = vector.shape_cast %44 : vector<8xf32> to vector<8x1xf32>
    %46 = arith.truncf %43 : vector<8x8xf32> to vector<8x8xbf16>
    %cst_26 = arith.constant dense<0.000000e+00> : vector<8x8xf32>
    %47 = tpu.matmul %46, %35, %cst_26 {dimension_numbers = #tpu.dot_dimension_numbers<[1], [0], [0], [1], [0, 0, 1, 1], [], []>} : vector<8x8xbf16>, vector<8x8xbf16>, vector<8x8xf32> -> vector<8x8xf32>
    %48 = tpu.reciprocal %45 {approx = true} : vector<8x1xf32> -> vector<8x1xf32>
    %49 = vector.broadcast %48 : vector<8x1xf32> to vector<8x8xf32>
    %50 = arith.mulf %47, %49 : vector<8x8xf32>
    %51 = arith.truncf %50 : vector<8x8xf32> to vector<8x8xbf16>
    %c0_27 = arith.constant 0 : index
    %c8_28 = arith.constant 8 : index
    %52 = vector.load %arg16[%c0_27, %c8_28] : memref<8x32xbf16, #tpu.memory_space<vmem>>, vector<8x8xbf16>
    tpu.vector_store %arg16[%c0_27, %c8_28], %51 {strides = array<i32>} : memref<8x32xbf16, #tpu.memory_space<vmem>>, vector<8x8xbf16>,
    %c0_29 = arith.constant 0 : index
    %c16 = arith.constant 16 : index
    %53 = vector.load %arg15[%c0_29, %c16] : memref<8x96xbf16, #tpu.memory_space<vmem>>, vector<8x8xbf16>
    %c0_30 = arith.constant 0 : index
    %c48 = arith.constant 48 : index
    %54 = vector.load %arg15[%c0_30, %c48] : memref<8x96xbf16, #tpu.memory_space<vmem>>, vector<8x8xbf16>
    %c0_31 = arith.constant 0 : index
    %c80 = arith.constant 80 : index
    %55 = vector.load %arg15[%c0_31, %c80] : memref<8x96xbf16, #tpu.memory_space<vmem>>, vector<8x8xbf16>
    %cst_32 = arith.constant dense<0.000000e+00> : vector<8x8xf32>
    %56 = tpu.matmul %53, %54, %cst_32 {dimension_numbers = #tpu.dot_dimension_numbers<[1], [1], [0], [0], [0, 0, 1, 0], [], []>} : vector<8x8xbf16>, vector<8x8xbf16>, vector<8x8xf32> -> vector<8x8xf32>
    %cst_33 = arith.constant -1.000000e+30 : f32
    %57 = vector.broadcast %cst_33 : f32 to vector<8x8xf32>
    %58 = arith.select %12, %57, %56 : vector<8x8xi1>, vector<8x8xf32>
    %cst_34 = arith.constant dense<0xFF800000> : vector<8xf32>
    %59 = vector.multi_reduction <maximumf>, %58, %cst_34 [1] : vector<8x8xf32> to vector<8xf32>
    %60 = vector.shape_cast %59 : vector<8xf32> to vector<8x1xf32>
    %61 = vector.broadcast %60 : vector<8x1xf32> to vector<8x8xf32>
    %62 = arith.subf %58, %61 : vector<8x8xf32>
    %63 = math.exp %62 : vector<8x8xf32>
    %cst_35 = arith.constant dense<0.000000e+00> : vector<8xf32>
    %64 = vector.multi_reduction <add>, %63, %cst_35 [1] : vector<8x8xf32> to vector<8xf32>
    %65 = vector.shape_cast %64 : vector<8xf32> to vector<8x1xf32>
    %66 = arith.truncf %63 : vector<8x8xf32> to vector<8x8xbf16>
    %cst_36 = arith.constant dense<0.000000e+00> : vector<8x8xf32>
    %67 = tpu.matmul %66, %55, %cst_36 {dimension_numbers = #tpu.dot_dimension_numbers<[1], [0], [0], [1], [0, 0, 1, 1], [], []>} : vector<8x8xbf16>, vector<8x8xbf16>, vector<8x8xf32> -> vector<8x8xf32>
    %68 = tpu.reciprocal %65 {approx = true} : vector<8x1xf32> -> vector<8x1xf32>
    %69 = vector.broadcast %68 : vector<8x1xf32> to vector<8x8xf32>
    %70 = arith.mulf %67, %69 : vector<8x8xf32>
    %71 = arith.truncf %70 : vector<8x8xf32> to vector<8x8xbf16>
    %c0_37 = arith.constant 0 : index
    %c16_38 = arith.constant 16 : index
    %72 = vector.load %arg16[%c0_37, %c16_38] : memref<8x32xbf16, #tpu.memory_space<vmem>>, vector<8x8xbf16>
    tpu.vector_store %arg16[%c0_37, %c16_38], %71 {strides = array<i32>} : memref<8x32xbf16, #tpu.memory_space<vmem>>, vector<8x8xbf16>,
    %c0_39 = arith.constant 0 : index
    %c24 = arith.constant 24 : index
    %73 = vector.load %arg15[%c0_39, %c24] : memref<8x96xbf16, #tpu.memory_space<vmem>>, vector<8x8xbf16>
    %c0_40 = arith.constant 0 : index
    %c56 = arith.constant 56 : index
    %74 = vector.load %arg15[%c0_40, %c56] : memref<8x96xbf16, #tpu.memory_space<vmem>>, vector<8x8xbf16>
    %c0_41 = arith.constant 0 : index
    %c88 = arith.constant 88 : index
    %75 = vector.load %arg15[%c0_41, %c88] : memref<8x96xbf16, #tpu.memory_space<vmem>>, vector<8x8xbf16>
    %cst_42 = arith.constant dense<0.000000e+00> : vector<8x8xf32>
    %76 = tpu.matmul %73, %74, %cst_42 {dimension_numbers = #tpu.dot_dimension_numbers<[1], [1], [0], [0], [0, 0, 1, 0], [], []>} : vector<8x8xbf16>, vector<8x8xbf16>, vector<8x8xf32> -> vector<8x8xf32>
    %cst_43 = arith.constant -1.000000e+30 : f32
    %77 = vector.broadcast %cst_43 : f32 to vector<8x8xf32>
    %78 = arith.select %12, %77, %76 : vector<8x8xi1>, vector<8x8xf32>
    %cst_44 = arith.constant dense<0xFF800000> : vector<8xf32>
    %79 = vector.multi_reduction <maximumf>, %78, %cst_44 [1] : vector<8x8xf32> to vector<8xf32>
    %80 = vector.shape_cast %79 : vector<8xf32> to vector<8x1xf32>
    %81 = vector.broadcast %80 : vector<8x1xf32> to vector<8x8xf32>
    %82 = arith.subf %78, %81 : vector<8x8xf32>
    %83 = math.exp %82 : vector<8x8xf32>
    %cst_45 = arith.constant dense<0.000000e+00> : vector<8xf32>
    %84 = vector.multi_reduction <add>, %83, %cst_45 [1] : vector<8x8xf32> to vector<8xf32>
    %85 = vector.shape_cast %84 : vector<8xf32> to vector<8x1xf32>
    %86 = arith.truncf %83 : vector<8x8xf32> to vector<8x8xbf16>
    %cst_46 = arith.constant dense<0.000000e+00> : vector<8x8xf32>
    %87 = tpu.matmul %86, %75, %cst_46 {dimension_numbers = #tpu.dot_dimension_numbers<[1], [0], [0], [1], [0, 0, 1, 1], [], []>} : vector<8x8xbf16>, vector<8x8xbf16>, vector<8x8xf32> -> vector<8x8xf32>
    %88 = tpu.reciprocal %85 {approx = true} : vector<8x1xf32> -> vector<8x1xf32>
    %89 = vector.broadcast %88 : vector<8x1xf32> to vector<8x8xf32>
    %90 = arith.mulf %87, %89 : vector<8x8xf32>
    %91 = arith.truncf %90 : vector<8x8xf32> to vector<8x8xbf16>
    %c0_47 = arith.constant 0 : index
    %c24_48 = arith.constant 24 : index
    %92 = vector.load %arg16[%c0_47, %c24_48] : memref<8x32xbf16, #tpu.memory_space<vmem>>, vector<8x8xbf16>
    tpu.vector_store %arg16[%c0_47, %c24_48], %91 {strides = array<i32>} : memref<8x32xbf16, #tpu.memory_space<vmem>>, vector<8x8xbf16>,
    %c0_49 = arith.constant 0 : index
    %c0_50 = arith.constant 0 : index
    %93 = vector.load %arg16[%c0_49, %c0_50] : memref<8x32xbf16, #tpu.memory_space<vmem>>, vector<8x32xbf16>
    %c0_51 = arith.constant 0 : index
    %c0_52 = arith.constant 0 : index
    %94 = vector.load %arg4[%c0_51, %c0_52] : memref<32x32xbf16, #tpu.memory_space<vmem>>, vector<32x32xbf16>
    %cst_53 = arith.constant dense<0.000000e+00> : vector<8x32xf32>
    %95 = tpu.matmul %93, %94, %cst_53 {dimension_numbers = #tpu.dot_dimension_numbers<[1], [0], [0], [1], [0, 0, 1, 1], [], []>} : vector<8x32xbf16>, vector<32x32xbf16>, vector<8x32xf32> -> vector<8x32xf32>
    %c0_54 = arith.constant 0 : index
    %c0_55 = arith.constant 0 : index
    %96 = vector.load %arg5[%c0_54, %c0_55] : memref<1x32xf32, #tpu.memory_space<vmem>>, vector<1x32xf32>
    %97 = vector.broadcast %96 : vector<1x32xf32> to vector<8x32xf32>
    %98 = arith.addf %95, %97 : vector<8x32xf32>
    %99 = arith.addf %1, %98 : vector<8x32xf32>
    %c0_56 = arith.constant 0 : index
    %c0_57 = arith.constant 0 : index
    %100 = vector.load %arg6[%c0_56, %c0_57] : memref<1x32xf32, #tpu.memory_space<vmem>>, vector<1x32xf32>
    %c0_58 = arith.constant 0 : index
    %c0_59 = arith.constant 0 : index
    %101 = vector.load %arg7[%c0_58, %c0_59] : memref<1x32xf32, #tpu.memory_space<vmem>>, vector<1x32xf32>
    %cst_60 = arith.constant dense<0.000000e+00> : vector<8xf32>
    %102 = vector.multi_reduction <add>, %99, %cst_60 [1] : vector<8x32xf32> to vector<8xf32>
    %103 = vector.shape_cast %102 : vector<8xf32> to vector<8x1xf32>
    %cst_61 = arith.constant 3.200000e+01 : f32
    %104 = vector.broadcast %cst_61 : f32 to vector<8x1xf32>
    %105 = arith.divf %103, %104 : vector<8x1xf32>
    %106 = vector.broadcast %105 : vector<8x1xf32> to vector<8x32xf32>
    %107 = arith.subf %99, %106 : vector<8x32xf32>
    %108 = arith.mulf %107, %107 : vector<8x32xf32>
    %cst_62 = arith.constant dense<0.000000e+00> : vector<8xf32>
    %109 = vector.multi_reduction <add>, %108, %cst_62 [1] : vector<8x32xf32> to vector<8xf32>
    %110 = vector.shape_cast %109 : vector<8xf32> to vector<8x1xf32>
    %cst_63 = arith.constant 3.200000e+01 : f32
    %111 = vector.broadcast %cst_63 : f32 to vector<8x1xf32>
    %112 = arith.divf %110, %111 : vector<8x1xf32>
    %113 = vector.broadcast %105 : vector<8x1xf32> to vector<8x32xf32>
    %114 = arith.subf %99, %113 : vector<8x32xf32>
    %cst_64 = arith.constant 9.99999974E-6 : f32
    %115 = vector.broadcast %cst_64 : f32 to vector<8x1xf32>
    %116 = arith.addf %112, %115 : vector<8x1xf32>
    %117 = math.rsqrt %116 : vector<8x1xf32>
    %118 = vector.broadcast %117 : vector<8x1xf32> to vector<8x32xf32>
    %119 = arith.mulf %114, %118 : vector<8x32xf32>
    %120 = vector.broadcast %100 : vector<1x32xf32> to vector<8x32xf32>
    %121 = arith.mulf %119, %120 : vector<8x32xf32>
    %122 = vector.broadcast %101 : vector<1x32xf32> to vector<8x32xf32>
    %123 = arith.addf %121, %122 : vector<8x32xf32>
    %124 = arith.truncf %98 : vector<8x32xf32> to vector<8x32xbf16>
    %125 = tpu.concatenate %2, %124 in 1 : vector<8x32xbf16>, vector<8x32xbf16> -> vector<8x64xbf16>
    %c0_65 = arith.constant 0 : index
    %c0_66 = arith.constant 0 : index
    %126 = vector.load %arg10[%c0_65, %c0_66] : memref<64x416xbf16, #tpu.memory_space<vmem>>, vector<64x416xbf16>
    %cst_67 = arith.constant dense<0.000000e+00> : vector<8x416xf32>
    %127 = tpu.matmul %125, %126, %cst_67 {dimension_numbers = #tpu.dot_dimension_numbers<[1], [0], [0], [1], [0, 0, 1, 1], [], []>} : vector<8x64xbf16>, vector<64x416xbf16>, vector<8x416xf32> -> vector<8x416xf32>
    %c0_68 = arith.constant 0 : index
    %c0_69 = arith.constant 0 : index
    %128 = vector.load %arg11[%c0_68, %c0_69] : memref<1x416xf32, #tpu.memory_space<vmem>>, vector<1x416xf32>
    %129 = vector.broadcast %128 : vector<1x416xf32> to vector<8x416xf32>
    %130 = arith.addf %127, %129 : vector<8x416xf32>
    %131 = vector.extract_strided_slice %130 {offsets = [0, 0], sizes = [8, 128], strides = [1, 1]} : vector<8x416xf32> to vector<8x128xf32>
    %cst_70 = arith.constant 0.000000e+00 : f32
    %132 = vector.broadcast %cst_70 : f32 to vector<8x128xf32>
    %133 = arith.cmpf oge, %131, %132 : vector<8x128xf32>
    %cst_71 = arith.constant 0.00999999977 : f32
    %134 = vector.broadcast %cst_71 : f32 to vector<8x128xf32>
    %135 = arith.mulf %134, %131 : vector<8x128xf32>
    %136 = arith.select %133, %131, %135 : vector<8x128xi1>, vector<8x128xf32>
    %137 = arith.truncf %136 : vector<8x128xf32> to vector<8x128xbf16>
    %c0_72 = arith.constant 0 : index
    %c0_73 = arith.constant 0 : index
    %138 = vector.load %arg12[%c0_72, %c0_73] : memref<128x288xbf16, #tpu.memory_space<vmem>>, vector<128x288xbf16>
    %cst_74 = arith.constant dense<0.000000e+00> : vector<8x288xf32>
    %139 = tpu.matmul %137, %138, %cst_74 {dimension_numbers = #tpu.dot_dimension_numbers<[1], [0], [0], [1], [0, 0, 1, 1], [], []>} : vector<8x128xbf16>, vector<128x288xbf16>, vector<8x288xf32> -> vector<8x288xf32>
    %140 = vector.extract_strided_slice %130 {offsets = [0, 128], sizes = [8, 256], strides = [1, 1]} : vector<8x416xf32> to vector<8x256xf32>
    %141 = vector.extract_strided_slice %139 {offsets = [0, 0], sizes = [8, 256], strides = [1, 1]} : vector<8x288xf32> to vector<8x256xf32>
    %142 = arith.addf %140, %141 : vector<8x256xf32>
    %cst_75 = arith.constant 0.000000e+00 : f32
    %143 = vector.broadcast %cst_75 : f32 to vector<8x256xf32>
    %144 = arith.cmpf oge, %142, %143 : vector<8x256xf32>
    %cst_76 = arith.constant 0.00999999977 : f32
    %145 = vector.broadcast %cst_76 : f32 to vector<8x256xf32>
    %146 = arith.mulf %145, %142 : vector<8x256xf32>
    %147 = arith.select %144, %142, %146 : vector<8x256xi1>, vector<8x256xf32>
    %148 = vector.extract_strided_slice %130 {offsets = [0, 384], sizes = [8, 32], strides = [1, 1]} : vector<8x416xf32> to vector<8x32xf32>
    %149 = vector.extract_strided_slice %139 {offsets = [0, 256], sizes = [8, 32], strides = [1, 1]} : vector<8x288xf32> to vector<8x32xf32>
    %150 = arith.addf %148, %149 : vector<8x32xf32>
    %151 = arith.truncf %147 : vector<8x256xf32> to vector<8x256xbf16>
    %c0_77 = arith.constant 0 : index
    %c0_78 = arith.constant 0 : index
    %152 = vector.load %arg13[%c0_77, %c0_78] : memref<256x32xbf16, #tpu.memory_space<vmem>>, vector<256x32xbf16>
    %cst_79 = arith.constant dense<0.000000e+00> : vector<8x32xf32>
    %153 = tpu.matmul %151, %152, %cst_79 {dimension_numbers = #tpu.dot_dimension_numbers<[1], [0], [0], [1], [0, 0, 1, 1], [], []>} : vector<8x256xbf16>, vector<256x32xbf16>, vector<8x32xf32> -> vector<8x32xf32>
    %154 = arith.addf %150, %153 : vector<8x32xf32>
    %cst_80 = arith.constant 0.000000e+00 : f32
    %155 = vector.broadcast %cst_80 : f32 to vector<8x32xf32>
    %156 = arith.cmpf oge, %154, %155 : vector<8x32xf32>
    %cst_81 = arith.constant 0.00999999977 : f32
    %157 = vector.broadcast %cst_81 : f32 to vector<8x32xf32>
    %158 = arith.mulf %157, %154 : vector<8x32xf32>
    %159 = arith.select %156, %154, %158 : vector<8x32xi1>, vector<8x32xf32>
    %160 = arith.addf %123, %159 : vector<8x32xf32>
    %161 = arith.addf %160, %1 : vector<8x32xf32>
    %c0_82 = arith.constant 0 : index
    %c0_83 = arith.constant 0 : index
    %162 = vector.load %arg8[%c0_82, %c0_83] : memref<1x32xf32, #tpu.memory_space<vmem>>, vector<1x32xf32>
    %c0_84 = arith.constant 0 : index
    %c0_85 = arith.constant 0 : index
    %163 = vector.load %arg9[%c0_84, %c0_85] : memref<1x32xf32, #tpu.memory_space<vmem>>, vector<1x32xf32>
    %cst_86 = arith.constant dense<0.000000e+00> : vector<8xf32>
    %164 = vector.multi_reduction <add>, %161, %cst_86 [1] : vector<8x32xf32> to vector<8xf32>
    %165 = vector.shape_cast %164 : vector<8xf32> to vector<8x1xf32>
    %cst_87 = arith.constant 3.200000e+01 : f32
    %166 = vector.broadcast %cst_87 : f32 to vector<8x1xf32>
    %167 = arith.divf %165, %166 : vector<8x1xf32>
    %168 = vector.broadcast %167 : vector<8x1xf32> to vector<8x32xf32>
    %169 = arith.subf %161, %168 : vector<8x32xf32>
    %170 = arith.mulf %169, %169 : vector<8x32xf32>
    %cst_88 = arith.constant dense<0.000000e+00> : vector<8xf32>
    %171 = vector.multi_reduction <add>, %170, %cst_88 [1] : vector<8x32xf32> to vector<8xf32>
    %172 = vector.shape_cast %171 : vector<8xf32> to vector<8x1xf32>
    %cst_89 = arith.constant 3.200000e+01 : f32
    %173 = vector.broadcast %cst_89 : f32 to vector<8x1xf32>
    %174 = arith.divf %172, %173 : vector<8x1xf32>
    %175 = vector.broadcast %167 : vector<8x1xf32> to vector<8x32xf32>
    %176 = arith.subf %161, %175 : vector<8x32xf32>
    %cst_90 = arith.constant 9.99999974E-6 : f32
    %177 = vector.broadcast %cst_90 : f32 to vector<8x1xf32>
    %178 = arith.addf %174, %177 : vector<8x1xf32>
    %179 = math.rsqrt %178 : vector<8x1xf32>
    %180 = vector.broadcast %179 : vector<8x1xf32> to vector<8x32xf32>
    %181 = arith.mulf %176, %180 : vector<8x32xf32>
    %182 = vector.broadcast %162 : vector<1x32xf32> to vector<8x32xf32>
    %183 = arith.mulf %181, %182 : vector<8x32xf32>
    %184 = vector.broadcast %163 : vector<1x32xf32> to vector<8x32xf32>
    %185 = arith.addf %183, %184 : vector<8x32xf32>
    %c0_91 = arith.constant 0 : index
    %c0_92 = arith.constant 0 : index
    %c0_93 = arith.constant 0 : index
    %186 = vector.load %arg14[%c0_91, %c0_92, %c0_93] : memref<1x8x32xf32, #tpu.memory_space<vmem>>, vector<1x8x32xf32>
    %187 = vector.shape_cast %186 : vector<1x8x32xf32> to vector<8x32xf32>
    %188 = vector.shape_cast %185 : vector<8x32xf32> to vector<1x8x32xf32>
    tpu.vector_store %arg14[%c0_91, %c0_92, %c0_93], %188 {strides = array<i32>} : memref<1x8x32xf32, #tpu.memory_space<vmem>>, vector<1x8x32xf32>,
    return
  }
  func.func @transform_0(%arg0: i32) -> (i32, i32, i32) {
    %c0_i32 = arith.constant 0 : i32
    %c0_i32_0 = arith.constant 0 : i32
    %c0_i32_1 = arith.constant 0 : i32
    return %arg0, %c0_i32, %c0_i32_0 : i32, i32, i32
  }
  func.func @transform_1(%arg0: i32) -> (i32, i32) {
    %c0_i32 = arith.constant 0 : i32
    %c0_i32_0 = arith.constant 0 : i32
    %c0_i32_1 = arith.constant 0 : i32
    return %c0_i32, %c0_i32_0 : i32, i32
  }
  func.func @transform_2(%arg0: i32) -> (i32, i32) {
    %c0_i32 = arith.constant 0 : i32
    %c0_i32_0 = arith.constant 0 : i32
    %c0_i32_1 = arith.constant 0 : i32
    return %c0_i32, %c0_i32_0 : i32, i32
  }
  func.func @transform_3(%arg0: i32) -> (i32, i32) {
    %c0_i32 = arith.constant 0 : i32
    %c0_i32_0 = arith.constant 0 : i32
    %c0_i32_1 = arith.constant 0 : i32
    return %c0_i32, %c0_i32_0 : i32, i32
  }
  func.func @transform_4(%arg0: i32) -> (i32, i32) {
    %c0_i32 = arith.constant 0 : i32
    %c0_i32_0 = arith.constant 0 : i32
    %c0_i32_1 = arith.constant 0 : i32
    return %c0_i32, %c0_i32_0 : i32, i32
  }
  func.func @transform_5(%arg0: i32) -> (i32, i32) {
    %c0_i32 = arith.constant 0 : i32
    %c0_i32_0 = arith.constant 0 : i32
    %c0_i32_1 = arith.constant 0 : i32
    return %c0_i32, %c0_i32_0 : i32, i32
  }
  func.func @transform_6(%arg0: i32) -> (i32, i32) {
    %c0_i32 = arith.constant 0 : i32
    %c0_i32_0 = arith.constant 0 : i32
    %c0_i32_1 = arith.constant 0 : i32
    return %c0_i32, %c0_i32_0 : i32, i32
  }
  func.func @transform_7(%arg0: i32) -> (i32, i32) {
    %c0_i32 = arith.constant 0 : i32
    %c0_i32_0 = arith.constant 0 : i32
    %c0_i32_1 = arith.constant 0 : i32
    return %c0_i32, %c0_i32_0 : i32, i32
  }
  func.func @transform_8(%arg0: i32) -> (i32, i32) {
    %c0_i32 = arith.constant 0 : i32
    %c0_i32_0 = arith.constant 0 : i32
    %c0_i32_1 = arith.constant 0 : i32
    return %c0_i32, %c0_i32_0 : i32, i32
  }
  func.func @transform_9(%arg0: i32) -> (i32, i32) {
    %c0_i32 = arith.constant 0 : i32
    %c0_i32_0 = arith.constant 0 : i32
    %c0_i32_1 = arith.constant 0 : i32
    return %c0_i32, %c0_i32_0 : i32, i32
  }
  func.func @transform_10(%arg0: i32) -> (i32, i32) {
    %c0_i32 = arith.constant 0 : i32
    %c0_i32_0 = arith.constant 0 : i32
    %c0_i32_1 = arith.constant 0 : i32
    return %c0_i32, %c0_i32_0 : i32, i32
  }
  func.func @transform_11(%arg0: i32) -> (i32, i32) {
    %c0_i32 = arith.constant 0 : i32
    %c0_i32_0 = arith.constant 0 : i32
    %c0_i32_1 = arith.constant 0 : i32
    return %c0_i32, %c0_i32_0 : i32, i32
  }
  func.func @transform_12(%arg0: i32) -> (i32, i32) {
    %c0_i32 = arith.constant 0 : i32
    %c0_i32_0 = arith.constant 0 : i32
    %c0_i32_1 = arith.constant 0 : i32
    return %c0_i32, %c0_i32_0 : i32, i32
  }
  func.func @transform_13(%arg0: i32) -> (i32, i32, i32) {
    %c0_i32 = arith.constant 0 : i32
    %c0_i32_0 = arith.constant 0 : i32
    %c0_i32_1 = arith.constant 0 : i32
    return %arg0, %c0_i32, %c0_i32_0 : i32, i32, i32
  }
}

</mosaic_0001>

<llo_original>
// kernel: tpu_custom_call.1
$region0: #{tpu_custom_call.1}
  #allocation0 [shape = 'u32[]', space=smem, size = 0x4, offset = 0x4, fixed_abs, tag = 'smem constant byte address 0x4 - core index']
  #allocation1 [shape = 'u32[144,128]{1,0:T(1,128)}', space=vmem, size = 0x12000, scoped, tag = 'internal scratch']
  #allocation2 [shape = 'bf16[8,96]{1,0:T(8,128)(2,1)}', space=vmem, size = 0x800, scoped, tag = 'scratch operand']
  #allocation3 [shape = 'bf16[8,32]{1,0:T(8,128)(2,1)}', space=vmem, size = 0x800, scoped, tag = 'scratch operand']
  %s0 = inlined_call_operand.hbm [shape: f32[2,8,32], index: 0, kind: input, shape index: {}]
  %s1 = inlined_call_operand.hbm [shape: bf16[32,96], index: 1, kind: input, shape index: {}]
  %s2 = inlined_call_operand.hbm [shape: f32[1,96], index: 2, kind: input, shape index: {}]
  %s3 = inlined_call_operand.hbm [shape: bf16[32,32], index: 3, kind: input, shape index: {}]
  %s4 = inlined_call_operand.hbm [shape: f32[1,32], index: 4, kind: input, shape index: {}]
  %s5 = inlined_call_operand.hbm [shape: f32[1,32], index: 5, kind: input, shape index: {}]
  %s6 = inlined_call_operand.hbm [shape: f32[1,32], index: 6, kind: input, shape index: {}]
  %s7 = inlined_call_operand.hbm [shape: f32[1,32], index: 7, kind: input, shape index: {}]
  %s8 = inlined_call_operand.hbm [shape: f32[1,32], index: 8, kind: input, shape index: {}]
  %s9 = inlined_call_operand.hbm [shape: bf16[64,416], index: 9, kind: input, shape index: {}]
  %s10 = inlined_call_operand.hbm [shape: f32[1,416], index: 10, kind: input, shape index: {}]
  %s11 = inlined_call_operand.hbm [shape: bf16[128,288], index: 11, kind: input, shape index: {}]
  %s12 = inlined_call_operand.hbm [shape: bf16[256,32], index: 12, kind: input, shape index: {}]
  %s13 = inlined_call_operand.hbm [shape: f32[2,8,32], index: 13, kind: output, shape index: {}]
  %s14 = sld [smem:[#allocation0]]
  $region137: #{tpu_custom_call.1} parent=0
    _
  %s16 = ssub.s32 1, %s14
  %s17 = scalar_select 0, %s16, %s14
  $region1: #{tpu_custom_call.1} parent=0
    #allocation4 [shape = 'u8[8192]{0}', space=vmem, size = 0x2000, scoped, tag = 'input window, operand 0']
    #allocation5 [shape = 's32[2]{0}', space=sflag, size = 0x8, scoped, tag = 'scoped memory for tpu_custom_call.1']
    #allocation6 [shape = 's32[2]{0}', space=sflag, size = 0x8, scoped, tag = 'scoped memory for tpu_custom_call.1']
    #allocation7 [shape = 'u8[8192]{0}', space=vmem, size = 0x2000, scoped, tag = 'input window, operand 1, single buffered']
    #allocation8 [shape = 's32[1]{0}', space=sflag, size = 0x4, scoped, tag = 'scoped memory for tpu_custom_call.1']
    #allocation9 [shape = 'u8[512]{0}', space=vmem, size = 0x400, scoped, tag = 'input window, operand 2, single buffered']
    #allocation10 [shape = 'u8[8192]{0}', space=vmem, size = 0x2000, scoped, tag = 'input window, operand 3, single buffered']
    #allocation11 [shape = 's32[1]{0}', space=sflag, size = 0x4, scoped, tag = 'scoped memory for tpu_custom_call.1']
    #allocation12 [shape = 'u8[512]{0}', space=vmem, size = 0x400, scoped, tag = 'input window, operand 4, single buffered']
    #allocation13 [shape = 'u8[512]{0}', space=vmem, size = 0x400, scoped, tag = 'input window, operand 5, single buffered']
    #allocation14 [shape = 's32[1]{0}', space=sflag, size = 0x4, scoped, tag = 'scoped memory for tpu_custom_call.1']
    #allocation15 [shape = 'u8[512]{0}', space=vmem, size = 0x400, scoped, tag = 'input window, operand 6, single buffered']
    #allocation16 [shape = 'u8[512]{0}', space=vmem, size = 0x400, scoped, tag = 'input window, operand 7, single buffered']
    #allocation17 [shape = 's32[1]{0}', space=sflag, size = 0x4, scoped, tag = 'scoped memory for tpu_custom_call.1']
    #allocation18 [shape = 'u8[512]{0}', space=vmem, size = 0x400, scoped, tag = 'input window, operand 8, single buffered']
    #allocation19 [shape = 'u8[65536]{0}', space=vmem, size = 0x10000, scoped, tag = 'input window, operand 9, single buffered']
    #allocation20 [shape = 's32[1]{0}', space=sflag, size = 0x4, scoped, tag = 'scoped memory for tpu_custom_call.1']
    #allocation21 [shape = 'u8[2048]{0}', space=vmem, size = 0x800, scoped, tag = 'input window, operand 10, single buffered']
    #allocation22 [shape = 'u8[98304]{0}', space=vmem, size = 0x18000, scoped, tag = 'input window, operand 11, single buffered']
    #allocation23 [shape = 's32[1]{0}', space=sflag, size = 0x4, scoped, tag = 'scoped memory for tpu_custom_call.1']
    #allocation24 [shape = 'u8[65536]{0}', space=vmem, size = 0x10000, scoped, tag = 'input window, operand 12, single buffered']
    #allocation25 [shape = 'u8[8192]{0}', space=vmem, size = 0x2000, scoped, tag = 'output window, operand 0']
    %18 = vsyncpa [#allocation5], 0
    %s19 = scalar_lea.sflag [#allocation5], 1
    %20 = vsyncpa %s19, 0
    %21 = vsyncpa [#allocation8], 0
    %22 = vsyncpa [#allocation11], 0
    %23 = vsyncpa [#allocation14], 0
    %24 = vsyncpa [#allocation17], 0
    %25 = vsyncpa [#allocation20], 0
    %26 = vsyncpa [#allocation23], 0
    %27 = vsyncpa [#allocation6], 0
    %s28 = scalar_lea.sflag [#allocation6], 1
    %29 = vsyncpa %s28, 0
    loop: start=0, step=1, limit=4
    $region2: #{tpu_custom_call.1} parent=1 // loop_pre_header
      _
    $region3: #{tpu_custom_call.1} parent=1 // loop_header
      %s31 = sphi 0, %s35
      %p32 = scmp.ge.s32.totalorder %s31, 4
      %s41 = sphi 0, %s43
      %s44 = sphi 0, %s41
      %s45 = sphi 0, %s44
      %s61 = sphi 0, %s45
      %s65 = sphi 0, %s65
      %s67 = sphi 0, %s65
      %s68 = sphi 0, %s67
      %s82 = sphi 0, %s68
      %s86 = sphi 0, %s86
      %s88 = sphi 0, %s86
      %s89 = sphi 0, %s88
      %s103 = sphi 0, %s89
      %s107 = sphi 0, %s107
      %s109 = sphi 0, %s107
      %s110 = sphi 0, %s109
      %s124 = sphi 0, %s110
      %s128 = sphi 0, %s128
      %s130 = sphi 0, %s128
      %s131 = sphi 0, %s130
      %s145 = sphi 0, %s131
      %s149 = sphi 0, %s149
      %s151 = sphi 0, %s149
      %s152 = sphi 0, %s151
      %s166 = sphi 0, %s152
      %s170 = sphi 0, %s170
      %s172 = sphi 0, %s170
      %s173 = sphi 0, %s172
      %s187 = sphi 0, %s173
      %s191 = sphi 0, %s191
      %s193 = sphi 0, %s191
      %s194 = sphi 0, %s193
      %s208 = sphi 0, %s194
      %s212 = sphi 0, %s212
      %s214 = sphi 0, %s212
      %s215 = sphi 0, %s214
      %s229 = sphi 0, %s215
      %s233 = sphi 0, %s233
      %s235 = sphi 0, %s233
      %s236 = sphi 0, %s235
      %s250 = sphi 0, %s236
      %s254 = sphi 0, %s254
      %s256 = sphi 0, %s254
      %s257 = sphi 0, %s256
      %s271 = sphi 0, %s257
      %s275 = sphi 0, %s275
      %s277 = sphi 0, %s275
      %s278 = sphi 0, %s277
      %s292 = sphi 0, %s278
      %s296 = sphi 0, %s296
      %s298 = sphi 0, %s296
      %s299 = sphi 0, %s298
      %s313 = sphi 0, %s299
      %s319 = sphi 0, %s321
      %s322 = sphi 0, %s319
      %s323 = sphi 0, %s322
      %s339 = sphi 0, %s323
    $region4: #{tpu_custom_call.1} parent=1 // loop_header_branch
      %34 = sbr.rel (%p32) target = $region8
    $region5: #{tpu_custom_call.1} parent=1 // loop_body
      %s36 = ssub.s32 %s31, 1
      %s37 = ssub.s32 %s31, 2
      %s38 = sadd.s32 %s31, 1
      %s39 = ssub.s32 %s31, %s38
      %p40 = scmp.eq.s32.totalorder %s39, 0
      %s42 = sadd.s32 %s41, 1
      %s43 = scalar_select %p40, %s41, %s42
      %p46 = pneg %p40
      %p47 = scmp.eq.s32.totalorder %s31, 1
      %p48 = por %p46, %p47
      %p49 = scmp.ne.s32.totalorder %s41, %s44
      %p50 = scmp.eq.s32.totalorder %s31, 0
      %p51 = por %p49, %p50
      %p52 = scmp.ne.s32.totalorder %s41, %s44
      %p53 = scmp.eq.s32.totalorder %s36, 1
      %p54 = por %p52, %p53
      %p55 = scmp.ne.s32.totalorder %s44, %s45
      %p56 = scmp.eq.s32.totalorder %s36, 0
      %p57 = por %p55, %p56
      %p58 = scmp.ne.s32.totalorder %s44, %s45
      %p59 = scmp.eq.s32.totalorder %s37, 1
      %p60 = por %p58, %p59
      %p62 = scmp.ne.s32.totalorder %s45, %s61
      %p63 = scmp.eq.s32.totalorder %s37, 0
      %p64 = por %p62, %p63
      %s66 = sadd.s32 %s65, 1
      %p69 = scmp.eq.s32.totalorder %s31, 1
      %p70 = scmp.ne.s32.totalorder %s65, %s67
      %p71 = scmp.eq.s32.totalorder %s31, 0
      %p72 = por %p70, %p71
      %p73 = scmp.ne.s32.totalorder %s65, %s67
      %p74 = scmp.eq.s32.totalorder %s36, 1
      %p75 = por %p73, %p74
      %p76 = scmp.ne.s32.totalorder %s67, %s68
      %p77 = scmp.eq.s32.totalorder %s36, 0
      %p78 = por %p76, %p77
      %p79 = scmp.ne.s32.totalorder %s67, %s68
      %p80 = scmp.eq.s32.totalorder %s37, 1
      %p81 = por %p79, %p80
      %p83 = scmp.ne.s32.totalorder %s68, %s82
      %p84 = scmp.eq.s32.totalorder %s37, 0
      %p85 = por %p83, %p84
      %s87 = sadd.s32 %s86, 1
      %p90 = scmp.eq.s32.totalorder %s31, 1
      %p91 = scmp.ne.s32.totalorder %s86, %s88
      %p92 = scmp.eq.s32.totalorder %s31, 0
      %p93 = por %p91, %p92
      %p94 = scmp.ne.s32.totalorder %s86, %s88
      %p95 = scmp.eq.s32.totalorder %s36, 1
      %p96 = por %p94, %p95
      %p97 = scmp.ne.s32.totalorder %s88, %s89
      %p98 = scmp.eq.s32.totalorder %s36, 0
      %p99 = por %p97, %p98
      %p100 = scmp.ne.s32.totalorder %s88, %s89
      %p101 = scmp.eq.s32.totalorder %s37, 1
      %p102 = por %p100, %p101
      %p104 = scmp.ne.s32.totalorder %s89, %s103
      %p105 = scmp.eq.s32.totalorder %s37, 0
      %p106 = por %p104, %p105
      %s108 = sadd.s32 %s107, 1
      %p111 = scmp.eq.s32.totalorder %s31, 1
      %p112 = scmp.ne.s32.totalorder %s107, %s109
      %p113 = scmp.eq.s32.totalorder %s31, 0
      %p114 = por %p112, %p113
      %p115 = scmp.ne.s32.totalorder %s107, %s109
      %p116 = scmp.eq.s32.totalorder %s36, 1
      %p117 = por %p115, %p116
      %p118 = scmp.ne.s32.totalorder %s109, %s110
      %p119 = scmp.eq.s32.totalorder %s36, 0
      %p120 = por %p118, %p119
      %p121 = scmp.ne.s32.totalorder %s109, %s110
      %p122 = scmp.eq.s32.totalorder %s37, 1
      %p123 = por %p121, %p122
      %p125 = scmp.ne.s32.totalorder %s110, %s124
      %p126 = scmp.eq.s32.totalorder %s37, 0
      %p127 = por %p125, %p126
      %s129 = sadd.s32 %s128, 1
      %p132 = scmp.eq.s32.totalorder %s31, 1
      %p133 = scmp.ne.s32.totalorder %s128, %s130
      %p134 = scmp.eq.s32.totalorder %s31, 0
      %p135 = por %p133, %p134
      %p136 = scmp.ne.s32.totalorder %s128, %s130
      %p137 = scmp.eq.s32.totalorder %s36, 1
      %p138 = por %p136, %p137
      %p139 = scmp.ne.s32.totalorder %s130, %s131
      %p140 = scmp.eq.s32.totalorder %s36, 0
      %p141 = por %p139, %p140
      %p142 = scmp.ne.s32.totalorder %s130, %s131
      %p143 = scmp.eq.s32.totalorder %s37, 1
      %p144 = por %p142, %p143
      %p146 = scmp.ne.s32.totalorder %s131, %s145
      %p147 = scmp.eq.s32.totalorder %s37, 0
      %p148 = por %p146, %p147
      %s150 = sadd.s32 %s149, 1
      %p153 = scmp.eq.s32.totalorder %s31, 1
      %p154 = scmp.ne.s32.totalorder %s149, %s151
      %p155 = scmp.eq.s32.totalorder %s31, 0
      %p156 = por %p154, %p155
      %p157 = scmp.ne.s32.totalorder %s149, %s151
      %p158 = scmp.eq.s32.totalorder %s36, 1
      %p159 = por %p157, %p158
      %p160 = scmp.ne.s32.totalorder %s151, %s152
      %p161 = scmp.eq.s32.totalorder %s36, 0
      %p162 = por %p160, %p161
      %p163 = scmp.ne.s32.totalorder %s151, %s152
      %p164 = scmp.eq.s32.totalorder %s37, 1
      %p165 = por %p163, %p164
      %p167 = scmp.ne.s32.totalorder %s152, %s166
      %p168 = scmp.eq.s32.totalorder %s37, 0
      %p169 = por %p167, %p168
      %s171 = sadd.s32 %s170, 1
      %p174 = scmp.eq.s32.totalorder %s31, 1
      %p175 = scmp.ne.s32.totalorder %s170, %s172
      %p176 = scmp.eq.s32.totalorder %s31, 0
      %p177 = por %p175, %p176
      %p178 = scmp.ne.s32.totalorder %s170, %s172
      %p179 = scmp.eq.s32.totalorder %s36, 1
      %p180 = por %p178, %p179
      %p181 = scmp.ne.s32.totalorder %s172, %s173
      %p182 = scmp.eq.s32.totalorder %s36, 0
      %p183 = por %p181, %p182
      %p184 = scmp.ne.s32.totalorder %s172, %s173
      %p185 = scmp.eq.s32.totalorder %s37, 1
      %p186 = por %p184, %p185
      %p188 = scmp.ne.s32.totalorder %s173, %s187
      %p189 = scmp.eq.s32.totalorder %s37, 0
      %p190 = por %p188, %p189
      %s192 = sadd.s32 %s191, 1
      %p195 = scmp.eq.s32.totalorder %s31, 1
      %p196 = scmp.ne.s32.totalorder %s191, %s193
      %p197 = scmp.eq.s32.totalorder %s31, 0
      %p198 = por %p196, %p197
      %p199 = scmp.ne.s32.totalorder %s191, %s193
      %p200 = scmp.eq.s32.totalorder %s36, 1
      %p201 = por %p199, %p200
      %p202 = scmp.ne.s32.totalorder %s193, %s194
      %p203 = scmp.eq.s32.totalorder %s36, 0
      %p204 = por %p202, %p203
      %p205 = scmp.ne.s32.totalorder %s193, %s194
      %p206 = scmp.eq.s32.totalorder %s37, 1
      %p207 = por %p205, %p206
      %p209 = scmp.ne.s32.totalorder %s194, %s208
      %p210 = scmp.eq.s32.totalorder %s37, 0
      %p211 = por %p209, %p210
      %s213 = sadd.s32 %s212, 1
      %p216 = scmp.eq.s32.totalorder %s31, 1
      %p217 = scmp.ne.s32.totalorder %s212, %s214
      %p218 = scmp.eq.s32.totalorder %s31, 0
      %p219 = por %p217, %p218
      %p220 = scmp.ne.s32.totalorder %s212, %s214
      %p221 = scmp.eq.s32.totalorder %s36, 1
      %p222 = por %p220, %p221
      %p223 = scmp.ne.s32.totalorder %s214, %s215
      %p224 = scmp.eq.s32.totalorder %s36, 0
      %p225 = por %p223, %p224
      %p226 = scmp.ne.s32.totalorder %s214, %s215
      %p227 = scmp.eq.s32.totalorder %s37, 1
      %p228 = por %p226, %p227
      %p230 = scmp.ne.s32.totalorder %s215, %s229
      %p231 = scmp.eq.s32.totalorder %s37, 0
      %p232 = por %p230, %p231
      %s234 = sadd.s32 %s233, 1
      %p237 = scmp.eq.s32.totalorder %s31, 1
      %p238 = scmp.ne.s32.totalorder %s233, %s235
      %p239 = scmp.eq.s32.totalorder %s31, 0
      %p240 = por %p238, %p239
      %p241 = scmp.ne.s32.totalorder %s233, %s235
      %p242 = scmp.eq.s32.totalorder %s36, 1
      %p243 = por %p241, %p242
      %p244 = scmp.ne.s32.totalorder %s235, %s236
      %p245 = scmp.eq.s32.totalorder %s36, 0
      %p246 = por %p244, %p245
      %p247 = scmp.ne.s32.totalorder %s235, %s236
      %p248 = scmp.eq.s32.totalorder %s37, 1
      %p249 = por %p247, %p248
      %p251 = scmp.ne.s32.totalorder %s236, %s250
      %p252 = scmp.eq.s32.totalorder %s37, 0
      %p253 = por %p251, %p252
      %s255 = sadd.s32 %s254, 1
      %p258 = scmp.eq.s32.totalorder %s31, 1
      %p259 = scmp.ne.s32.totalorder %s254, %s256
      %p260 = scmp.eq.s32.totalorder %s31, 0
      %p261 = por %p259, %p260
      %p262 = scmp.ne.s32.totalorder %s254, %s256
      %p263 = scmp.eq.s32.totalorder %s36, 1
      %p264 = por %p262, %p263
      %p265 = scmp.ne.s32.totalorder %s256, %s257
      %p266 = scmp.eq.s32.totalorder %s36, 0
      %p267 = por %p265, %p266
      %p268 = scmp.ne.s32.totalorder %s256, %s257
      %p269 = scmp.eq.s32.totalorder %s37, 1
      %p270 = por %p268, %p269
      %p272 = scmp.ne.s32.totalorder %s257, %s271
      %p273 = scmp.eq.s32.totalorder %s37, 0
      %p274 = por %p272, %p273
      %s276 = sadd.s32 %s275, 1
      %p279 = scmp.eq.s32.totalorder %s31, 1
      %p280 = scmp.ne.s32.totalorder %s275, %s277
      %p281 = scmp.eq.s32.totalorder %s31, 0
      %p282 = por %p280, %p281
      %p283 = scmp.ne.s32.totalorder %s275, %s277
      %p284 = scmp.eq.s32.totalorder %s36, 1
      %p285 = por %p283, %p284
      %p286 = scmp.ne.s32.totalorder %s277, %s278
      %p287 = scmp.eq.s32.totalorder %s36, 0
      %p288 = por %p286, %p287
      %p289 = scmp.ne.s32.totalorder %s277, %s278
      %p290 = scmp.eq.s32.totalorder %s37, 1
      %p291 = por %p289, %p290
      %p293 = scmp.ne.s32.totalorder %s278, %s292
      %p294 = scmp.eq.s32.totalorder %s37, 0
      %p295 = por %p293, %p294
      %s297 = sadd.s32 %s296, 1
      %p300 = scmp.eq.s32.totalorder %s31, 1
      %p301 = scmp.ne.s32.totalorder %s296, %s298
      %p302 = scmp.eq.s32.totalorder %s31, 0
      %p303 = por %p301, %p302
      %p304 = scmp.ne.s32.totalorder %s296, %s298
      %p305 = scmp.eq.s32.totalorder %s36, 1
      %p306 = por %p304, %p305
      %p307 = scmp.ne.s32.totalorder %s298, %s299
      %p308 = scmp.eq.s32.totalorder %s36, 0
      %p309 = por %p307, %p308
      %p310 = scmp.ne.s32.totalorder %s298, %s299
      %p311 = scmp.eq.s32.totalorder %s37, 1
      %p312 = por %p310, %p311
      %p314 = scmp.ne.s32.totalorder %s299, %s313
      %p315 = scmp.eq.s32.totalorder %s37, 0
      %p316 = por %p314, %p315
      %s317 = ssub.s32 %s31, %s38
      %p318 = scmp.eq.s32.totalorder %s317, 0
      %s320 = sadd.s32 %s319, 1
      %s321 = scalar_select %p318, %s319, %s320
      %p324 = pneg %p318
      %p325 = scmp.eq.s32.totalorder %s31, 1
      %p326 = por %p324, %p325
      %p327 = scmp.ne.s32.totalorder %s319, %s322
      %p328 = scmp.eq.s32.totalorder %s31, 0
      %p329 = por %p327, %p328
      %p330 = scmp.ne.s32.totalorder %s319, %s322
      %p331 = scmp.eq.s32.totalorder %s36, 1
      %p332 = por %p330, %p331
      %p333 = scmp.ne.s32.totalorder %s322, %s323
      %p334 = scmp.eq.s32.totalorder %s36, 0
      %p335 = por %p333, %p334
      %p336 = scmp.ne.s32.totalorder %s322, %s323
      %p337 = scmp.eq.s32.totalorder %s37, 1
      %p338 = por %p336, %p337
      %p340 = scmp.ne.s32.totalorder %s323, %s339
      %p341 = scmp.eq.s32.totalorder %s37, 0
      %p342 = por %p340, %p341
      %p343 = scmp.le.s32.totalorder 1, %s31
      %p344 = scmp.lt.s32.totalorder %s31, 3
      %p345 = pnand %p343, %p344
      %p346 = pneg %p345
      // Predicated region
      $region9: #{tpu_custom_call.1} parent=5 // pred_check
        _
      $region10: #{tpu_custom_call.1} parent=5 // pred_check_branch
        %348 = sbr.rel (%p345) target = $region12
      $region11: #{tpu_custom_call.1} parent=5 // pred_region
        %s349 = ssub.s32 %s31, 1
        // Predicated region
        $region13: #{tpu_custom_call.1} parent=11 // pred_check
          %p350 = pneg %p78
        $region14: #{tpu_custom_call.1} parent=11 // pred_check_branch
          %352 = sbr.rel (%p350) target = $region16
        $region15: #{tpu_custom_call.1} parent=11 // pred_region
          %s354 = ssub.s32 256, 256
          %355 = vsyncadd [#allocation8], %s354
          %s356 = sshll.u32 [#allocation7], 4
          %s357 = int_to_ptr.vmem [resolvable:$true] %s356
          %362 = dma.hbm_to_vmem [thread:$0]  %s1, 256, %s357, [#allocation8], 64, 64, 4
        $region16: #{tpu_custom_call.1} parent=11 // pred_fallthru
          _
        // Predicated region
        $region17: #{tpu_custom_call.1} parent=11 // pred_check
          %p363 = pneg %p99
        $region18: #{tpu_custom_call.1} parent=11 // pred_check_branch
          %365 = sbr.rel (%p363) target = $region20
        $region19: #{tpu_custom_call.1} parent=11 // pred_region
          %s367 = ssub.s32 16, 16
          %368 = vsyncadd [#allocation8], %s367
          %s370 = sshll.u32 [#allocation9], 4
          %s371 = int_to_ptr.vmem [resolvable:$true] %s370
          %373 = dma.hbm_to_vmem [thread:$0]  %s2, 16, %s371, [#allocation8]
        $region20: #{tpu_custom_call.1} parent=11 // pred_fallthru
          _
        // Predicated region
        $region21: #{tpu_custom_call.1} parent=11 // pred_check
          %p374 = pneg %p120
        $region22: #{tpu_custom_call.1} parent=11 // pred_check_branch
          %376 = sbr.rel (%p374) target = $region24
        $region23: #{tpu_custom_call.1} parent=11 // pred_region
          %s378 = ssub.s32 256, 256
          %379 = vsyncadd [#allocation11], %s378
          %s380 = sshll.u32 [#allocation10], 4
          %s381 = int_to_ptr.vmem [resolvable:$true] %s380
          %386 = dma.hbm_to_vmem [thread:$0]  %s3, 256, %s381, [#allocation11], 64, 64, 4
        $region24: #{tpu_custom_call.1} parent=11 // pred_fallthru
          _
        // Predicated region
        $region25: #{tpu_custom_call.1} parent=11 // pred_check
          %p387 = pneg %p141
        $region26: #{tpu_custom_call.1} parent=11 // pred_check_branch
          %389 = sbr.rel (%p387) target = $region28
        $region27: #{tpu_custom_call.1} parent=11 // pred_region
          %s391 = ssub.s32 16, 16
          %392 = vsyncadd [#allocation11], %s391
          %s394 = sshll.u32 [#allocation12], 4
          %s395 = int_to_ptr.vmem [resolvable:$true] %s394
          %397 = dma.hbm_to_vmem [thread:$0]  %s4, 16, %s395, [#allocation11]
        $region28: #{tpu_custom_call.1} parent=11 // pred_fallthru
          _
        // Predicated region
        $region29: #{tpu_custom_call.1} parent=11 // pred_check
          %p398 = pneg %p162
        $region30: #{tpu_custom_call.1} parent=11 // pred_check_branch
          %400 = sbr.rel (%p398) target = $region32
        $region31: #{tpu_custom_call.1} parent=11 // pred_region
          %s402 = ssub.s32 16, 16
          %403 = vsyncadd [#allocation14], %s402
          %s405 = sshll.u32 [#allocation13], 4
          %s406 = int_to_ptr.vmem [resolvable:$true] %s405
          %408 = dma.hbm_to_vmem [thread:$0]  %s5, 16, %s406, [#allocation14]
        $region32: #{tpu_custom_call.1} parent=11 // pred_fallthru
          _
        // Predicated region
        $region33: #{tpu_custom_call.1} parent=11 // pred_check
          %p409 = pneg %p183
        $region34: #{tpu_custom_call.1} parent=11 // pred_check_branch
          %411 = sbr.rel (%p409) target = $region36
        $region35: #{tpu_custom_call.1} parent=11 // pred_region
          %s413 = ssub.s32 16, 16
          %414 = vsyncadd [#allocation14], %s413
          %s416 = sshll.u32 [#allocation15], 4
          %s417 = int_to_ptr.vmem [resolvable:$true] %s416
          %419 = dma.hbm_to_vmem [thread:$0]  %s6, 16, %s417, [#allocation14]
        $region36: #{tpu_custom_call.1} parent=11 // pred_fallthru
          _
        // Predicated region
        $region37: #{tpu_custom_call.1} parent=11 // pred_check
          %p420 = pneg %p204
        $region38: #{tpu_custom_call.1} parent=11 // pred_check_branch
          %422 = sbr.rel (%p420) target = $region40
        $region39: #{tpu_custom_call.1} parent=11 // pred_region
          %s424 = ssub.s32 16, 16
          %425 = vsyncadd [#allocation17], %s424
          %s427 = sshll.u32 [#allocation16], 4
          %s428 = int_to_ptr.vmem [resolvable:$true] %s427
          %430 = dma.hbm_to_vmem [thread:$0]  %s7, 16, %s428, [#allocation17]
        $region40: #{tpu_custom_call.1} parent=11 // pred_fallthru
          _
        // Predicated region
        $region41: #{tpu_custom_call.1} parent=11 // pred_check
          %p431 = pneg %p225
        $region42: #{tpu_custom_call.1} parent=11 // pred_check_branch
          %433 = sbr.rel (%p431) target = $region44
        $region43: #{tpu_custom_call.1} parent=11 // pred_region
          %s435 = ssub.s32 16, 16
          %436 = vsyncadd [#allocation17], %s435
          %s438 = sshll.u32 [#allocation18], 4
          %s439 = int_to_ptr.vmem [resolvable:$true] %s438
          %441 = dma.hbm_to_vmem [thread:$0]  %s8, 16, %s439, [#allocation17]
        $region44: #{tpu_custom_call.1} parent=11 // pred_fallthru
          _
        // Predicated region
        $region45: #{tpu_custom_call.1} parent=11 // pred_check
          %p442 = pneg %p246
        $region46: #{tpu_custom_call.1} parent=11 // pred_check_branch
          %444 = sbr.rel (%p442) target = $region48
        $region47: #{tpu_custom_call.1} parent=11 // pred_region
          %s446 = ssub.s32 2048, 2048
          %447 = vsyncadd [#allocation20], %s446
          %s448 = sshll.u32 [#allocation19], 4
          %s449 = int_to_ptr.vmem [resolvable:$true] %s448
          %454 = dma.hbm_to_vmem [thread:$0]  %s9, 2048, %s449, [#allocation20], 256, 256, 16
        $region48: #{tpu_custom_call.1} parent=11 // pred_fallthru
          _
        // Predicated region
        $region49: #{tpu_custom_call.1} parent=11 // pred_check
          %p455 = pneg %p267
        $region50: #{tpu_custom_call.1} parent=11 // pred_check_branch
          %457 = sbr.rel (%p455) target = $region52
        $region51: #{tpu_custom_call.1} parent=11 // pred_region
          %s459 = ssub.s32 64, 64
          %460 = vsyncadd [#allocation20], %s459
          %s462 = sshll.u32 [#allocation21], 4
          %s463 = int_to_ptr.vmem [resolvable:$true] %s462
          %465 = dma.hbm_to_vmem [thread:$0]  %s10, 64, %s463, [#allocation20]
        $region52: #{tpu_custom_call.1} parent=11 // pred_fallthru
          _
        // Predicated region
        $region53: #{tpu_custom_call.1} parent=11 // pred_check
          %p466 = pneg %p288
        $region54: #{tpu_custom_call.1} parent=11 // pred_check_branch
          %468 = sbr.rel (%p466) target = $region56
        $region55: #{tpu_custom_call.1} parent=11 // pred_region
          %s470 = ssub.s32 3072, 3072
          %471 = vsyncadd [#allocation23], %s470
          %s472 = sshll.u32 [#allocation22], 4
          %s473 = int_to_ptr.vmem [resolvable:$true] %s472
          %478 = dma.hbm_to_vmem [thread:$0]  %s11, 3072, %s473, [#allocation23], 192, 192, 12
        $region56: #{tpu_custom_call.1} parent=11 // pred_fallthru
          _
        // Predicated region
        $region57: #{tpu_custom_call.1} parent=11 // pred_check
          %p479 = pneg %p309
        $region58: #{tpu_custom_call.1} parent=11 // pred_check_branch
          %481 = sbr.rel (%p479) target = $region60
        $region59: #{tpu_custom_call.1} parent=11 // pred_region
          %s483 = ssub.s32 2048, 2048
          %484 = vsyncadd [#allocation23], %s483
          %s485 = sshll.u32 [#allocation24], 4
          %s486 = int_to_ptr.vmem [resolvable:$true] %s485
          %491 = dma.hbm_to_vmem [thread:$0]  %s12, 2048, %s486, [#allocation23], 64, 64, 4
        $region60: #{tpu_custom_call.1} parent=11 // pred_fallthru
          _
      $region12: #{tpu_custom_call.1} parent=5 // pred_fallthru
        _
      %p492 = scmp.lt.s32.totalorder %s31, 2
      // Predicated region
      $region61: #{tpu_custom_call.1} parent=5 // pred_check
        %p493 = pneg %p492
      $region62: #{tpu_custom_call.1} parent=5 // pred_check_branch
        %495 = sbr.rel (%p493) target = $region64
      $region63: #{tpu_custom_call.1} parent=5 // pred_region
        // Predicated region
        $region65: #{tpu_custom_call.1} parent=63 // pred_check
          %p496 = pneg %p51
        $region66: #{tpu_custom_call.1} parent=63 // pred_check_branch
          %498 = sbr.rel (%p496) target = $region68
        $region67: #{tpu_custom_call.1} parent=63 // pred_region
          %s499 = sand.u32 %s41, 1
          %s500 = scalar_lea.sflag [#allocation5], %s499
          %s501 = sand.u32 %s41, 1
          %s502 = smul.addr %s501, 8
          %s503 = scalar_lea.vmem [#allocation4], %s502
          %s505 = ssub.s32 128, 128
          %506 = vsyncadd %s500, %s505
          %s507 = smul.addr %s31, 128
          %s508 = scalar_lea.hbm %s0, %s507
          %s510 = sshll.u32 %s503, 4
          %s511 = int_to_ptr.vmem [resolvable:$true] %s510
          %513 = dma.hbm_to_vmem [thread:$0]  %s508, 128, %s511, %s500
        $region68: #{tpu_custom_call.1} parent=63 // pred_fallthru
          _
      $region64: #{tpu_custom_call.1} parent=5 // pred_fallthru
        _
      %p514 = scmp.le.s32.totalorder 1, %s31
      %p515 = scmp.lt.s32.totalorder %s31, 3
      %p516 = pnand %p514, %p515
      %p517 = pneg %p516
      // Predicated region
      $region69: #{tpu_custom_call.1} parent=5 // pred_check
        _
      $region70: #{tpu_custom_call.1} parent=5 // pred_check_branch
        %519 = sbr.rel (%p516) target = $region72
      $region71: #{tpu_custom_call.1} parent=5 // pred_region
        %s520 = ssub.s32 %s31, 1
        %s521 = sand.u32 %s44, 1
        %s522 = scalar_lea.sflag [#allocation5], %s521
        %s523 = sand.u32 %s44, 1
        %s524 = smul.addr %s523, 8
        %s525 = scalar_lea.vmem [#allocation4], %s524
        // Predicated region
        $region73: #{tpu_custom_call.1} parent=71 // pred_check
          %p526 = pneg %p57
        $region74: #{tpu_custom_call.1} parent=71 // pred_check_branch
          %528 = sbr.rel (%p526) target = $region76
        $region75: #{tpu_custom_call.1} parent=71 // pred_region
          %529 = dma.done %s522, 128
        $region76: #{tpu_custom_call.1} parent=71 // pred_fallthru
          _
        // Predicated region
        $region77: #{tpu_custom_call.1} parent=71 // pred_check
          %p530 = pneg %p78
        $region78: #{tpu_custom_call.1} parent=71 // pred_check_branch
          %532 = sbr.rel (%p530) target = $region80
        $region79: #{tpu_custom_call.1} parent=71 // pred_region
          %533 = dma.done [#allocation8], 256
        $region80: #{tpu_custom_call.1} parent=71 // pred_fallthru
          _
        // Predicated region
        $region81: #{tpu_custom_call.1} parent=71 // pred_check
          %p534 = pneg %p99
        $region82: #{tpu_custom_call.1} parent=71 // pred_check_branch
          %536 = sbr.rel (%p534) target = $region84
        $region83: #{tpu_custom_call.1} parent=71 // pred_region
          %537 = dma.done [#allocation8], 16
        $region84: #{tpu_custom_call.1} parent=71 // pred_fallthru
          _
        // Predicated region
        $region85: #{tpu_custom_call.1} parent=71 // pred_check
          %p538 = pneg %p120
        $region86: #{tpu_custom_call.1} parent=71 // pred_check_branch
          %540 = sbr.rel (%p538) target = $region88
        $region87: #{tpu_custom_call.1} parent=71 // pred_region
          %541 = dma.done [#allocation11], 256
        $region88: #{tpu_custom_call.1} parent=71 // pred_fallthru
          _
        // Predicated region
        $region89: #{tpu_custom_call.1} parent=71 // pred_check
          %p542 = pneg %p141
        $region90: #{tpu_custom_call.1} parent=71 // pred_check_branch
          %544 = sbr.rel (%p542) target = $region92
        $region91: #{tpu_custom_call.1} parent=71 // pred_region
          %545 = dma.done [#allocation11], 16
        $region92: #{tpu_custom_call.1} parent=71 // pred_fallthru
          _
        // Predicated region
        $region93: #{tpu_custom_call.1} parent=71 // pred_check
          %p546 = pneg %p162
        $region94: #{tpu_custom_call.1} parent=71 // pred_check_branch
          %548 = sbr.rel (%p546) target = $region96
        $region95: #{tpu_custom_call.1} parent=71 // pred_region
          %549 = dma.done [#allocation14], 16
        $region96: #{tpu_custom_call.1} parent=71 // pred_fallthru
          _
        // Predicated region
        $region97: #{tpu_custom_call.1} parent=71 // pred_check
          %p550 = pneg %p183
        $region98: #{tpu_custom_call.1} parent=71 // pred_check_branch
          %552 = sbr.rel (%p550) target = $region100
        $region99: #{tpu_custom_call.1} parent=71 // pred_region
          %553 = dma.done [#allocation14], 16
        $region100: #{tpu_custom_call.1} parent=71 // pred_fallthru
          _
        // Predicated region
        $region101: #{tpu_custom_call.1} parent=71 // pred_check
          %p554 = pneg %p204
        $region102: #{tpu_custom_call.1} parent=71 // pred_check_branch
          %556 = sbr.rel (%p554) target = $region104
        $region103: #{tpu_custom_call.1} parent=71 // pred_region
          %557 = dma.done [#allocation17], 16
        $region104: #{tpu_custom_call.1} parent=71 // pred_fallthru
          _
        // Predicated region
        $region105: #{tpu_custom_call.1} parent=71 // pred_check
          %p558 = pneg %p225
        $region106: #{tpu_custom_call.1} parent=71 // pred_check_branch
          %560 = sbr.rel (%p558) target = $region108
        $region107: #{tpu_custom_call.1} parent=71 // pred_region
          %561 = dma.done [#allocation17], 16
        $region108: #{tpu_custom_call.1} parent=71 // pred_fallthru
          _
        // Predicated region
        $region109: #{tpu_custom_call.1} parent=71 // pred_check
          %p562 = pneg %p246
        $region110: #{tpu_custom_call.1} parent=71 // pred_check_branch
          %564 = sbr.rel (%p562) target = $region112
        $region111: #{tpu_custom_call.1} parent=71 // pred_region
          %565 = dma.done [#allocation20], 2048
        $region112: #{tpu_custom_call.1} parent=71 // pred_fallthru
          _
        // Predicated region
        $region113: #{tpu_custom_call.1} parent=71 // pred_check
          %p566 = pneg %p267
        $region114: #{tpu_custom_call.1} parent=71 // pred_check_branch
          %568 = sbr.rel (%p566) target = $region116
        $region115: #{tpu_custom_call.1} parent=71 // pred_region
          %569 = dma.done [#allocation20], 64
        $region116: #{tpu_custom_call.1} parent=71 // pred_fallthru
          _
        // Predicated region
        $region117: #{tpu_custom_call.1} parent=71 // pred_check
          %p570 = pneg %p288
        $region118: #{tpu_custom_call.1} parent=71 // pred_check_branch
          %572 = sbr.rel (%p570) target = $region120
        $region119: #{tpu_custom_call.1} parent=71 // pred_region
          %573 = dma.done [#allocation23], 3072
        $region120: #{tpu_custom_call.1} parent=71 // pred_fallthru
          _
        // Predicated region
        $region121: #{tpu_custom_call.1} parent=71 // pred_check
          %p574 = pneg %p309
        $region122: #{tpu_custom_call.1} parent=71 // pred_check_branch
          %576 = sbr.rel (%p574) target = $region124
        $region123: #{tpu_custom_call.1} parent=71 // pred_region
          %577 = dma.done [#allocation23], 2048
        $region124: #{tpu_custom_call.1} parent=71 // pred_fallthru
          _
        %s578 = sand.u32 %s44, 1
        %s579 = scalar_lea.sflag [#allocation5], %s578
        %s580 = sand.u32 %s44, 1
        %s581 = smul.addr %s580, 8
        %s582 = scalar_lea.vmem [#allocation4], %s581
        %p583 = pneg %p57
        %p584 = pneg %p54
        %p585 = pneg %p78
        %p586 = pneg %p75
        %p587 = pneg %p99
        %p588 = pneg %p96
        %p589 = pneg %p120
        %p590 = pneg %p117
        %p591 = pneg %p141
        %p592 = pneg %p138
        %p593 = pneg %p162
        %p594 = pneg %p159
        %p595 = pneg %p183
        %p596 = pneg %p180
        %p597 = pneg %p204
        %p598 = pneg %p201
        %p599 = pneg %p225
        %p600 = pneg %p222
        %p601 = pneg %p246
        %p602 = pneg %p243
        %p603 = pneg %p267
        %p604 = pneg %p264
        %p605 = pneg %p288
        %p606 = pneg %p285
        %p607 = pneg %p309
        %p608 = pneg %p306
        %p609 = pneg %p335
        %p610 = pneg %p332
        %s611 = sand.u32 %s322, 1
        %s612 = scalar_lea.sflag [#allocation6], %s611
        %s613 = sand.u32 %s322, 1
        %s614 = smul.addr %s613, 8
        %s615 = scalar_lea.vmem [#allocation25], %s614
        %v617 = vld [vmem:[%s525] sm:$0xff]
        %v618 = vpack.c.bf16 %v617, %v617
        %v619 = vld [vmem:[#allocation7] sm:$0xf]
        %v620 = vld [vmem:[#allocation7 + $0x4] sm:$0xf]
        %v621 = vld [vmem:[#allocation7 + $0x8] sm:$0xf]
        %v622 = vld [vmem:[#allocation7 + $0xc] sm:$0xf]
        %v623 = vld [vmem:[#allocation9] sm:$0x1]
        %v625 = vlaneseq
        %v626 = vshrl.u32 %v625, 7
        %v627 = vsub.s32 0, %v626
        %v628 = vrot.slane %v623, %v627
        %v634 = vunpack.c.l.b16 %v619
        %v635 = vunpack.c.l.b16 %v620
        %v636 = vunpack.c.l.b16 %v621
        %v637 = vunpack.c.l.b16 %v622
        %v638 = vpack.c.b16 %v635, %v634
        %v639 = vpack.c.b16 %v637, %v636
        %vm642 = vcmask 261120
        %v644 = vsel %vm642, %v618, 0
        %646 = vmatprep.subr.bf16.mxu0 0
        %647 = vmatpush1.bf16.msra.mxu0 %v638
        %648 = vmatprep.subr.bf16.mxu0 0
        %649 = vmatpush1.bf16.msra.mxu0 %v639
        %650 = vmatprep.subr.bf16.mxu0 0
        %651 = vmatpush1.bf16.msra.mxu0 0
        %652 = vmatprep.subr.bf16.mxu0 0
        %653 = vmatpush1.bf16.msra.mxu0 0
        %654 = vmatprep.subr.bf16.mxu0 0
        %655 = vmatpush1.bf16.msra.mxu0 0
        %656 = vmatprep.subr.bf16.mxu0 0
        %657 = vmatpush1.bf16.msra.mxu0 0
        %658 = vmatprep.subr.bf16.mxu0 0
        %659 = vmatpush1.bf16.msra.mxu0 0
        %660 = vmatprep.subr.bf16.mxu0 0
        %661 = vmatpush1.bf16.msra.mxu0 0
        %662 = vmatprep.subr.bf16.mxu0 0
        %663 = vmatpush1.bf16.msra.mxu0 0
        %664 = vmatprep.subr.bf16.mxu0 0
        %665 = vmatpush1.bf16.msra.mxu0 0
        %666 = vmatprep.subr.bf16.mxu0 0
        %667 = vmatpush1.bf16.msra.mxu0 0
        %668 = vmatprep.subr.bf16.mxu0 0
        %669 = vmatpush1.bf16.msra.mxu0 0
        %670 = vmatprep.subr.bf16.mxu0 0
        %671 = vmatpush1.bf16.msra.mxu0 0
        %672 = vmatprep.subr.bf16.mxu0 0
        %673 = vmatpush1.bf16.msra.mxu0 0
        %674 = vmatprep.subr.bf16.mxu0 0
        %675 = vmatpush1.bf16.msra.mxu0 0
        %676 = vmatprep.subr.bf16.mxu0 0
        %677 = vmatpush1.bf16.msra.mxu0 0
        %678 = vmatprep.mubr.bf16.mxu0 0
        %679 = vmatmul.mubr.bf16.gmra.mrb[0].mxu0 %v644
        %v680 = vpop.f32.mrb[0].mxu0
        %v681 = vadd.f32 %v628, %v680
        %v682 = vpop.f32.mrb[0].mxu0
        %v683 = vpop.f32.mrb[0].mxu0
        %v684 = vpop.f32.mrb[0].mxu0
        %685 = vdwg.mxu0
        %v686 = vpack.c.bf16 %v681, %v681
        %vm687 = vcmask 781312
        %688 = vst.msk [vmem:[#allocation2] sm:$0xf] %vm687, %v686
        %v689 = vlaneseq
        %v690 = vshrl.u32 %v689, 7
        %v691 = vlaneseq
        %v692 = vand.u32 %v691, 127
        %vm693 = vcmp.gt.s32.totalorder %v692, %v690
        %v694 = vld [vmem:[#allocation2] sm:$0xf]
        %v696 = vunpack.c.l.b16 %v694
        %v697 = vpack.c.b16 %v696, %v696
        %698 = vrot.lane.b32.xlu0 %v697, 96
        %v699 = vpop.permute.xlu0 %698
        %vm700 = vcmask 64512
        %v702 = vsel %vm700, %v694, 0
        %v705 = vsel %vm700, %v699, 0
        %707 = vmatprep.subr.bf16.mxu0 0
        %708 = vmatpush1.bf16.xpose.msra.mxu0 %v705
        %709 = vmatprep.subr.bf16.mxu0 0
        %710 = vmatpush1.bf16.xpose.msra.mxu0 0
        %711 = vmatprep.subr.bf16.mxu0 0
        %712 = vmatpush1.bf16.xpose.msra.mxu0 0
        %713 = vmatprep.subr.bf16.mxu0 0
        %714 = vmatpush1.bf16.xpose.msra.mxu0 0
        %715 = vmatprep.subr.bf16.mxu0 0
        %716 = vmatpush1.bf16.xpose.msra.mxu0 0
        %717 = vmatprep.subr.bf16.mxu0 0
        %718 = vmatpush1.bf16.xpose.msra.mxu0 0
        %719 = vmatprep.subr.bf16.mxu0 0
        %720 = vmatpush1.bf16.xpose.msra.mxu0 0
        %721 = vmatprep.subr.bf16.mxu0 0
        %722 = vmatpush1.bf16.xpose.msra.mxu0 0
        %723 = vmatprep.subr.bf16.mxu0 0
        %724 = vmatpush1.bf16.xpose.msra.mxu0 0
        %725 = vmatprep.subr.bf16.mxu0 0
        %726 = vmatpush1.bf16.xpose.msra.mxu0 0
        %727 = vmatprep.subr.bf16.mxu0 0
        %728 = vmatpush1.bf16.xpose.msra.mxu0 0
        %729 = vmatprep.subr.bf16.mxu0 0
        %730 = vmatpush1.bf16.xpose.msra.mxu0 0
        %731 = vmatprep.subr.bf16.mxu0 0
        %732 = vmatpush1.bf16.xpose.msra.mxu0 0
        %733 = vmatprep.subr.bf16.mxu0 0
        %734 = vmatpush1.bf16.xpose.msra.mxu0 0
        %735 = vmatprep.subr.bf16.mxu0 0
        %736 = vmatpush1.bf16.xpose.msra.mxu0 0
        %737 = vmatprep.subr.bf16.mxu0 0
        %738 = vmatpush1.bf16.xpose.msra.mxu0 0
        %739 = vmatprep.mubr.bf16.mxu0 0
        %740 = vmatmul.mubr.bf16.gmra.mrb[0].mxu0 %v702
        %v741 = vpop.f32.mrb[0].mxu0
        %v742 = vadd.f32 0.0, %v741
        %v743 = vpop.f32.mrb[0].mxu0
        %v744 = vpop.f32.mrb[0].mxu0
        %v745 = vpop.f32.mrb[0].mxu0
        %746 = vdwg.mxu0
        %v747 = vsel %vm693, -1e+30, %v742
        %v748 = vsel %vm700, %v747, -inf
        %749 = vmax.xlane.f32.xlu0 %v748
        %v750 = vpop.xlane.xlu0 %749
        %v751 = vsub.f32 %v747, %v750
        %v752 = vmul.f32 %v751, 1.442695
        %v753 = vpow.pop %v752
        %v754 = vsel %vm700, %v753, 0.0
        %755 = vadd.xlane.f32.xlu0 %v754
        %v756 = vpop.xlane.xlu0 %755
        %v757 = vpack.c.bf16 %v753, %v753
        %758 = vrot.lane.b32.xlu0 %v697, 64
        %v759 = vpop.permute.xlu0 %758
        %v761 = vsel %vm700, %v757, 0
        %vm763 = vcmask 1043456
        %v765 = vsel %vm763, %v759, 0
        %767 = vmatprep.subr.bf16.mxu0 0
        %768 = vmatpush1.bf16.msra.mxu0 %v765
        %769 = vmatprep.subr.bf16.mxu0 0
        %770 = vmatpush1.bf16.msra.mxu0 0
        %771 = vmatprep.subr.bf16.mxu0 0
        %772 = vmatpush1.bf16.msra.mxu0 0
        %773 = vmatprep.subr.bf16.mxu0 0
        %774 = vmatpush1.bf16.msra.mxu0 0
        %775 = vmatprep.subr.bf16.mxu0 0
        %776 = vmatpush1.bf16.msra.mxu0 0
        %777 = vmatprep.subr.bf16.mxu0 0
        %778 = vmatpush1.bf16.msra.mxu0 0
        %779 = vmatprep.subr.bf16.mxu0 0
        %780 = vmatpush1.bf16.msra.mxu0 0
        %781 = vmatprep.subr.bf16.mxu0 0
        %782 = vmatpush1.bf16.msra.mxu0 0
        %783 = vmatprep.subr.bf16.mxu0 0
        %784 = vmatpush1.bf16.msra.mxu0 0
        %785 = vmatprep.subr.bf16.mxu0 0
        %786 = vmatpush1.bf16.msra.mxu0 0
        %787 = vmatprep.subr.bf16.mxu0 0
        %788 = vmatpush1.bf16.msra.mxu0 0
        %789 = vmatprep.subr.bf16.mxu0 0
        %790 = vmatpush1.bf16.msra.mxu0 0
        %791 = vmatprep.subr.bf16.mxu0 0
        %792 = vmatpush1.bf16.msra.mxu0 0
        %793 = vmatprep.subr.bf16.mxu0 0
        %794 = vmatpush1.bf16.msra.mxu0 0
        %795 = vmatprep.subr.bf16.mxu0 0
        %796 = vmatpush1.bf16.msra.mxu0 0
        %797 = vmatprep.subr.bf16.mxu0 0
        %798 = vmatpush1.bf16.msra.mxu0 0
        %799 = vmatprep.mubr.bf16.mxu0 0
        %800 = vmatmul.mubr.bf16.gmra.mrb[0].mxu0 %v761
        %v801 = vpop.f32.mrb[0].mxu0
        %v802 = vadd.f32 0.0, %v801
        %v803 = vpop.f32.mrb[0].mxu0
        %v804 = vpop.f32.mrb[0].mxu0
        %v805 = vpop.f32.mrb[0].mxu0
        %806 = vdwg.mxu0
        %v807 = vrcp.pop %v756
        %v808 = vmul.f32 %v802, %v807
        %v809 = vpack.c.bf16 %v808, %v808
        %vm810 = vcmask 60416
        %811 = vst.msk [vmem:[#allocation3] sm:$0xf] %vm810, %v809
        %v812 = vld [vmem:[#allocation2] sm:$0xf]
        %v814 = vunpack.c.l.b16 %v812
        %v815 = vpack.c.b16 %v814, %v814
        %816 = vrot.lane.b32.xlu0 %v815, 120
        %v817 = vpop.permute.xlu0 %816
        %818 = vrot.lane.b32.xlu0 %v815, 88
        %v819 = vpop.permute.xlu0 %818
        %v821 = vsel %vm700, %v817, 0
        %v824 = vsel %vm700, %v819, 0
        %826 = vmatprep.subr.bf16.mxu0 0
        %827 = vmatpush1.bf16.xpose.msra.mxu0 %v824
        %828 = vmatprep.subr.bf16.mxu0 0
        %829 = vmatpush1.bf16.xpose.msra.mxu0 0
        %830 = vmatprep.subr.bf16.mxu0 0
        %831 = vmatpush1.bf16.xpose.msra.mxu0 0
        %832 = vmatprep.subr.bf16.mxu0 0
        %833 = vmatpush1.bf16.xpose.msra.mxu0 0
        %834 = vmatprep.subr.bf16.mxu0 0
        %835 = vmatpush1.bf16.xpose.msra.mxu0 0
        %836 = vmatprep.subr.bf16.mxu0 0
        %837 = vmatpush1.bf16.xpose.msra.mxu0 0
        %838 = vmatprep.subr.bf16.mxu0 0
        %839 = vmatpush1.bf16.xpose.msra.mxu0 0
        %840 = vmatprep.subr.bf16.mxu0 0
        %841 = vmatpush1.bf16.xpose.msra.mxu0 0
        %842 = vmatprep.subr.bf16.mxu0 0
        %843 = vmatpush1.bf16.xpose.msra.mxu0 0
        %844 = vmatprep.subr.bf16.mxu0 0
        %845 = vmatpush1.bf16.xpose.msra.mxu0 0
        %846 = vmatprep.subr.bf16.mxu0 0
        %847 = vmatpush1.bf16.xpose.msra.mxu0 0
        %848 = vmatprep.subr.bf16.mxu0 0
        %849 = vmatpush1.bf16.xpose.msra.mxu0 0
        %850 = vmatprep.subr.bf16.mxu0 0
        %851 = vmatpush1.bf16.xpose.msra.mxu0 0
        %852 = vmatprep.subr.bf16.mxu0 0
        %853 = vmatpush1.bf16.xpose.msra.mxu0 0
        %854 = vmatprep.subr.bf16.mxu0 0
        %855 = vmatpush1.bf16.xpose.msra.mxu0 0
        %856 = vmatprep.subr.bf16.mxu0 0
        %857 = vmatpush1.bf16.xpose.msra.mxu0 0
        %858 = vmatprep.mubr.bf16.mxu0 0
        %859 = vmatmul.mubr.bf16.gmra.mrb[0].mxu0 %v821
        %v860 = vpop.f32.mrb[0].mxu0
        %v861 = vadd.f32 0.0, %v860
        %v862 = vpop.f32.mrb[0].mxu0
        %v863 = vpop.f32.mrb[0].mxu0
        %v864 = vpop.f32.mrb[0].mxu0
        %865 = vdwg.mxu0
        %v866 = vsel %vm693, -1e+30, %v861
        %v867 = vsel %vm700, %v866, -inf
        %868 = vmax.xlane.f32.xlu0 %v867
        %v869 = vpop.xlane.xlu0 %868
        %v870 = vsub.f32 %v866, %v869
        %v871 = vmul.f32 %v870, 1.442695
        %v872 = vpow.pop %v871
        %v873 = vsel %vm700, %v872, 0.0
        %874 = vadd.xlane.f32.xlu0 %v873
        %v875 = vpop.xlane.xlu0 %874
        %v876 = vpack.c.bf16 %v872, %v872
        %877 = vrot.lane.b32.xlu0 %v815, 56
        %v878 = vpop.permute.xlu0 %877
        %v880 = vsel %vm700, %v876, 0
        %v883 = vsel %vm763, %v878, 0
        %885 = vmatprep.subr.bf16.mxu0 0
        %886 = vmatpush1.bf16.msra.mxu0 %v883
        %887 = vmatprep.subr.bf16.mxu0 0
        %888 = vmatpush1.bf16.msra.mxu0 0
        %889 = vmatprep.subr.bf16.mxu0 0
        %890 = vmatpush1.bf16.msra.mxu0 0
        %891 = vmatprep.subr.bf16.mxu0 0
        %892 = vmatpush1.bf16.msra.mxu0 0
        %893 = vmatprep.subr.bf16.mxu0 0
        %894 = vmatpush1.bf16.msra.mxu0 0
        %895 = vmatprep.subr.bf16.mxu0 0
        %896 = vmatpush1.bf16.msra.mxu0 0
        %897 = vmatprep.subr.bf16.mxu0 0
        %898 = vmatpush1.bf16.msra.mxu0 0
        %899 = vmatprep.subr.bf16.mxu0 0
        %900 = vmatpush1.bf16.msra.mxu0 0
        %901 = vmatprep.subr.bf16.mxu0 0
        %902 = vmatpush1.bf16.msra.mxu0 0
        %903 = vmatprep.subr.bf16.mxu0 0
        %904 = vmatpush1.bf16.msra.mxu0 0
        %905 = vmatprep.subr.bf16.mxu0 0
        %906 = vmatpush1.bf16.msra.mxu0 0
        %907 = vmatprep.subr.bf16.mxu0 0
        %908 = vmatpush1.bf16.msra.mxu0 0
        %909 = vmatprep.subr.bf16.mxu0 0
        %910 = vmatpush1.bf16.msra.mxu0 0
        %911 = vmatprep.subr.bf16.mxu0 0
        %912 = vmatpush1.bf16.msra.mxu0 0
        %913 = vmatprep.subr.bf16.mxu0 0
        %914 = vmatpush1.bf16.msra.mxu0 0
        %915 = vmatprep.subr.bf16.mxu0 0
        %916 = vmatpush1.bf16.msra.mxu0 0
        %917 = vmatprep.mubr.bf16.mxu0 0
        %918 = vmatmul.mubr.bf16.gmra.mrb[0].mxu0 %v880
        %v919 = vpop.f32.mrb[0].mxu0
        %v920 = vadd.f32 0.0, %v919
        %v921 = vpop.f32.mrb[0].mxu0
        %v922 = vpop.f32.mrb[0].mxu0
        %v923 = vpop.f32.mrb[0].mxu0
        %924 = vdwg.mxu0
        %v925 = vrcp.pop %v875
        %v926 = vmul.f32 %v920, %v925
        %v927 = vpack.c.bf16 %v926, %v926
        %v929 = vunpack.c.l.b16 %v927
        %v930 = vpack.c.b16 %v929, %v929
        %931 = vrot.lane.b32.xlu0 %v930, 8
        %v932 = vpop.permute.xlu0 %931
        %vm934 = vcmask 126016
        %935 = vst.msk [vmem:[#allocation3] sm:$0xf] %vm934, %v932
        %v936 = vld [vmem:[#allocation2] sm:$0xf]
        %v938 = vunpack.c.l.b16 %v936
        %v939 = vpack.c.b16 %v938, %v938
        %940 = vrot.lane.b32.xlu0 %v939, 112
        %v941 = vpop.permute.xlu0 %940
        %942 = vrot.lane.b32.xlu0 %v939, 80
        %v943 = vpop.permute.xlu0 %942
        %v945 = vsel %vm700, %v941, 0
        %v948 = vsel %vm700, %v943, 0
        %950 = vmatprep.subr.bf16.mxu0 0
        %951 = vmatpush1.bf16.xpose.msra.mxu0 %v948
        %952 = vmatprep.subr.bf16.mxu0 0
        %953 = vmatpush1.bf16.xpose.msra.mxu0 0
        %954 = vmatprep.subr.bf16.mxu0 0
        %955 = vmatpush1.bf16.xpose.msra.mxu0 0
        %956 = vmatprep.subr.bf16.mxu0 0
        %957 = vmatpush1.bf16.xpose.msra.mxu0 0
        %958 = vmatprep.subr.bf16.mxu0 0
        %959 = vmatpush1.bf16.xpose.msra.mxu0 0
        %960 = vmatprep.subr.bf16.mxu0 0
        %961 = vmatpush1.bf16.xpose.msra.mxu0 0
        %962 = vmatprep.subr.bf16.mxu0 0
        %963 = vmatpush1.bf16.xpose.msra.mxu0 0
        %964 = vmatprep.subr.bf16.mxu0 0
        %965 = vmatpush1.bf16.xpose.msra.mxu0 0
        %966 = vmatprep.subr.bf16.mxu0 0
        %967 = vmatpush1.bf16.xpose.msra.mxu0 0
        %968 = vmatprep.subr.bf16.mxu0 0
        %969 = vmatpush1.bf16.xpose.msra.mxu0 0
        %970 = vmatprep.subr.bf16.mxu0 0
        %971 = vmatpush1.bf16.xpose.msra.mxu0 0
        %972 = vmatprep.subr.bf16.mxu0 0
        %973 = vmatpush1.bf16.xpose.msra.mxu0 0
        %974 = vmatprep.subr.bf16.mxu0 0
        %975 = vmatpush1.bf16.xpose.msra.mxu0 0
        %976 = vmatprep.subr.bf16.mxu0 0
        %977 = vmatpush1.bf16.xpose.msra.mxu0 0
        %978 = vmatprep.subr.bf16.mxu0 0
        %979 = vmatpush1.bf16.xpose.msra.mxu0 0
        %980 = vmatprep.subr.bf16.mxu0 0
        %981 = vmatpush1.bf16.xpose.msra.mxu0 0
        %982 = vmatprep.mubr.bf16.mxu0 0
        %983 = vmatmul.mubr.bf16.gmra.mrb[0].mxu0 %v945
        %v984 = vpop.f32.mrb[0].mxu0
        %v985 = vadd.f32 0.0, %v984
        %v986 = vpop.f32.mrb[0].mxu0
        %v987 = vpop.f32.mrb[0].mxu0
        %v988 = vpop.f32.mrb[0].mxu0
        %989 = vdwg.mxu0
        %v990 = vsel %vm693, -1e+30, %v985
        %v991 = vsel %vm700, %v990, -inf
        %992 = vmax.xlane.f32.xlu0 %v991
        %v993 = vpop.xlane.xlu0 %992
        %v994 = vsub.f32 %v990, %v993
        %v995 = vmul.f32 %v994, 1.442695
        %v996 = vpow.pop %v995
        %v997 = vsel %vm700, %v996, 0.0
        %998 = vadd.xlane.f32.xlu0 %v997
        %v999 = vpop.xlane.xlu0 %998
        %v1000 = vpack.c.bf16 %v996, %v996
        %1001 = vrot.lane.b32.xlu0 %v939, 48
        %v1002 = vpop.permute.xlu0 %1001
        %v1004 = vsel %vm700, %v1000, 0
        %v1007 = vsel %vm763, %v1002, 0
        %1009 = vmatprep.subr.bf16.mxu0 0
        %1010 = vmatpush1.bf16.msra.mxu0 %v1007
        %1011 = vmatprep.subr.bf16.mxu0 0
        %1012 = vmatpush1.bf16.msra.mxu0 0
        %1013 = vmatprep.subr.bf16.mxu0 0
        %1014 = vmatpush1.bf16.msra.mxu0 0
        %1015 = vmatprep.subr.bf16.mxu0 0
        %1016 = vmatpush1.bf16.msra.mxu0 0
        %1017 = vmatprep.subr.bf16.mxu0 0
        %1018 = vmatpush1.bf16.msra.mxu0 0
        %1019 = vmatprep.subr.bf16.mxu0 0
        %1020 = vmatpush1.bf16.msra.mxu0 0
        %1021 = vmatprep.subr.bf16.mxu0 0
        %1022 = vmatpush1.bf16.msra.mxu0 0
        %1023 = vmatprep.subr.bf16.mxu0 0
        %1024 = vmatpush1.bf16.msra.mxu0 0
        %1025 = vmatprep.subr.bf16.mxu0 0
        %1026 = vmatpush1.bf16.msra.mxu0 0
        %1027 = vmatprep.subr.bf16.mxu0 0
        %1028 = vmatpush1.bf16.msra.mxu0 0
        %1029 = vmatprep.subr.bf16.mxu0 0
        %1030 = vmatpush1.bf16.msra.mxu0 0
        %1031 = vmatprep.subr.bf16.mxu0 0
        %1032 = vmatpush1.bf16.msra.mxu0 0
        %1033 = vmatprep.subr.bf16.mxu0 0
        %1034 = vmatpush1.bf16.msra.mxu0 0
        %1035 = vmatprep.subr.bf16.mxu0 0
        %1036 = vmatpush1.bf16.msra.mxu0 0
        %1037 = vmatprep.subr.bf16.mxu0 0
        %1038 = vmatpush1.bf16.msra.mxu0 0
        %1039 = vmatprep.subr.bf16.mxu0 0
        %1040 = vmatpush1.bf16.msra.mxu0 0
        %1041 = vmatprep.mubr.bf16.mxu0 0
        %1042 = vmatmul.mubr.bf16.gmra.mrb[0].mxu0 %v1004
        %v1043 = vpop.f32.mrb[0].mxu0
        %v1044 = vadd.f32 0.0, %v1043
        %v1045 = vpop.f32.mrb[0].mxu0
        %v1046 = vpop.f32.mrb[0].mxu0
        %v1047 = vpop.f32.mrb[0].mxu0
        %1048 = vdwg.mxu0
        %v1049 = vrcp.pop %v999
        %v1050 = vmul.f32 %v1044, %v1049
        %v1051 = vpack.c.bf16 %v1050, %v1050
        %v1053 = vunpack.c.l.b16 %v1051
        %v1054 = vpack.c.b16 %v1053, %v1053
        %1055 = vrot.lane.b32.xlu0 %v1054, 16
        %v1056 = vpop.permute.xlu0 %1055
        %vm1058 = vcmask 191616
        %1059 = vst.msk [vmem:[#allocation3] sm:$0xf] %vm1058, %v1056
        %v1060 = vld [vmem:[#allocation2] sm:$0xf]
        %v1062 = vunpack.c.l.b16 %v1060
        %v1063 = vpack.c.b16 %v1062, %v1062
        %1064 = vrot.lane.b32.xlu0 %v1063, 104
        %v1065 = vpop.permute.xlu0 %1064
        %1066 = vrot.lane.b32.xlu0 %v1063, 72
        %v1067 = vpop.permute.xlu0 %1066
        %v1069 = vsel %vm700, %v1065, 0
        %v1072 = vsel %vm700, %v1067, 0
        %1074 = vmatprep.subr.bf16.mxu0 0
        %1075 = vmatpush1.bf16.xpose.msra.mxu0 %v1072
        %1076 = vmatprep.subr.bf16.mxu0 0
        %1077 = vmatpush1.bf16.xpose.msra.mxu0 0
        %1078 = vmatprep.subr.bf16.mxu0 0
        %1079 = vmatpush1.bf16.xpose.msra.mxu0 0
        %1080 = vmatprep.subr.bf16.mxu0 0
        %1081 = vmatpush1.bf16.xpose.msra.mxu0 0
        %1082 = vmatprep.subr.bf16.mxu0 0
        %1083 = vmatpush1.bf16.xpose.msra.mxu0 0
        %1084 = vmatprep.subr.bf16.mxu0 0
        %1085 = vmatpush1.bf16.xpose.msra.mxu0 0
        %1086 = vmatprep.subr.bf16.mxu0 0
        %1087 = vmatpush1.bf16.xpose.msra.mxu0 0
        %1088 = vmatprep.subr.bf16.mxu0 0
        %1089 = vmatpush1.bf16.xpose.msra.mxu0 0
        %1090 = vmatprep.subr.bf16.mxu0 0
        %1091 = vmatpush1.bf16.xpose.msra.mxu0 0
        %1092 = vmatprep.subr.bf16.mxu0 0
        %1093 = vmatpush1.bf16.xpose.msra.mxu0 0
        %1094 = vmatprep.subr.bf16.mxu0 0
        %1095 = vmatpush1.bf16.xpose.msra.mxu0 0
        %1096 = vmatprep.subr.bf16.mxu0 0
        %1097 = vmatpush1.bf16.xpose.msra.mxu0 0
        %1098 = vmatprep.subr.bf16.mxu0 0
        %1099 = vmatpush1.bf16.xpose.msra.mxu0 0
        %1100 = vmatprep.subr.bf16.mxu0 0
        %1101 = vmatpush1.bf16.xpose.msra.mxu0 0
        %1102 = vmatprep.subr.bf16.mxu0 0
        %1103 = vmatpush1.bf16.xpose.msra.mxu0 0
        %1104 = vmatprep.subr.bf16.mxu0 0
        %1105 = vmatpush1.bf16.xpose.msra.mxu0 0
        %1106 = vmatprep.mubr.bf16.mxu0 0
        %1107 = vmatmul.mubr.bf16.gmra.mrb[0].mxu0 %v1069
        %v1108 = vpop.f32.mrb[0].mxu0
        %v1109 = vadd.f32 0.0, %v1108
        %v1110 = vpop.f32.mrb[0].mxu0
        %v1111 = vpop.f32.mrb[0].mxu0
        %v1112 = vpop.f32.mrb[0].mxu0
        %1113 = vdwg.mxu0
        %v1114 = vsel %vm693, -1e+30, %v1109
        %v1115 = vsel %vm700, %v1114, -inf
        %1116 = vmax.xlane.f32.xlu0 %v1115
        %v1117 = vpop.xlane.xlu0 %1116
        %v1118 = vsub.f32 %v1114, %v1117
        %v1119 = vmul.f32 %v1118, 1.442695
        %v1120 = vpow.pop %v1119
        %v1121 = vsel %vm700, %v1120, 0.0
        %1122 = vadd.xlane.f32.xlu0 %v1121
        %v1123 = vpop.xlane.xlu0 %1122
        %v1124 = vpack.c.bf16 %v1120, %v1120
        %1125 = vrot.lane.b32.xlu0 %v1063, 40
        %v1126 = vpop.permute.xlu0 %1125
        %v1128 = vsel %vm700, %v1124, 0
        %v1131 = vsel %vm763, %v1126, 0
        %1133 = vmatprep.subr.bf16.mxu0 0
        %1134 = vmatpush1.bf16.msra.mxu0 %v1131
        %1135 = vmatprep.subr.bf16.mxu0 0
        %1136 = vmatpush1.bf16.msra.mxu0 0
        %1137 = vmatprep.subr.bf16.mxu0 0
        %1138 = vmatpush1.bf16.msra.mxu0 0
        %1139 = vmatprep.subr.bf16.mxu0 0
        %1140 = vmatpush1.bf16.msra.mxu0 0
        %1141 = vmatprep.subr.bf16.mxu0 0
        %1142 = vmatpush1.bf16.msra.mxu0 0
        %1143 = vmatprep.subr.bf16.mxu0 0
        %1144 = vmatpush1.bf16.msra.mxu0 0
        %1145 = vmatprep.subr.bf16.mxu0 0
        %1146 = vmatpush1.bf16.msra.mxu0 0
        %1147 = vmatprep.subr.bf16.mxu0 0
        %1148 = vmatpush1.bf16.msra.mxu0 0
        %1149 = vmatprep.subr.bf16.mxu0 0
        %1150 = vmatpush1.bf16.msra.mxu0 0
        %1151 = vmatprep.subr.bf16.mxu0 0
        %1152 = vmatpush1.bf16.msra.mxu0 0
        %1153 = vmatprep.subr.bf16.mxu0 0
        %1154 = vmatpush1.bf16.msra.mxu0 0
        %1155 = vmatprep.subr.bf16.mxu0 0
        %1156 = vmatpush1.bf16.msra.mxu0 0
        %1157 = vmatprep.subr.bf16.mxu0 0
        %1158 = vmatpush1.bf16.msra.mxu0 0
        %1159 = vmatprep.subr.bf16.mxu0 0
        %1160 = vmatpush1.bf16.msra.mxu0 0
        %1161 = vmatprep.subr.bf16.mxu0 0
        %1162 = vmatpush1.bf16.msra.mxu0 0
        %1163 = vmatprep.subr.bf16.mxu0 0
        %1164 = vmatpush1.bf16.msra.mxu0 0
        %1165 = vmatprep.mubr.bf16.mxu0 0
        %1166 = vmatmul.mubr.bf16.gmra.mrb[0].mxu0 %v1128
        %v1167 = vpop.f32.mrb[0].mxu0
        %v1168 = vadd.f32 0.0, %v1167
        %v1169 = vpop.f32.mrb[0].mxu0
        %v1170 = vpop.f32.mrb[0].mxu0
        %v1171 = vpop.f32.mrb[0].mxu0
        %1172 = vdwg.mxu0
        %v1173 = vrcp.pop %v1123
        %v1174 = vmul.f32 %v1168, %v1173
        %v1175 = vpack.c.bf16 %v1174, %v1174
        %v1177 = vunpack.c.l.b16 %v1175
        %v1178 = vpack.c.b16 %v1177, %v1177
        %1179 = vrot.lane.b32.xlu0 %v1178, 24
        %v1180 = vpop.permute.xlu0 %1179
        %vm1182 = vcmask 257216
        %1183 = vst.msk [vmem:[#allocation3] sm:$0xf] %vm1182, %v1180
        %v1184 = vld [vmem:[#allocation3] sm:$0xf]
        %v1185 = vld [vmem:[#allocation10] sm:$0xf]
        %v1186 = vld [vmem:[#allocation10 + $0x4] sm:$0xf]
        %v1187 = vld [vmem:[#allocation10 + $0x8] sm:$0xf]
        %v1188 = vld [vmem:[#allocation10 + $0xc] sm:$0xf]
        %v1189 = vld [vmem:[#allocation12] sm:$0x1]
        %v1191 = vlaneseq
        %v1192 = vshrl.u32 %v1191, 7
        %v1193 = vsub.s32 0, %v1192
        %v1194 = vrot.slane %v1189, %v1193
        %v1200 = vunpack.c.l.b16 %v1185
        %v1201 = vunpack.c.l.b16 %v1186
        %v1202 = vunpack.c.l.b16 %v1187
        %v1203 = vunpack.c.l.b16 %v1188
        %v1204 = vpack.c.b16 %v1201, %v1200
        %v1205 = vpack.c.b16 %v1203, %v1202
        %v1209 = vsel %vm642, %v1184, 0
        %1211 = vmatprep.subr.bf16.mxu0 0
        %1212 = vmatpush1.bf16.msra.mxu0 %v1204
        %1213 = vmatprep.subr.bf16.mxu0 0
        %1214 = vmatpush1.bf16.msra.mxu0 %v1205
        %1215 = vmatprep.subr.bf16.mxu0 0
        %1216 = vmatpush1.bf16.msra.mxu0 0
        %1217 = vmatprep.subr.bf16.mxu0 0
        %1218 = vmatpush1.bf16.msra.mxu0 0
        %1219 = vmatprep.subr.bf16.mxu0 0
        %1220 = vmatpush1.bf16.msra.mxu0 0
        %1221 = vmatprep.subr.bf16.mxu0 0
        %1222 = vmatpush1.bf16.msra.mxu0 0
        %1223 = vmatprep.subr.bf16.mxu0 0
        %1224 = vmatpush1.bf16.msra.mxu0 0
        %1225 = vmatprep.subr.bf16.mxu0 0
        %1226 = vmatpush1.bf16.msra.mxu0 0
        %1227 = vmatprep.subr.bf16.mxu0 0
        %1228 = vmatpush1.bf16.msra.mxu0 0
        %1229 = vmatprep.subr.bf16.mxu0 0
        %1230 = vmatpush1.bf16.msra.mxu0 0
        %1231 = vmatprep.subr.bf16.mxu0 0
        %1232 = vmatpush1.bf16.msra.mxu0 0
        %1233 = vmatprep.subr.bf16.mxu0 0
        %1234 = vmatpush1.bf16.msra.mxu0 0
        %1235 = vmatprep.subr.bf16.mxu0 0
        %1236 = vmatpush1.bf16.msra.mxu0 0
        %1237 = vmatprep.subr.bf16.mxu0 0
        %1238 = vmatpush1.bf16.msra.mxu0 0
        %1239 = vmatprep.subr.bf16.mxu0 0
        %1240 = vmatpush1.bf16.msra.mxu0 0
        %1241 = vmatprep.subr.bf16.mxu0 0
        %1242 = vmatpush1.bf16.msra.mxu0 0
        %1243 = vmatprep.mubr.bf16.mxu0 0
        %1244 = vmatmul.mubr.bf16.gmra.mrb[0].mxu0 %v1209
        %v1245 = vpop.f32.mrb[0].mxu0
        %v1246 = vadd.f32 %v1194, %v1245
        %v1247 = vpop.f32.mrb[0].mxu0
        %v1248 = vpop.f32.mrb[0].mxu0
        %v1249 = vpop.f32.mrb[0].mxu0
        %1250 = vdwg.mxu0
        %v1251 = vadd.f32 %v617, %v1246
        %v1252 = vld [vmem:[#allocation13] sm:$0x1]
        %v1253 = vld [vmem:[#allocation15] sm:$0x1]
        %v1254 = vsel %vm642, %v1251, 0.0
        %1255 = vadd.xlane.f32.xlu0 %v1254
        %v1256 = vpop.xlane.xlu0 %1255
        %v1257 = vrcp.pop 32.0
        %v1258 = vmul.f32 %v1256, %v1257
        %v1259 = vsub.f32 %v1251, %v1258
        %v1260 = vmul.f32 %v1259, %v1259
        %v1261 = vsel %vm642, %v1260, 0.0
        %1262 = vadd.xlane.f32.xlu0 %v1261
        %v1263 = vpop.xlane.xlu0 %1262
        %v1264 = vmul.f32 %v1263, %v1257
        %v1265 = vadd.f32 %v1264, 1e-05
        %v1266 = vrsqrt.pop %v1265
        %v1267 = vmul.f32 %v1259, %v1266
        %v1269 = vlaneseq
        %v1270 = vshrl.u32 %v1269, 7
        %v1271 = vsub.s32 0, %v1270
        %v1272 = vrot.slane %v1252, %v1271
        %v1274 = vmul.f32 %v1267, %v1272
        %v1276 = vlaneseq
        %v1277 = vshrl.u32 %v1276, 7
        %v1278 = vsub.s32 0, %v1277
        %v1279 = vrot.slane %v1253, %v1278
        %v1281 = vadd.f32 %v1274, %v1279
        %v1282 = vpack.c.bf16 %v1246, %v1246
        %1284 = vrot.lane.b32.xlu0 %v1282, 32
        %v1285 = vpop.permute.xlu0 %1284
        %v1287 = vsel %vm642, %v618, %v1285
        %v1288 = vld [vmem:[#allocation19] sm:$0xff]
        %v1289 = vld [vmem:[#allocation19 + $0x8] sm:$0xff]
        %v1290 = vld [vmem:[#allocation19 + $0x10] sm:$0xff]
        %v1291 = vld [vmem:[#allocation19 + $0x18] sm:$0xff]
        %v1292 = vld [vmem:[#allocation19 + $0x20] sm:$0xff]
        %v1293 = vld [vmem:[#allocation19 + $0x28] sm:$0xff]
        %v1294 = vld [vmem:[#allocation19 + $0x30] sm:$0xff]
        %v1295 = vld [vmem:[#allocation19 + $0x38] sm:$0xff]
        %v1296 = vld [vmem:[#allocation19 + $0x40] sm:$0xff]
        %v1297 = vld [vmem:[#allocation19 + $0x48] sm:$0xff]
        %v1298 = vld [vmem:[#allocation19 + $0x50] sm:$0xff]
        %v1299 = vld [vmem:[#allocation19 + $0x58] sm:$0xff]
        %v1300 = vld [vmem:[#allocation19 + $0x60] sm:$0xff]
        %v1301 = vld [vmem:[#allocation19 + $0x68] sm:$0xff]
        %v1302 = vld [vmem:[#allocation19 + $0x70] sm:$0xff]
        %v1303 = vld [vmem:[#allocation19 + $0x78] sm:$0xff]
        %v1304 = vld [vmem:[#allocation21] sm:$0xf]
        %v1306 = vlaneseq
        %v1307 = vshrl.u32 %v1306, 7
        %v1308 = vsub.s32 0, %v1307
        %v1309 = vrot.slane %v1304, %v1308
        %v1310 = vlaneseq
        %v1311 = vshrl.u32 %v1310, 7
        %v1312 = vsub.s32 1, %v1311
        %v1313 = vrot.slane %v1304, %v1312
        %v1314 = vlaneseq
        %v1315 = vshrl.u32 %v1314, 7
        %v1316 = vsub.s32 2, %v1315
        %v1317 = vrot.slane %v1304, %v1316
        %v1318 = vlaneseq
        %v1319 = vshrl.u32 %v1318, 7
        %v1320 = vsub.s32 3, %v1319
        %v1321 = vrot.slane %v1304, %v1320
        %v1342 = vunpack.c.l.b16 %v1288
        %v1343 = vunpack.c.h.b16 %v1288
        %v1344 = vunpack.c.l.b16 %v1289
        %v1345 = vunpack.c.h.b16 %v1289
        %v1346 = vunpack.c.l.b16 %v1290
        %v1347 = vunpack.c.h.b16 %v1290
        %v1348 = vunpack.c.l.b16 %v1291
        %v1349 = vunpack.c.h.b16 %v1291
        %v1350 = vunpack.c.l.b16 %v1292
        %v1351 = vunpack.c.h.b16 %v1292
        %v1352 = vunpack.c.l.b16 %v1293
        %v1353 = vunpack.c.h.b16 %v1293
        %v1354 = vunpack.c.l.b16 %v1294
        %v1355 = vunpack.c.h.b16 %v1294
        %v1356 = vunpack.c.l.b16 %v1295
        %v1357 = vunpack.c.h.b16 %v1295
        %v1358 = vunpack.c.l.b16 %v1296
        %v1359 = vunpack.c.h.b16 %v1296
        %v1360 = vunpack.c.l.b16 %v1297
        %v1361 = vunpack.c.h.b16 %v1297
        %v1362 = vunpack.c.l.b16 %v1298
        %v1363 = vunpack.c.h.b16 %v1298
        %v1364 = vunpack.c.l.b16 %v1299
        %v1365 = vunpack.c.h.b16 %v1299
        %v1366 = vunpack.c.l.b16 %v1300
        %v1367 = vunpack.c.h.b16 %v1300
        %v1368 = vunpack.c.l.b16 %v1301
        %v1369 = vunpack.c.h.b16 %v1301
        %v1370 = vunpack.c.l.b16 %v1302
        %v1371 = vunpack.c.h.b16 %v1302
        %v1372 = vunpack.c.l.b16 %v1303
        %v1373 = vunpack.c.h.b16 %v1303
        %v1374 = vpack.c.b16 %v1346, %v1342
        %v1375 = vpack.c.b16 %v1347, %v1343
        %v1376 = vpack.c.b16 %v1348, %v1344
        %v1377 = vpack.c.b16 %v1349, %v1345
        %v1378 = vpack.c.b16 %v1354, %v1350
        %v1379 = vpack.c.b16 %v1355, %v1351
        %v1380 = vpack.c.b16 %v1356, %v1352
        %v1381 = vpack.c.b16 %v1357, %v1353
        %v1382 = vpack.c.b16 %v1362, %v1358
        %v1383 = vpack.c.b16 %v1363, %v1359
        %v1384 = vpack.c.b16 %v1364, %v1360
        %v1385 = vpack.c.b16 %v1365, %v1361
        %v1386 = vpack.c.b16 %v1370, %v1366
        %v1387 = vpack.c.b16 %v1371, %v1367
        %v1388 = vpack.c.b16 %v1372, %v1368
        %v1389 = vpack.c.b16 %v1373, %v1369
        %vm1406 = vcmask 523264
        %v1407 = vsel %vm1406, %v1287, 0
        %1409 = vmatprep.subr.bf16.mxu0 %v1375
        %1410 = vmatpush1.bf16.msra.mxu0 %v1374
        %1411 = vmatprep.subr.bf16.mxu0 %v1379
        %1412 = vmatpush1.bf16.msra.mxu0 %v1378
        %1413 = vmatprep.subr.bf16.mxu0 %v1383
        %1414 = vmatpush1.bf16.msra.mxu0 %v1382
        %1415 = vmatprep.subr.bf16.mxu0 %v1387
        %1416 = vmatpush1.bf16.msra.mxu0 %v1386
        %1417 = vmatprep.subr.bf16.mxu0 0
        %1418 = vmatpush1.bf16.msra.mxu0 0
        %1419 = vmatprep.subr.bf16.mxu0 0
        %1420 = vmatpush1.bf16.msra.mxu0 0
        %1421 = vmatprep.subr.bf16.mxu0 0
        %1422 = vmatpush1.bf16.msra.mxu0 0
        %1423 = vmatprep.subr.bf16.mxu0 0
        %1424 = vmatpush1.bf16.msra.mxu0 0
        %1425 = vmatprep.subr.bf16.mxu0 0
        %1426 = vmatpush1.bf16.msra.mxu0 0
        %1427 = vmatprep.subr.bf16.mxu0 0
        %1428 = vmatpush1.bf16.msra.mxu0 0
        %1429 = vmatprep.subr.bf16.mxu0 0
        %1430 = vmatpush1.bf16.msra.mxu0 0
        %1431 = vmatprep.subr.bf16.mxu0 0
        %1432 = vmatpush1.bf16.msra.mxu0 0
        %1433 = vmatprep.subr.bf16.mxu0 0
        %1434 = vmatpush1.bf16.msra.mxu0 0
        %1435 = vmatprep.subr.bf16.mxu0 0
        %1436 = vmatpush1.bf16.msra.mxu0 0
        %1437 = vmatprep.subr.bf16.mxu0 0
        %1438 = vmatpush1.bf16.msra.mxu0 0
        %1439 = vmatprep.subr.bf16.mxu0 0
        %1440 = vmatpush1.bf16.msra.mxu0 0
        %1441 = vmatprep.mubr.bf16.mxu0 0
        %1442 = vmatmul.mubr.bf16.gmra.mrb[0].mxu0 %v1407
        %v1443 = vpop.f32.mrb[0].mxu0
        %v1444 = vadd.f32 %v1309, %v1443
        %v1445 = vpop.f32.mrb[0].mxu0
        %v1446 = vadd.f32 %v1313, %v1445
        %v1447 = vpop.f32.mrb[0].mxu0
        %v1448 = vpop.f32.mrb[0].mxu0
        %1449 = vdwg.mxu0
        %1450 = vmatprep.subr.bf16.mxu0 %v1377
        %1451 = vmatpush1.bf16.msra.mxu0 %v1376
        %1452 = vmatprep.subr.bf16.mxu0 %v1381
        %1453 = vmatpush1.bf16.msra.mxu0 %v1380
        %1454 = vmatprep.subr.bf16.mxu0 %v1385
        %1455 = vmatpush1.bf16.msra.mxu0 %v1384
        %1456 = vmatprep.subr.bf16.mxu0 %v1389
        %1457 = vmatpush1.bf16.msra.mxu0 %v1388
        %1458 = vmatprep.subr.bf16.mxu0 0
        %1459 = vmatpush1.bf16.msra.mxu0 0
        %1460 = vmatprep.subr.bf16.mxu0 0
        %1461 = vmatpush1.bf16.msra.mxu0 0
        %1462 = vmatprep.subr.bf16.mxu0 0
        %1463 = vmatpush1.bf16.msra.mxu0 0
        %1464 = vmatprep.subr.bf16.mxu0 0
        %1465 = vmatpush1.bf16.msra.mxu0 0
        %1466 = vmatprep.subr.bf16.mxu0 0
        %1467 = vmatpush1.bf16.msra.mxu0 0
        %1468 = vmatprep.subr.bf16.mxu0 0
        %1469 = vmatpush1.bf16.msra.mxu0 0
        %1470 = vmatprep.subr.bf16.mxu0 0
        %1471 = vmatpush1.bf16.msra.mxu0 0
        %1472 = vmatprep.subr.bf16.mxu0 0
        %1473 = vmatpush1.bf16.msra.mxu0 0
        %1474 = vmatprep.subr.bf16.mxu0 0
        %1475 = vmatpush1.bf16.msra.mxu0 0
        %1476 = vmatprep.subr.bf16.mxu0 0
        %1477 = vmatpush1.bf16.msra.mxu0 0
        %1478 = vmatprep.subr.bf16.mxu0 0
        %1479 = vmatpush1.bf16.msra.mxu0 0
        %1480 = vmatprep.subr.bf16.mxu0 0
        %1481 = vmatpush1.bf16.msra.mxu0 0
        %1482 = vmatprep.mubr.bf16.mxu0 0
        %1483 = vmatmul.mubr.bf16.gmra.mrb[0].mxu0 %v1407
        %v1484 = vpop.f32.mrb[0].mxu0
        %v1485 = vadd.f32 %v1317, %v1484
        %v1486 = vpop.f32.mrb[0].mxu0
        %v1487 = vadd.f32 %v1321, %v1486
        %v1488 = vpop.f32.mrb[0].mxu0
        %v1489 = vpop.f32.mrb[0].mxu0
        %1490 = vdwg.mxu0
        %vm1491 = vcmp.ge.f32.partialorder %v1444, 0.0
        %v1492 = vmul.f32 %v1444, 0.01
        %v1493 = vsel %vm1491, %v1444, %v1492
        %v1494 = vpack.c.bf16 %v1493, %v1493
        %v1495 = vld [vmem:[#allocation22] sm:$0xff]
        %v1496 = vld [vmem:[#allocation22 + $0x8] sm:$0xf]
        %v1497 = vld [vmem:[#allocation22 + $0xc] sm:$0xff]
        %v1498 = vld [vmem:[#allocation22 + $0x14] sm:$0xf]
        %v1499 = vld [vmem:[#allocation22 + $0x18] sm:$0xff]
        %v1500 = vld [vmem:[#allocation22 + $0x20] sm:$0xf]
        %v1501 = vld [vmem:[#allocation22 + $0x24] sm:$0xff]
        %v1502 = vld [vmem:[#allocation22 + $0x2c] sm:$0xf]
        %v1503 = vld [vmem:[#allocation22 + $0x30] sm:$0xff]
        %v1504 = vld [vmem:[#allocation22 + $0x38] sm:$0xf]
        %v1505 = vld [vmem:[#allocation22 + $0x3c] sm:$0xff]
        %v1506 = vld [vmem:[#allocation22 + $0x44] sm:$0xf]
        %v1507 = vld [vmem:[#allocation22 + $0x48] sm:$0xff]
        %v1508 = vld [vmem:[#allocation22 + $0x50] sm:$0xf]
        %v1509 = vld [vmem:[#allocation22 + $0x54] sm:$0xff]
        %v1510 = vld [vmem:[#allocation22 + $0x5c] sm:$0xf]
        %v1511 = vld [vmem:[#allocation22 + $0x60] sm:$0xff]
        %v1512 = vld [vmem:[#allocation22 + $0x68] sm:$0xf]
        %v1513 = vld [vmem:[#allocation22 + $0x6c] sm:$0xff]
        %v1514 = vld [vmem:[#allocation22 + $0x74] sm:$0xf]
        %v1515 = vld [vmem:[#allocation22 + $0x78] sm:$0xff]
        %v1516 = vld [vmem:[#allocation22 + $0x80] sm:$0xf]
        %v1517 = vld [vmem:[#allocation22 + $0x84] sm:$0xff]
        %v1518 = vld [vmem:[#allocation22 + $0x8c] sm:$0xf]
        %v1519 = vld [vmem:[#allocation22 + $0x90] sm:$0xff]
        %v1520 = vld [vmem:[#allocation22 + $0x98] sm:$0xf]
        %v1521 = vld [vmem:[#allocation22 + $0x9c] sm:$0xff]
        %v1522 = vld [vmem:[#allocation22 + $0xa4] sm:$0xf]
        %v1523 = vld [vmem:[#allocation22 + $0xa8] sm:$0xff]
        %v1524 = vld [vmem:[#allocation22 + $0xb0] sm:$0xf]
        %v1525 = vld [vmem:[#allocation22 + $0xb4] sm:$0xff]
        %v1526 = vld [vmem:[#allocation22 + $0xbc] sm:$0xf]
        %v1559 = vunpack.c.l.b16 %v1495
        %v1560 = vunpack.c.h.b16 %v1495
        %v1561 = vunpack.c.l.b16 %v1496
        %v1562 = vunpack.c.l.b16 %v1497
        %v1563 = vunpack.c.h.b16 %v1497
        %v1564 = vunpack.c.l.b16 %v1498
        %v1565 = vunpack.c.l.b16 %v1499
        %v1566 = vunpack.c.h.b16 %v1499
        %v1567 = vunpack.c.l.b16 %v1500
        %v1568 = vunpack.c.l.b16 %v1501
        %v1569 = vunpack.c.h.b16 %v1501
        %v1570 = vunpack.c.l.b16 %v1502
        %v1571 = vunpack.c.l.b16 %v1503
        %v1572 = vunpack.c.h.b16 %v1503
        %v1573 = vunpack.c.l.b16 %v1504
        %v1574 = vunpack.c.l.b16 %v1505
        %v1575 = vunpack.c.h.b16 %v1505
        %v1576 = vunpack.c.l.b16 %v1506
        %v1577 = vunpack.c.l.b16 %v1507
        %v1578 = vunpack.c.h.b16 %v1507
        %v1579 = vunpack.c.l.b16 %v1508
        %v1580 = vunpack.c.l.b16 %v1509
        %v1581 = vunpack.c.h.b16 %v1509
        %v1582 = vunpack.c.l.b16 %v1510
        %v1583 = vunpack.c.l.b16 %v1511
        %v1584 = vunpack.c.h.b16 %v1511
        %v1585 = vunpack.c.l.b16 %v1512
        %v1586 = vunpack.c.l.b16 %v1513
        %v1587 = vunpack.c.h.b16 %v1513
        %v1588 = vunpack.c.l.b16 %v1514
        %v1589 = vunpack.c.l.b16 %v1515
        %v1590 = vunpack.c.h.b16 %v1515
        %v1591 = vunpack.c.l.b16 %v1516
        %v1592 = vunpack.c.l.b16 %v1517
        %v1593 = vunpack.c.h.b16 %v1517
        %v1594 = vunpack.c.l.b16 %v1518
        %v1595 = vunpack.c.l.b16 %v1519
        %v1596 = vunpack.c.h.b16 %v1519
        %v1597 = vunpack.c.l.b16 %v1520
        %v1598 = vunpack.c.l.b16 %v1521
        %v1599 = vunpack.c.h.b16 %v1521
        %v1600 = vunpack.c.l.b16 %v1522
        %v1601 = vunpack.c.l.b16 %v1523
        %v1602 = vunpack.c.h.b16 %v1523
        %v1603 = vunpack.c.l.b16 %v1524
        %v1604 = vunpack.c.l.b16 %v1525
        %v1605 = vunpack.c.h.b16 %v1525
        %v1606 = vunpack.c.l.b16 %v1526
        %v1607 = vpack.c.b16 %v1562, %v1559
        %v1608 = vpack.c.b16 %v1563, %v1560
        %v1609 = vpack.c.b16 %v1564, %v1561
        %v1610 = vpack.c.b16 %v1568, %v1565
        %v1611 = vpack.c.b16 %v1569, %v1566
        %v1612 = vpack.c.b16 %v1570, %v1567
        %v1613 = vpack.c.b16 %v1574, %v1571
        %v1614 = vpack.c.b16 %v1575, %v1572
        %v1615 = vpack.c.b16 %v1576, %v1573
        %v1616 = vpack.c.b16 %v1580, %v1577
        %v1617 = vpack.c.b16 %v1581, %v1578
        %v1618 = vpack.c.b16 %v1582, %v1579
        %v1619 = vpack.c.b16 %v1586, %v1583
        %v1620 = vpack.c.b16 %v1587, %v1584
        %v1621 = vpack.c.b16 %v1588, %v1585
        %v1622 = vpack.c.b16 %v1592, %v1589
        %v1623 = vpack.c.b16 %v1593, %v1590
        %v1624 = vpack.c.b16 %v1594, %v1591
        %v1625 = vpack.c.b16 %v1598, %v1595
        %v1626 = vpack.c.b16 %v1599, %v1596
        %v1627 = vpack.c.b16 %v1600, %v1597
        %v1628 = vpack.c.b16 %v1604, %v1601
        %v1629 = vpack.c.b16 %v1605, %v1602
        %v1630 = vpack.c.b16 %v1606, %v1603
        %1655 = vmatprep.subr.bf16.mxu0 %v1608
        %1656 = vmatpush1.bf16.msra.mxu0 %v1607
        %1657 = vmatprep.subr.bf16.mxu0 %v1611
        %1658 = vmatpush1.bf16.msra.mxu0 %v1610
        %1659 = vmatprep.subr.bf16.mxu0 %v1614
        %1660 = vmatpush1.bf16.msra.mxu0 %v1613
        %1661 = vmatprep.subr.bf16.mxu0 %v1617
        %1662 = vmatpush1.bf16.msra.mxu0 %v1616
        %1663 = vmatprep.subr.bf16.mxu0 %v1620
        %1664 = vmatpush1.bf16.msra.mxu0 %v1619
        %1665 = vmatprep.subr.bf16.mxu0 %v1623
        %1666 = vmatpush1.bf16.msra.mxu0 %v1622
        %1667 = vmatprep.subr.bf16.mxu0 %v1626
        %1668 = vmatpush1.bf16.msra.mxu0 %v1625
        %1669 = vmatprep.subr.bf16.mxu0 %v1629
        %1670 = vmatpush1.bf16.msra.mxu0 %v1628
        %1671 = vmatprep.subr.bf16.mxu0 0
        %1672 = vmatpush1.bf16.msra.mxu0 0
        %1673 = vmatprep.subr.bf16.mxu0 0
        %1674 = vmatpush1.bf16.msra.mxu0 0
        %1675 = vmatprep.subr.bf16.mxu0 0
        %1676 = vmatpush1.bf16.msra.mxu0 0
        %1677 = vmatprep.subr.bf16.mxu0 0
        %1678 = vmatpush1.bf16.msra.mxu0 0
        %1679 = vmatprep.subr.bf16.mxu0 0
        %1680 = vmatpush1.bf16.msra.mxu0 0
        %1681 = vmatprep.subr.bf16.mxu0 0
        %1682 = vmatpush1.bf16.msra.mxu0 0
        %1683 = vmatprep.subr.bf16.mxu0 0
        %1684 = vmatpush1.bf16.msra.mxu0 0
        %1685 = vmatprep.subr.bf16.mxu0 0
        %1686 = vmatpush1.bf16.msra.mxu0 0
        %1687 = vmatprep.mubr.bf16.mxu0 0
        %1688 = vmatmul.mubr.bf16.gmra.mrb[0].mxu0 %v1494
        %v1689 = vpop.f32.mrb[0].mxu0
        %v1690 = vadd.f32 0.0, %v1689
        %v1691 = vpop.f32.mrb[0].mxu0
        %v1692 = vadd.f32 0.0, %v1691
        %v1693 = vpop.f32.mrb[0].mxu0
        %v1694 = vpop.f32.mrb[0].mxu0
        %1695 = vdwg.mxu0
        %1696 = vmatprep.subr.bf16.mxu0 0
        %1697 = vmatpush1.bf16.msra.mxu0 %v1609
        %1698 = vmatprep.subr.bf16.mxu0 0
        %1699 = vmatpush1.bf16.msra.mxu0 %v1612
        %1700 = vmatprep.subr.bf16.mxu0 0
        %1701 = vmatpush1.bf16.msra.mxu0 %v1615
        %1702 = vmatprep.subr.bf16.mxu0 0
        %1703 = vmatpush1.bf16.msra.mxu0 %v1618
        %1704 = vmatprep.subr.bf16.mxu0 0
        %1705 = vmatpush1.bf16.msra.mxu0 %v1621
        %1706 = vmatprep.subr.bf16.mxu0 0
        %1707 = vmatpush1.bf16.msra.mxu0 %v1624
        %1708 = vmatprep.subr.bf16.mxu0 0
        %1709 = vmatpush1.bf16.msra.mxu0 %v1627
        %1710 = vmatprep.subr.bf16.mxu0 0
        %1711 = vmatpush1.bf16.msra.mxu0 %v1630
        %1712 = vmatprep.subr.bf16.mxu0 0
        %1713 = vmatpush1.bf16.msra.mxu0 0
        %1714 = vmatprep.subr.bf16.mxu0 0
        %1715 = vmatpush1.bf16.msra.mxu0 0
        %1716 = vmatprep.subr.bf16.mxu0 0
        %1717 = vmatpush1.bf16.msra.mxu0 0
        %1718 = vmatprep.subr.bf16.mxu0 0
        %1719 = vmatpush1.bf16.msra.mxu0 0
        %1720 = vmatprep.subr.bf16.mxu0 0
        %1721 = vmatpush1.bf16.msra.mxu0 0
        %1722 = vmatprep.subr.bf16.mxu0 0
        %1723 = vmatpush1.bf16.msra.mxu0 0
        %1724 = vmatprep.subr.bf16.mxu0 0
        %1725 = vmatpush1.bf16.msra.mxu0 0
        %1726 = vmatprep.subr.bf16.mxu0 0
        %1727 = vmatpush1.bf16.msra.mxu0 0
        %1728 = vmatprep.mubr.bf16.mxu0 0
        %1729 = vmatmul.mubr.bf16.gmra.mrb[0].mxu0 %v1494
        %v1730 = vpop.f32.mrb[0].mxu0
        %v1731 = vadd.f32 0.0, %v1730
        %v1732 = vpop.f32.mrb[0].mxu0
        %v1733 = vpop.f32.mrb[0].mxu0
        %v1734 = vpop.f32.mrb[0].mxu0
        %1735 = vdwg.mxu0
        %v1736 = vadd.f32 %v1446, %v1690
        %v1737 = vadd.f32 %v1485, %v1692
        %vm1738 = vcmp.ge.f32.partialorder %v1736, 0.0
        %vm1739 = vcmp.ge.f32.partialorder %v1737, 0.0
        %v1740 = vmul.f32 %v1736, 0.01
        %v1741 = vmul.f32 %v1737, 0.01
        %v1742 = vsel %vm1738, %v1736, %v1740
        %v1743 = vsel %vm1739, %v1737, %v1741
        %v1744 = vadd.f32 %v1487, %v1731
        %v1745 = vpack.c.bf16 %v1742, %v1742
        %v1746 = vpack.c.bf16 %v1743, %v1743
        %v1747 = vld [vmem:[#allocation24] sm:$0xf]
        %v1748 = vld [vmem:[#allocation24 + $0x4] sm:$0xf]
        %v1749 = vld [vmem:[#allocation24 + $0x8] sm:$0xf]
        %v1750 = vld [vmem:[#allocation24 + $0xc] sm:$0xf]
        %v1751 = vld [vmem:[#allocation24 + $0x10] sm:$0xf]
        %v1752 = vld [vmem:[#allocation24 + $0x14] sm:$0xf]
        %v1753 = vld [vmem:[#allocation24 + $0x18] sm:$0xf]
        %v1754 = vld [vmem:[#allocation24 + $0x1c] sm:$0xf]
        %v1755 = vld [vmem:[#allocation24 + $0x20] sm:$0xf]
        %v1756 = vld [vmem:[#allocation24 + $0x24] sm:$0xf]
        %v1757 = vld [vmem:[#allocation24 + $0x28] sm:$0xf]
        %v1758 = vld [vmem:[#allocation24 + $0x2c] sm:$0xf]
        %v1759 = vld [vmem:[#allocation24 + $0x30] sm:$0xf]
        %v1760 = vld [vmem:[#allocation24 + $0x34] sm:$0xf]
        %v1761 = vld [vmem:[#allocation24 + $0x38] sm:$0xf]
        %v1762 = vld [vmem:[#allocation24 + $0x3c] sm:$0xf]
        %v1763 = vld [vmem:[#allocation24 + $0x40] sm:$0xf]
        %v1764 = vld [vmem:[#allocation24 + $0x44] sm:$0xf]
        %v1765 = vld [vmem:[#allocation24 + $0x48] sm:$0xf]
        %v1766 = vld [vmem:[#allocation24 + $0x4c] sm:$0xf]
        %v1767 = vld [vmem:[#allocation24 + $0x50] sm:$0xf]
        %v1768 = vld [vmem:[#allocation24 + $0x54] sm:$0xf]
        %v1769 = vld [vmem:[#allocation24 + $0x58] sm:$0xf]
        %v1770 = vld [vmem:[#allocation24 + $0x5c] sm:$0xf]
        %v1771 = vld [vmem:[#allocation24 + $0x60] sm:$0xf]
        %v1772 = vld [vmem:[#allocation24 + $0x64] sm:$0xf]
        %v1773 = vld [vmem:[#allocation24 + $0x68] sm:$0xf]
        %v1774 = vld [vmem:[#allocation24 + $0x6c] sm:$0xf]
        %v1775 = vld [vmem:[#allocation24 + $0x70] sm:$0xf]
        %v1776 = vld [vmem:[#allocation24 + $0x74] sm:$0xf]
        %v1777 = vld [vmem:[#allocation24 + $0x78] sm:$0xf]
        %v1778 = vld [vmem:[#allocation24 + $0x7c] sm:$0xf]
        %v1811 = vunpack.c.l.b16 %v1747
        %v1812 = vunpack.c.l.b16 %v1748
        %v1813 = vunpack.c.l.b16 %v1749
        %v1814 = vunpack.c.l.b16 %v1750
        %v1815 = vunpack.c.l.b16 %v1751
        %v1816 = vunpack.c.l.b16 %v1752
        %v1817 = vunpack.c.l.b16 %v1753
        %v1818 = vunpack.c.l.b16 %v1754
        %v1819 = vunpack.c.l.b16 %v1755
        %v1820 = vunpack.c.l.b16 %v1756
        %v1821 = vunpack.c.l.b16 %v1757
        %v1822 = vunpack.c.l.b16 %v1758
        %v1823 = vunpack.c.l.b16 %v1759
        %v1824 = vunpack.c.l.b16 %v1760
        %v1825 = vunpack.c.l.b16 %v1761
        %v1826 = vunpack.c.l.b16 %v1762
        %v1827 = vunpack.c.l.b16 %v1763
        %v1828 = vunpack.c.l.b16 %v1764
        %v1829 = vunpack.c.l.b16 %v1765
        %v1830 = vunpack.c.l.b16 %v1766
        %v1831 = vunpack.c.l.b16 %v1767
        %v1832 = vunpack.c.l.b16 %v1768
        %v1833 = vunpack.c.l.b16 %v1769
        %v1834 = vunpack.c.l.b16 %v1770
        %v1835 = vunpack.c.l.b16 %v1771
        %v1836 = vunpack.c.l.b16 %v1772
        %v1837 = vunpack.c.l.b16 %v1773
        %v1838 = vunpack.c.l.b16 %v1774
        %v1839 = vunpack.c.l.b16 %v1775
        %v1840 = vunpack.c.l.b16 %v1776
        %v1841 = vunpack.c.l.b16 %v1777
        %v1842 = vunpack.c.l.b16 %v1778
        %v1843 = vpack.c.b16 %v1812, %v1811
        %v1844 = vpack.c.b16 %v1814, %v1813
        %v1845 = vpack.c.b16 %v1816, %v1815
        %v1846 = vpack.c.b16 %v1818, %v1817
        %v1847 = vpack.c.b16 %v1820, %v1819
        %v1848 = vpack.c.b16 %v1822, %v1821
        %v1849 = vpack.c.b16 %v1824, %v1823
        %v1850 = vpack.c.b16 %v1826, %v1825
        %v1851 = vpack.c.b16 %v1828, %v1827
        %v1852 = vpack.c.b16 %v1830, %v1829
        %v1853 = vpack.c.b16 %v1832, %v1831
        %v1854 = vpack.c.b16 %v1834, %v1833
        %v1855 = vpack.c.b16 %v1836, %v1835
        %v1856 = vpack.c.b16 %v1838, %v1837
        %v1857 = vpack.c.b16 %v1840, %v1839
        %v1858 = vpack.c.b16 %v1842, %v1841
        %1875 = vmatprep.subr.bf16.mxu0 0
        %1876 = vmatpush1.bf16.msra.mxu0 %v1843
        %1877 = vmatprep.subr.bf16.mxu0 0
        %1878 = vmatpush1.bf16.msra.mxu0 %v1844
        %1879 = vmatprep.subr.bf16.mxu0 0
        %1880 = vmatpush1.bf16.msra.mxu0 %v1845
        %1881 = vmatprep.subr.bf16.mxu0 0
        %1882 = vmatpush1.bf16.msra.mxu0 %v1846
        %1883 = vmatprep.subr.bf16.mxu0 0
        %1884 = vmatpush1.bf16.msra.mxu0 %v1847
        %1885 = vmatprep.subr.bf16.mxu0 0
        %1886 = vmatpush1.bf16.msra.mxu0 %v1848
        %1887 = vmatprep.subr.bf16.mxu0 0
        %1888 = vmatpush1.bf16.msra.mxu0 %v1849
        %1889 = vmatprep.subr.bf16.mxu0 0
        %1890 = vmatpush1.bf16.msra.mxu0 %v1850
        %1891 = vmatprep.subr.bf16.mxu0 0
        %1892 = vmatpush1.bf16.msra.mxu0 %v1851
        %1893 = vmatprep.subr.bf16.mxu0 0
        %1894 = vmatpush1.bf16.msra.mxu0 %v1852
        %1895 = vmatprep.subr.bf16.mxu0 0
        %1896 = vmatpush1.bf16.msra.mxu0 %v1853
        %1897 = vmatprep.subr.bf16.mxu0 0
        %1898 = vmatpush1.bf16.msra.mxu0 %v1854
        %1899 = vmatprep.subr.bf16.mxu0 0
        %1900 = vmatpush1.bf16.msra.mxu0 %v1855
        %1901 = vmatprep.subr.bf16.mxu0 0
        %1902 = vmatpush1.bf16.msra.mxu0 %v1856
        %1903 = vmatprep.subr.bf16.mxu0 0
        %1904 = vmatpush1.bf16.msra.mxu0 %v1857
        %1905 = vmatprep.subr.bf16.mxu0 0
        %1906 = vmatpush1.bf16.msra.mxu0 %v1858
        %1907 = vmatprep.mubr.bf16.mxu0 %v1746
        %1908 = vmatmul.mubr.bf16.gmra.mrb[0].mxu0 %v1745
        %v1909 = vpop.f32.mrb[0].mxu0
        %v1910 = vadd.f32 0.0, %v1909
        %v1911 = vpop.f32.mrb[0].mxu0
        %v1912 = vpop.f32.mrb[0].mxu0
        %v1913 = vpop.f32.mrb[0].mxu0
        %1914 = vdwg.mxu0
        %v1915 = vadd.f32 %v1744, %v1910
        %vm1916 = vcmp.ge.f32.partialorder %v1915, 0.0
        %v1917 = vmul.f32 %v1915, 0.01
        %v1918 = vsel %vm1916, %v1915, %v1917
        %v1919 = vadd.f32 %v1281, %v1918
        %v1920 = vadd.f32 %v1919, %v617
        %v1921 = vld [vmem:[#allocation16] sm:$0x1]
        %v1922 = vld [vmem:[#allocation18] sm:$0x1]
        %v1923 = vsel %vm642, %v1920, 0.0
        %1924 = vadd.xlane.f32.xlu0 %v1923
        %v1925 = vpop.xlane.xlu0 %1924
        %v1926 = vmul.f32 %v1925, %v1257
        %v1927 = vsub.f32 %v1920, %v1926
        %v1928 = vmul.f32 %v1927, %v1927
        %v1929 = vsel %vm642, %v1928, 0.0
        %1930 = vadd.xlane.f32.xlu0 %v1929
        %v1931 = vpop.xlane.xlu0 %1930
        %v1932 = vmul.f32 %v1931, %v1257
        %v1933 = vadd.f32 %v1932, 1e-05
        %v1934 = vrsqrt.pop %v1933
        %v1935 = vmul.f32 %v1927, %v1934
        %v1937 = vlaneseq
        %v1938 = vshrl.u32 %v1937, 7
        %v1939 = vsub.s32 0, %v1938
        %v1940 = vrot.slane %v1921, %v1939
        %v1942 = vmul.f32 %v1935, %v1940
        %v1944 = vlaneseq
        %v1945 = vshrl.u32 %v1944, 7
        %v1946 = vsub.s32 0, %v1945
        %v1947 = vrot.slane %v1922, %v1946
        %v1949 = vadd.f32 %v1942, %v1947
        %1950 = vst.msk [vmem:[%s615] sm:$0xff] %vm642, %v1949
        %s1951 = sand.u32 %s322, 1
        %s1952 = scalar_lea.sflag [#allocation6], %s1951
        %s1953 = sand.u32 %s322, 1
        %s1954 = smul.addr %s1953, 8
        %s1955 = scalar_lea.vmem [#allocation25], %s1954
        // Predicated region
        $region125: #{tpu_custom_call.1} parent=71 // pred_check
          %p1956 = pneg %p332
        $region126: #{tpu_custom_call.1} parent=71 // pred_check_branch
          %1958 = sbr.rel (%p1956) target = $region128
        $region127: #{tpu_custom_call.1} parent=71 // pred_region
          %s1960 = ssub.s32 128, 128
          %1961 = vsyncadd %s1952, %s1960
          %s1962 = smul.addr %s36, 128
          %s1963 = scalar_lea.hbm %s13, %s1962
          %s1965 = sshll.u32 %s1955, 4
          %s1966 = int_to_ptr.vmem [resolvable:$true] %s1965
          %1968 = dma.vmem_to_hbm [thread:$0]  %s1966, 128, %s1963, %s1952
        $region128: #{tpu_custom_call.1} parent=71 // pred_fallthru
          _
      $region72: #{tpu_custom_call.1} parent=5 // pred_fallthru
        _
      %p1969 = scmp.le.s32.totalorder 2, %s31
      // Predicated region
      $region129: #{tpu_custom_call.1} parent=5 // pred_check
        %p1970 = pneg %p1969
      $region130: #{tpu_custom_call.1} parent=5 // pred_check_branch
        %1972 = sbr.rel (%p1970) target = $region132
      $region131: #{tpu_custom_call.1} parent=5 // pred_region
        %s1973 = ssub.s32 %s31, 2
        // Predicated region
        $region133: #{tpu_custom_call.1} parent=131 // pred_check
          %p1974 = pneg %p338
        $region134: #{tpu_custom_call.1} parent=131 // pred_check_branch
          %1976 = sbr.rel (%p1974) target = $region136
        $region135: #{tpu_custom_call.1} parent=131 // pred_region
          %s1977 = sand.u32 %s323, 1
          %s1978 = scalar_lea.sflag [#allocation6], %s1977
          %s1979 = sand.u32 %s323, 1
          %s1980 = smul.addr %s1979, 8
          %s1981 = scalar_lea.vmem [#allocation25], %s1980
          %1982 = dma.done %s1978, 128
        $region136: #{tpu_custom_call.1} parent=131 // pred_fallthru
          _
      $region132: #{tpu_custom_call.1} parent=5 // pred_fallthru
        _
    $region6: #{tpu_custom_call.1} parent=1 // loop_footer
      %s35 = sadd.s32 1, %s31
    $region7: #{tpu_custom_call.1} parent=1 // loop_footer_branch
      %30 = sbr.rel target = $region3
    $region8: #{tpu_custom_call.1} parent=1 // loop_exit
      _
    %1983 = vsyncpa [#allocation5], 1
    %s1984 = scalar_lea.sflag [#allocation5], 1
    %1985 = vsyncpa %s1984, 1
    %1986 = vsyncpa [#allocation8], 1
    %1987 = vsyncpa [#allocation11], 1
    %1988 = vsyncpa [#allocation14], 1
    %1989 = vsyncpa [#allocation17], 1
    %1990 = vsyncpa [#allocation20], 1
    %1991 = vsyncpa [#allocation23], 1
    %1992 = vsyncpa [#allocation6], 1
    %s1993 = scalar_lea.sflag [#allocation6], 1
    %1994 = vsyncpa %s1993, 1

// kernel: tpu_custom_call.1
$region0: #{tpu_custom_call.1}
  #allocation0 [shape = 'u32[]', space=smem, size = 0x4, offset = 0x4, fixed_abs, tag = 'smem constant byte address 0x4 - core index']
  #allocation1 [shape = 'u32[144,128]{1,0:T(1,128)}', space=vmem, size = 0x12000, scoped, tag = 'internal scratch']
  #allocation2 [shape = 'bf16[8,96]{1,0:T(8,128)(2,1)}', space=vmem, size = 0x800, scoped, tag = 'scratch operand']
  #allocation3 [shape = 'bf16[8,32]{1,0:T(8,128)(2,1)}', space=vmem, size = 0x800, scoped, tag = 'scratch operand']
  %s0 = inlined_call_operand.hbm [shape: f32[2,8,32], index: 0, kind: input, shape index: {}]
  %s1 = inlined_call_operand.hbm [shape: bf16[32,96], index: 1, kind: input, shape index: {}]
  %s2 = inlined_call_operand.hbm [shape: f32[1,96], index: 2, kind: input, shape index: {}]
  %s3 = inlined_call_operand.hbm [shape: bf16[32,32], index: 3, kind: input, shape index: {}]
  %s4 = inlined_call_operand.hbm [shape: f32[1,32], index: 4, kind: input, shape index: {}]
  %s5 = inlined_call_operand.hbm [shape: f32[1,32], index: 5, kind: input, shape index: {}]
  %s6 = inlined_call_operand.hbm [shape: f32[1,32], index: 6, kind: input, shape index: {}]
  %s7 = inlined_call_operand.hbm [shape: f32[1,32], index: 7, kind: input, shape index: {}]
  %s8 = inlined_call_operand.hbm [shape: f32[1,32], index: 8, kind: input, shape index: {}]
  %s9 = inlined_call_operand.hbm [shape: bf16[64,416], index: 9, kind: input, shape index: {}]
  %s10 = inlined_call_operand.hbm [shape: f32[1,416], index: 10, kind: input, shape index: {}]
  %s11 = inlined_call_operand.hbm [shape: bf16[128,288], index: 11, kind: input, shape index: {}]
  %s12 = inlined_call_operand.hbm [shape: bf16[256,32], index: 12, kind: input, shape index: {}]
  %s13 = inlined_call_operand.hbm [shape: f32[2,8,32], index: 13, kind: output, shape index: {}]
  %s14 = sld [smem:[#allocation0]]
  $region137: #{tpu_custom_call.1} parent=0
    _
  %s16 = ssub.s32 1, %s14
  %s17 = scalar_select 0, %s16, %s14
  $region1: #{tpu_custom_call.1} parent=0
    #allocation4 [shape = 'u8[8192]{0}', space=vmem, size = 0x2000, scoped, tag = 'input window, operand 0']
    #allocation5 [shape = 's32[2]{0}', space=sflag, size = 0x8, scoped, tag = 'scoped memory for tpu_custom_call.1']
    #allocation6 [shape = 's32[2]{0}', space=sflag, size = 0x8, scoped, tag = 'scoped memory for tpu_custom_call.1']
    #allocation7 [shape = 'u8[8192]{0}', space=vmem, size = 0x2000, scoped, tag = 'input window, operand 1, single buffered']
    #allocation8 [shape = 's32[1]{0}', space=sflag, size = 0x4, scoped, tag = 'scoped memory for tpu_custom_call.1']
    #allocation9 [shape = 'u8[512]{0}', space=vmem, size = 0x400, scoped, tag = 'input window, operand 2, single buffered']
    #allocation10 [shape = 'u8[8192]{0}', space=vmem, size = 0x2000, scoped, tag = 'input window, operand 3, single buffered']
    #allocation11 [shape = 's32[1]{0}', space=sflag, size = 0x4, scoped, tag = 'scoped memory for tpu_custom_call.1']
    #allocation12 [shape = 'u8[512]{0}', space=vmem, size = 0x400, scoped, tag = 'input window, operand 4, single buffered']
    #allocation13 [shape = 'u8[512]{0}', space=vmem, size = 0x400, scoped, tag = 'input window, operand 5, single buffered']
    #allocation14 [shape = 's32[1]{0}', space=sflag, size = 0x4, scoped, tag = 'scoped memory for tpu_custom_call.1']
    #allocation15 [shape = 'u8[512]{0}', space=vmem, size = 0x400, scoped, tag = 'input window, operand 6, single buffered']
    #allocation16 [shape = 'u8[512]{0}', space=vmem, size = 0x400, scoped, tag = 'input window, operand 7, single buffered']
    #allocation17 [shape = 's32[1]{0}', space=sflag, size = 0x4, scoped, tag = 'scoped memory for tpu_custom_call.1']
    #allocation18 [shape = 'u8[512]{0}', space=vmem, size = 0x400, scoped, tag = 'input window, operand 8, single buffered']
    #allocation19 [shape = 'u8[65536]{0}', space=vmem, size = 0x10000, scoped, tag = 'input window, operand 9, single buffered']
    #allocation20 [shape = 's32[1]{0}', space=sflag, size = 0x4, scoped, tag = 'scoped memory for tpu_custom_call.1']
    #allocation21 [shape = 'u8[2048]{0}', space=vmem, size = 0x800, scoped, tag = 'input window, operand 10, single buffered']
    #allocation22 [shape = 'u8[98304]{0}', space=vmem, size = 0x18000, scoped, tag = 'input window, operand 11, single buffered']
    #allocation23 [shape = 's32[1]{0}', space=sflag, size = 0x4, scoped, tag = 'scoped memory for tpu_custom_call.1']
    #allocation24 [shape = 'u8[65536]{0}', space=vmem, size = 0x10000, scoped, tag = 'input window, operand 12, single buffered']
    #allocation25 [shape = 'u8[8192]{0}', space=vmem, size = 0x2000, scoped, tag = 'output window, operand 0']
    %18 = vsyncpa [#allocation5], 0
    %s19 = scalar_lea.sflag [#allocation5], 1
    %20 = vsyncpa %s19, 0
    %21 = vsyncpa [#allocation8], 0
    %22 = vsyncpa [#allocation11], 0
    %23 = vsyncpa [#allocation14], 0
    %24 = vsyncpa [#allocation17], 0
    %25 = vsyncpa [#allocation20], 0
    %26 = vsyncpa [#allocation23], 0
    %27 = vsyncpa [#allocation6], 0
    %s28 = scalar_lea.sflag [#allocation6], 1
    %29 = vsyncpa %s28, 0
    loop: start=0, step=1, limit=4
    $region2: #{tpu_custom_call.1} parent=1 // loop_pre_header
      _
    $region3: #{tpu_custom_call.1} parent=1 // loop_header
      %s31 = sphi 0, %s35
      %p32 = scmp.ge.s32.totalorder %s31, 4
      %s41 = sphi 0, %s43
      %s44 = sphi 0, %s41
      %s45 = sphi 0, %s44
      %s61 = sphi 0, %s45
      %s65 = sphi 0, %s65
      %s67 = sphi 0, %s65
      %s68 = sphi 0, %s67
      %s82 = sphi 0, %s68
      %s86 = sphi 0, %s86
      %s88 = sphi 0, %s86
      %s89 = sphi 0, %s88
      %s103 = sphi 0, %s89
      %s107 = sphi 0, %s107
      %s109 = sphi 0, %s107
      %s110 = sphi 0, %s109
      %s124 = sphi 0, %s110
      %s128 = sphi 0, %s128
      %s130 = sphi 0, %s128
      %s131 = sphi 0, %s130
      %s145 = sphi 0, %s131
      %s149 = sphi 0, %s149
      %s151 = sphi 0, %s149
      %s152 = sphi 0, %s151
      %s166 = sphi 0, %s152
      %s170 = sphi 0, %s170
      %s172 = sphi 0, %s170
      %s173 = sphi 0, %s172
      %s187 = sphi 0, %s173
      %s191 = sphi 0, %s191
      %s193 = sphi 0, %s191
      %s194 = sphi 0, %s193
      %s208 = sphi 0, %s194
      %s212 = sphi 0, %s212
      %s214 = sphi 0, %s212
      %s215 = sphi 0, %s214
      %s229 = sphi 0, %s215
      %s233 = sphi 0, %s233
      %s235 = sphi 0, %s233
      %s236 = sphi 0, %s235
      %s250 = sphi 0, %s236
      %s254 = sphi 0, %s254
      %s256 = sphi 0, %s254
      %s257 = sphi 0, %s256
      %s271 = sphi 0, %s257
      %s275 = sphi 0, %s275
      %s277 = sphi 0, %s275
      %s278 = sphi 0, %s277
      %s292 = sphi 0, %s278
      %s296 = sphi 0, %s296
      %s298 = sphi 0, %s296
      %s299 = sphi 0, %s298
      %s313 = sphi 0, %s299
      %s319 = sphi 0, %s321
      %s322 = sphi 0, %s319
      %s323 = sphi 0, %s322
      %s339 = sphi 0, %s323
    $region4: #{tpu_custom_call.1} parent=1 // loop_header_branch
      %34 = sbr.rel (%p32) target = $region8
    $region5: #{tpu_custom_call.1} parent=1 // loop_body
      %s36 = ssub.s32 %s31, 1
      %s37 = ssub.s32 %s31, 2
      %s38 = sadd.s32 %s31, 1
      %s39 = ssub.s32 %s31, %s38
      %p40 = scmp.eq.s32.totalorder %s39, 0
      %s42 = sadd.s32 %s41, 1
      %s43 = scalar_select %p40, %s41, %s42
      %p46 = pneg %p40
      %p47 = scmp.eq.s32.totalorder %s31, 1
      %p48 = por %p46, %p47
      %p49 = scmp.ne.s32.totalorder %s41, %s44
      %p50 = scmp.eq.s32.totalorder %s31, 0
      %p51 = por %p49, %p50
      %p52 = scmp.ne.s32.totalorder %s41, %s44
      %p53 = scmp.eq.s32.totalorder %s36, 1
      %p54 = por %p52, %p53
      %p55 = scmp.ne.s32.totalorder %s44, %s45
      %p56 = scmp.eq.s32.totalorder %s36, 0
      %p57 = por %p55, %p56
      %p58 = scmp.ne.s32.totalorder %s44, %s45
      %p59 = scmp.eq.s32.totalorder %s37, 1
      %p60 = por %p58, %p59
      %p62 = scmp.ne.s32.totalorder %s45, %s61
      %p63 = scmp.eq.s32.totalorder %s37, 0
      %p64 = por %p62, %p63
      %s66 = sadd.s32 %s65, 1
      %p69 = scmp.eq.s32.totalorder %s31, 1
      %p70 = scmp.ne.s32.totalorder %s65, %s67
      %p71 = scmp.eq.s32.totalorder %s31, 0
      %p72 = por %p70, %p71
      %p73 = scmp.ne.s32.totalorder %s65, %s67
      %p74 = scmp.eq.s32.totalorder %s36, 1
      %p75 = por %p73, %p74
      %p76 = scmp.ne.s32.totalorder %s67, %s68
      %p77 = scmp.eq.s32.totalorder %s36, 0
      %p78 = por %p76, %p77
      %p79 = scmp.ne.s32.totalorder %s67, %s68
      %p80 = scmp.eq.s32.totalorder %s37, 1
      %p81 = por %p79, %p80
      %p83 = scmp.ne.s32.totalorder %s68, %s82
      %p84 = scmp.eq.s32.totalorder %s37, 0
      %p85 = por %p83, %p84
      %s87 = sadd.s32 %s86, 1
      %p90 = scmp.eq.s32.totalorder %s31, 1
      %p91 = scmp.ne.s32.totalorder %s86, %s88
      %p92 = scmp.eq.s32.totalorder %s31, 0
      %p93 = por %p91, %p92
      %p94 = scmp.ne.s32.totalorder %s86, %s88
      %p95 = scmp.eq.s32.totalorder %s36, 1
      %p96 = por %p94, %p95
      %p97 = scmp.ne.s32.totalorder %s88, %s89
      %p98 = scmp.eq.s32.totalorder %s36, 0
      %p99 = por %p97, %p98
      %p100 = scmp.ne.s32.totalorder %s88, %s89
      %p101 = scmp.eq.s32.totalorder %s37, 1
      %p102 = por %p100, %p101
      %p104 = scmp.ne.s32.totalorder %s89, %s103
      %p105 = scmp.eq.s32.totalorder %s37, 0
      %p106 = por %p104, %p105
      %s108 = sadd.s32 %s107, 1
      %p111 = scmp.eq.s32.totalorder %s31, 1
      %p112 = scmp.ne.s32.totalorder %s107, %s109
      %p113 = scmp.eq.s32.totalorder %s31, 0
      %p114 = por %p112, %p113
      %p115 = scmp.ne.s32.totalorder %s107, %s109
      %p116 = scmp.eq.s32.totalorder %s36, 1
      %p117 = por %p115, %p116
      %p118 = scmp.ne.s32.totalorder %s109, %s110
      %p119 = scmp.eq.s32.totalorder %s36, 0
      %p120 = por %p118, %p119
      %p121 = scmp.ne.s32.totalorder %s109, %s110
      %p122 = scmp.eq.s32.totalorder %s37, 1
      %p123 = por %p121, %p122
      %p125 = scmp.ne.s32.totalorder %s110, %s124
      %p126 = scmp.eq.s32.totalorder %s37, 0
      %p127 = por %p125, %p126
      %s129 = sadd.s32 %s128, 1
      %p132 = scmp.eq.s32.totalorder %s31, 1
      %p133 = scmp.ne.s32.totalorder %s128, %s130
      %p134 = scmp.eq.s32.totalorder %s31, 0
      %p135 = por %p133, %p134
      %p136 = scmp.ne.s32.totalorder %s128, %s130
      %p137 = scmp.eq.s32.totalorder %s36, 1
      %p138 = por %p136, %p137
      %p139 = scmp.ne.s32.totalorder %s130, %s131
      %p140 = scmp.eq.s32.totalorder %s36, 0
      %p141 = por %p139, %p140
      %p142 = scmp.ne.s32.totalorder %s130, %s131
      %p143 = scmp.eq.s32.totalorder %s37, 1
      %p144 = por %p142, %p143
      %p146 = scmp.ne.s32.totalorder %s131, %s145
      %p147 = scmp.eq.s32.totalorder %s37, 0
      %p148 = por %p146, %p147
      %s150 = sadd.s32 %s149, 1
      %p153 = scmp.eq.s32.totalorder %s31, 1
      %p154 = scmp.ne.s32.totalorder %s149, %s151
      %p155 = scmp.eq.s32.totalorder %s31, 0
      %p156 = por %p154, %p155
      %p157 = scmp.ne.s32.totalorder %s149, %s151
      %p158 = scmp.eq.s32.totalorder %s36, 1
      %p159 = por %p157, %p158
      %p160 = scmp.ne.s32.totalorder %s151, %s152
      %p161 = scmp.eq.s32.totalorder %s36, 0
      %p162 = por %p160, %p161
      %p163 = scmp.ne.s32.totalorder %s151, %s152
      %p164 = scmp.eq.s32.totalorder %s37, 1
      %p165 = por %p163, %p164
      %p167 = scmp.ne.s32.totalorder %s152, %s166
      %p168 = scmp.eq.s32.totalorder %s37, 0
      %p169 = por %p167, %p168
      %s171 = sadd.s32 %s170, 1
      %p174 = scmp.eq.s32.totalorder %s31, 1
      %p175 = scmp.ne.s32.totalorder %s170, %s172
      %p176 = scmp.eq.s32.totalorder %s31, 0
      %p177 = por %p175, %p176
      %p178 = scmp.ne.s32.totalorder %s170, %s172
      %p179 = scmp.eq.s32.totalorder %s36, 1
      %p180 = por %p178, %p179
      %p181 = scmp.ne.s32.totalorder %s172, %s173
      %p182 = scmp.eq.s32.totalorder %s36, 0
      %p183 = por %p181, %p182
      %p184 = scmp.ne.s32.totalorder %s172, %s173
      %p185 = scmp.eq.s32.totalorder %s37, 1
      %p186 = por %p184, %p185
      %p188 = scmp.ne.s32.totalorder %s173, %s187
      %p189 = scmp.eq.s32.totalorder %s37, 0
      %p190 = por %p188, %p189
      %s192 = sadd.s32 %s191, 1
      %p195 = scmp.eq.s32.totalorder %s31, 1
      %p196 = scmp.ne.s32.totalorder %s191, %s193
      %p197 = scmp.eq.s32.totalorder %s31, 0
      %p198 = por %p196, %p197
      %p199 = scmp.ne.s32.totalorder %s191, %s193
      %p200 = scmp.eq.s32.totalorder %s36, 1
      %p201 = por %p199, %p200
      %p202 = scmp.ne.s32.totalorder %s193, %s194
      %p203 = scmp.eq.s32.totalorder %s36, 0
      %p204 = por %p202, %p203
      %p205 = scmp.ne.s32.totalorder %s193, %s194
      %p206 = scmp.eq.s32.totalorder %s37, 1
      %p207 = por %p205, %p206
      %p209 = scmp.ne.s32.totalorder %s194, %s208
      %p210 = scmp.eq.s32.totalorder %s37, 0
      %p211 = por %p209, %p210
      %s213 = sadd.s32 %s212, 1
      %p216 = scmp.eq.s32.totalorder %s31, 1
      %p217 = scmp.ne.s32.totalorder %s212, %s214
      %p218 = scmp.eq.s32.totalorder %s31, 0
      %p219 = por %p217, %p218
      %p220 = scmp.ne.s32.totalorder %s212, %s214
      %p221 = scmp.eq.s32.totalorder %s36, 1
      %p222 = por %p220, %p221
      %p223 = scmp.ne.s32.totalorder %s214, %s215
      %p224 = scmp.eq.s32.totalorder %s36, 0
      %p225 = por %p223, %p224
      %p226 = scmp.ne.s32.totalorder %s214, %s215
      %p227 = scmp.eq.s32.totalorder %s37, 1
      %p228 = por %p226, %p227
      %p230 = scmp.ne.s32.totalorder %s215, %s229
      %p231 = scmp.eq.s32.totalorder %s37, 0
      %p232 = por %p230, %p231
      %s234 = sadd.s32 %s233, 1
      %p237 = scmp.eq.s32.totalorder %s31, 1
      %p238 = scmp.ne.s32.totalorder %s233, %s235
      %p239 = scmp.eq.s32.totalorder %s31, 0
      %p240 = por %p238, %p239
      %p241 = scmp.ne.s32.totalorder %s233, %s235
      %p242 = scmp.eq.s32.totalorder %s36, 1
      %p243 = por %p241, %p242
      %p244 = scmp.ne.s32.totalorder %s235, %s236
      %p245 = scmp.eq.s32.totalorder %s36, 0
      %p246 = por %p244, %p245
      %p247 = scmp.ne.s32.totalorder %s235, %s236
      %p248 = scmp.eq.s32.totalorder %s37, 1
      %p249 = por %p247, %p248
      %p251 = scmp.ne.s32.totalorder %s236, %s250
      %p252 = scmp.eq.s32.totalorder %s37, 0
      %p253 = por %p251, %p252
      %s255 = sadd.s32 %s254, 1
      %p258 = scmp.eq.s32.totalorder %s31, 1
      %p259 = scmp.ne.s32.totalorder %s254, %s256
      %p260 = scmp.eq.s32.totalorder %s31, 0
      %p261 = por %p259, %p260
      %p262 = scmp.ne.s32.totalorder %s254, %s256
      %p263 = scmp.eq.s32.totalorder %s36, 1
      %p264 = por %p262, %p263
      %p265 = scmp.ne.s32.totalorder %s256, %s257
      %p266 = scmp.eq.s32.totalorder %s36, 0
      %p267 = por %p265, %p266
      %p268 = scmp.ne.s32.totalorder %s256, %s257
      %p269 = scmp.eq.s32.totalorder %s37, 1
      %p270 = por %p268, %p269
      %p272 = scmp.ne.s32.totalorder %s257, %s271
      %p273 = scmp.eq.s32.totalorder %s37, 0
      %p274 = por %p272, %p273
      %s276 = sadd.s32 %s275, 1
      %p279 = scmp.eq.s32.totalorder %s31, 1
      %p280 = scmp.ne.s32.totalorder %s275, %s277
      %p281 = scmp.eq.s32.totalorder %s31, 0
      %p282 = por %p280, %p281
      %p283 = scmp.ne.s32.totalorder %s275, %s277
      %p284 = scmp.eq.s32.totalorder %s36, 1
      %p285 = por %p283, %p284
      %p286 = scmp.ne.s32.totalorder %s277, %s278
      %p287 = scmp.eq.s32.totalorder %s36, 0
      %p288 = por %p286, %p287
      %p289 = scmp.ne.s32.totalorder %s277, %s278
      %p290 = scmp.eq.s32.totalorder %s37, 1
      %p291 = por %p289, %p290
      %p293 = scmp.ne.s32.totalorder %s278, %s292
      %p294 = scmp.eq.s32.totalorder %s37, 0
      %p295 = por %p293, %p294
      %s297 = sadd.s32 %s296, 1
      %p300 = scmp.eq.s32.totalorder %s31, 1
      %p301 = scmp.ne.s32.totalorder %s296, %s298
      %p302 = scmp.eq.s32.totalorder %s31, 0
      %p303 = por %p301, %p302
      %p304 = scmp.ne.s32.totalorder %s296, %s298
      %p305 = scmp.eq.s32.totalorder %s36, 1
      %p306 = por %p304, %p305
      %p307 = scmp.ne.s32.totalorder %s298, %s299
      %p308 = scmp.eq.s32.totalorder %s36, 0
      %p309 = por %p307, %p308
      %p310 = scmp.ne.s32.totalorder %s298, %s299
      %p311 = scmp.eq.s32.totalorder %s37, 1
      %p312 = por %p310, %p311
      %p314 = scmp.ne.s32.totalorder %s299, %s313
      %p315 = scmp.eq.s32.totalorder %s37, 0
      %p316 = por %p314, %p315
      %s317 = ssub.s32 %s31, %s38
      %p318 = scmp.eq.s32.totalorder %s317, 0
      %s320 = sadd.s32 %s319, 1
      %s321 = scalar_select %p318, %s319, %s320
      %p324 = pneg %p318
      %p325 = scmp.eq.s32.totalorder %s31, 1
      %p326 = por %p324, %p325
      %p327 = scmp.ne.s32.totalorder %s319, %s322
      %p328 = scmp.eq.s32.totalorder %s31, 0
      %p329 = por %p327, %p328
      %p330 = scmp.ne.s32.totalorder %s319, %s322
      %p331 = scmp.eq.s32.totalorder %s36, 1
      %p332 = por %p330, %p331
      %p333 = scmp.ne.s32.totalorder %s322, %s323
      %p334 = scmp.eq.s32.totalorder %s36, 0
      %p335 = por %p333, %p334
      %p336 = scmp.ne.s32.totalorder %s322, %s323
      %p337 = scmp.eq.s32.totalorder %s37, 1
      %p338 = por %p336, %p337
      %p340 = scmp.ne.s32.totalorder %s323, %s339
      %p341 = scmp.eq.s32.totalorder %s37, 0
      %p342 = por %p340, %p341
      %p343 = scmp.le.s32.totalorder 1, %s31
      %p344 = scmp.lt.s32.totalorder %s31, 3
      %p345 = pnand %p343, %p344
      %p346 = pneg %p345
      // Predicated region
      $region9: #{tpu_custom_call.1} parent=5 // pred_check
        _
      $region10: #{tpu_custom_call.1} parent=5 // pred_check_branch
        %348 = sbr.rel (%p345) target = $region12
      $region11: #{tpu_custom_call.1} parent=5 // pred_region
        %s349 = ssub.s32 %s31, 1
        // Predicated region
        $region13: #{tpu_custom_call.1} parent=11 // pred_check
          %p350 = pneg %p78
        $region14: #{tpu_custom_call.1} parent=11 // pred_check_branch
          %352 = sbr.rel (%p350) target = $region16
        $region15: #{tpu_custom_call.1} parent=11 // pred_region
          %s354 = ssub.s32 256, 256
          %355 = vsyncadd [#allocation8], %s354
          %s356 = sshll.u32 [#allocation7], 4
          %s357 = int_to_ptr.vmem [resolvable:$true] %s356
          %362 = dma.hbm_to_vmem [thread:$0]  %s1, 256, %s357, [#allocation8], 64, 64, 4
        $region16: #{tpu_custom_call.1} parent=11 // pred_fallthru
          _
        // Predicated region
        $region17: #{tpu_custom_call.1} parent=11 // pred_check
          %p363 = pneg %p99
        $region18: #{tpu_custom_call.1} parent=11 // pred_check_branch
          %365 = sbr.rel (%p363) target = $region20
        $region19: #{tpu_custom_call.1} parent=11 // pred_region
          %s367 = ssub.s32 16, 16
          %368 = vsyncadd [#allocation8], %s367
          %s370 = sshll.u32 [#allocation9], 4
          %s371 = int_to_ptr.vmem [resolvable:$true] %s370
          %373 = dma.hbm_to_vmem [thread:$0]  %s2, 16, %s371, [#allocation8]
        $region20: #{tpu_custom_call.1} parent=11 // pred_fallthru
          _
        // Predicated region
        $region21: #{tpu_custom_call.1} parent=11 // pred_check
          %p374 = pneg %p120
        $region22: #{tpu_custom_call.1} parent=11 // pred_check_branch
          %376 = sbr.rel (%p374) target = $region24
        $region23: #{tpu_custom_call.1} parent=11 // pred_region
          %s378 = ssub.s32 256, 256
          %379 = vsyncadd [#allocation11], %s378
          %s380 = sshll.u32 [#allocation10], 4
          %s381 = int_to_ptr.vmem [resolvable:$true] %s380
          %386 = dma.hbm_to_vmem [thread:$0]  %s3, 256, %s381, [#allocation11], 64, 64, 4
        $region24: #{tpu_custom_call.1} parent=11 // pred_fallthru
          _
        // Predicated region
        $region25: #{tpu_custom_call.1} parent=11 // pred_check
          %p387 = pneg %p141
        $region26: #{tpu_custom_call.1} parent=11 // pred_check_branch
          %389 = sbr.rel (%p387) target = $region28
        $region27: #{tpu_custom_call.1} parent=11 // pred_region
          %s391 = ssub.s32 16, 16
          %392 = vsyncadd [#allocation11], %s391
          %s394 = sshll.u32 [#allocation12], 4
          %s395 = int_to_ptr.vmem [resolvable:$true] %s394
          %397 = dma.hbm_to_vmem [thread:$0]  %s4, 16, %s395, [#allocation11]
        $region28: #{tpu_custom_call.1} parent=11 // pred_fallthru
          _
        // Predicated region
        $region29: #{tpu_custom_call.1} parent=11 // pred_check
          %p398 = pneg %p162
        $region30: #{tpu_custom_call.1} parent=11 // pred_check_branch
          %400 = sbr.rel (%p398) target = $region32
        $region31: #{tpu_custom_call.1} parent=11 // pred_region
          %s402 = ssub.s32 16, 16
          %403 = vsyncadd [#allocation14], %s402
          %s405 = sshll.u32 [#allocation13], 4
          %s406 = int_to_ptr.vmem [resolvable:$true] %s405
          %408 = dma.hbm_to_vmem [thread:$0]  %s5, 16, %s406, [#allocation14]
        $region32: #{tpu_custom_call.1} parent=11 // pred_fallthru
          _
        // Predicated region
        $region33: #{tpu_custom_call.1} parent=11 // pred_check
          %p409 = pneg %p183
        $region34: #{tpu_custom_call.1} parent=11 // pred_check_branch
          %411 = sbr.rel (%p409) target = $region36
        $region35: #{tpu_custom_call.1} parent=11 // pred_region
          %s413 = ssub.s32 16, 16
          %414 = vsyncadd [#allocation14], %s413
          %s416 = sshll.u32 [#allocation15], 4
          %s417 = int_to_ptr.vmem [resolvable:$true] %s416
          %419 = dma.hbm_to_vmem [thread:$0]  %s6, 16, %s417, [#allocation14]
        $region36: #{tpu_custom_call.1} parent=11 // pred_fallthru
          _
        // Predicated region
        $region37: #{tpu_custom_call.1} parent=11 // pred_check
          %p420 = pneg %p204
        $region38: #{tpu_custom_call.1} parent=11 // pred_check_branch
          %422 = sbr.rel (%p420) target = $region40
        $region39: #{tpu_custom_call.1} parent=11 // pred_region
          %s424 = ssub.s32 16, 16
          %425 = vsyncadd [#allocation17], %s424
          %s427 = sshll.u32 [#allocation16], 4
          %s428 = int_to_ptr.vmem [resolvable:$true] %s427
          %430 = dma.hbm_to_vmem [thread:$0]  %s7, 16, %s428, [#allocation17]
        $region40: #{tpu_custom_call.1} parent=11 // pred_fallthru
          _
        // Predicated region
        $region41: #{tpu_custom_call.1} parent=11 // pred_check
          %p431 = pneg %p225
        $region42: #{tpu_custom_call.1} parent=11 // pred_check_branch
          %433 = sbr.rel (%p431) target = $region44
        $region43: #{tpu_custom_call.1} parent=11 // pred_region
          %s435 = ssub.s32 16, 16
          %436 = vsyncadd [#allocation17], %s435
          %s438 = sshll.u32 [#allocation18], 4
          %s439 = int_to_ptr.vmem [resolvable:$true] %s438
          %441 = dma.hbm_to_vmem [thread:$0]  %s8, 16, %s439, [#allocation17]
        $region44: #{tpu_custom_call.1} parent=11 // pred_fallthru
          _
        // Predicated region
        $region45: #{tpu_custom_call.1} parent=11 // pred_check
          %p442 = pneg %p246
        $region46: #{tpu_custom_call.1} parent=11 // pred_check_branch
          %444 = sbr.rel (%p442) target = $region48
        $region47: #{tpu_custom_call.1} parent=11 // pred_region
          %s446 = ssub.s32 2048, 2048
          %447 = vsyncadd [#allocation20], %s446
          %s448 = sshll.u32 [#allocation19], 4
          %s449 = int_to_ptr.vmem [resolvable:$true] %s448
          %454 = dma.hbm_to_vmem [thread:$0]  %s9, 2048, %s449, [#allocation20], 256, 256, 16
        $region48: #{tpu_custom_call.1} parent=11 // pred_fallthru
          _
        // Predicated region
        $region49: #{tpu_custom_call.1} parent=11 // pred_check
          %p455 = pneg %p267
        $region50: #{tpu_custom_call.1} parent=11 // pred_check_branch
          %457 = sbr.rel (%p455) target = $region52
        $region51: #{tpu_custom_call.1} parent=11 // pred_region
          %s459 = ssub.s32 64, 64
          %460 = vsyncadd [#allocation20], %s459
          %s462 = sshll.u32 [#allocation21], 4
          %s463 = int_to_ptr.vmem [resolvable:$true] %s462
          %465 = dma.hbm_to_vmem [thread:$0]  %s10, 64, %s463, [#allocation20]
        $region52: #{tpu_custom_call.1} parent=11 // pred_fallthru
          _
        // Predicated region
        $region53: #{tpu_custom_call.1} parent=11 // pred_check
          %p466 = pneg %p288
        $region54: #{tpu_custom_call.1} parent=11 // pred_check_branch
          %468 = sbr.rel (%p466) target = $region56
        $region55: #{tpu_custom_call.1} parent=11 // pred_region
          %s470 = ssub.s32 3072, 3072
          %471 = vsyncadd [#allocation23], %s470
          %s472 = sshll.u32 [#allocation22], 4
          %s473 = int_to_ptr.vmem [resolvable:$true] %s472
          %478 = dma.hbm_to_vmem [thread:$0]  %s11, 3072, %s473, [#allocation23], 192, 192, 12
        $region56: #{tpu_custom_call.1} parent=11 // pred_fallthru
          _
        // Predicated region
        $region57: #{tpu_custom_call.1} parent=11 // pred_check
          %p479 = pneg %p309
        $region58: #{tpu_custom_call.1} parent=11 // pred_check_branch
          %481 = sbr.rel (%p479) target = $region60
        $region59: #{tpu_custom_call.1} parent=11 // pred_region
          %s483 = ssub.s32 2048, 2048
          %484 = vsyncadd [#allocation23], %s483
          %s485 = sshll.u32 [#allocation24], 4
          %s486 = int_to_ptr.vmem [resolvable:$true] %s485
          %491 = dma.hbm_to_vmem [thread:$0]  %s12, 2048, %s486, [#allocation23], 64, 64, 4
        $region60: #{tpu_custom_call.1} parent=11 // pred_fallthru
          _
      $region12: #{tpu_custom_call.1} parent=5 // pred_fallthru
        _
      %p492 = scmp.lt.s32.totalorder %s31, 2
      // Predicated region
      $region61: #{tpu_custom_call.1} parent=5 // pred_check
        %p493 = pneg %p492
      $region62: #{tpu_custom_call.1} parent=5 // pred_check_branch
        %495 = sbr.rel (%p493) target = $region64
      $region63: #{tpu_custom_call.1} parent=5 // pred_region
        // Predicated region
        $region65: #{tpu_custom_call.1} parent=63 // pred_check
          %p496 = pneg %p51
        $region66: #{tpu_custom_call.1} parent=63 // pred_check_branch
          %498 = sbr.rel (%p496) target = $region68
        $region67: #{tpu_custom_call.1} parent=63 // pred_region
          %s499 = sand.u32 %s41, 1
          %s500 = scalar_lea.sflag [#allocation5], %s499
          %s501 = sand.u32 %s41, 1
          %s502 = smul.addr %s501, 8
          %s503 = scalar_lea.vmem [#allocation4], %s502
          %s505 = ssub.s32 128, 128
          %506 = vsyncadd %s500, %s505
          %s507 = smul.addr %s31, 128
          %s508 = scalar_lea.hbm %s0, %s507
          %s510 = sshll.u32 %s503, 4
          %s511 = int_to_ptr.vmem [resolvable:$true] %s510
          %513 = dma.hbm_to_vmem [thread:$0]  %s508, 128, %s511, %s500
        $region68: #{tpu_custom_call.1} parent=63 // pred_fallthru
          _
      $region64: #{tpu_custom_call.1} parent=5 // pred_fallthru
        _
      %p514 = scmp.le.s32.totalorder 1, %s31
      %p515 = scmp.lt.s32.totalorder %s31, 3
      %p516 = pnand %p514, %p515
      %p517 = pneg %p516
      // Predicated region
      $region69: #{tpu_custom_call.1} parent=5 // pred_check
        _
      $region70: #{tpu_custom_call.1} parent=5 // pred_check_branch
        %519 = sbr.rel (%p516) target = $region72
      $region71: #{tpu_custom_call.1} parent=5 // pred_region
        %s520 = ssub.s32 %s31, 1
        %s521 = sand.u32 %s44, 1
        %s522 = scalar_lea.sflag [#allocation5], %s521
        %s523 = sand.u32 %s44, 1
        %s524 = smul.addr %s523, 8
        %s525 = scalar_lea.vmem [#allocation4], %s524
        // Predicated region
        $region73: #{tpu_custom_call.1} parent=71 // pred_check
          %p526 = pneg %p57
        $region74: #{tpu_custom_call.1} parent=71 // pred_check_branch
          %528 = sbr.rel (%p526) target = $region76
        $region75: #{tpu_custom_call.1} parent=71 // pred_region
          %529 = dma.done %s522, 128
        $region76: #{tpu_custom_call.1} parent=71 // pred_fallthru
          _
        // Predicated region
        $region77: #{tpu_custom_call.1} parent=71 // pred_check
          %p530 = pneg %p78
        $region78: #{tpu_custom_call.1} parent=71 // pred_check_branch
          %532 = sbr.rel (%p530) target = $region80
        $region79: #{tpu_custom_call.1} parent=71 // pred_region
          %533 = dma.done [#allocation8], 256
        $region80: #{tpu_custom_call.1} parent=71 // pred_fallthru
          _
        // Predicated region
        $region81: #{tpu_custom_call.1} parent=71 // pred_check
          %p534 = pneg %p99
        $region82: #{tpu_custom_call.1} parent=71 // pred_check_branch
          %536 = sbr.rel (%p534) target = $region84
        $region83: #{tpu_custom_call.1} parent=71 // pred_region
          %537 = dma.done [#allocation8], 16
        $region84: #{tpu_custom_call.1} parent=71 // pred_fallthru
          _
        // Predicated region
        $region85: #{tpu_custom_call.1} parent=71 // pred_check
          %p538 = pneg %p120
        $region86: #{tpu_custom_call.1} parent=71 // pred_check_branch
          %540 = sbr.rel (%p538) target = $region88
        $region87: #{tpu_custom_call.1} parent=71 // pred_region
          %541 = dma.done [#allocation11], 256
        $region88: #{tpu_custom_call.1} parent=71 // pred_fallthru
          _
        // Predicated region
        $region89: #{tpu_custom_call.1} parent=71 // pred_check
          %p542 = pneg %p141
        $region90: #{tpu_custom_call.1} parent=71 // pred_check_branch
          %544 = sbr.rel (%p542) target = $region92
        $region91: #{tpu_custom_call.1} parent=71 // pred_region
          %545 = dma.done [#allocation11], 16
        $region92: #{tpu_custom_call.1} parent=71 // pred_fallthru
          _
        // Predicated region
        $region93: #{tpu_custom_call.1} parent=71 // pred_check
          %p546 = pneg %p162
        $region94: #{tpu_custom_call.1} parent=71 // pred_check_branch
          %548 = sbr.rel (%p546) target = $region96
        $region95: #{tpu_custom_call.1} parent=71 // pred_region
          %549 = dma.done [#allocation14], 16
        $region96: #{tpu_custom_call.1} parent=71 // pred_fallthru
          _
        // Predicated region
        $region97: #{tpu_custom_call.1} parent=71 // pred_check
          %p550 = pneg %p183
        $region98: #{tpu_custom_call.1} parent=71 // pred_check_branch
          %552 = sbr.rel (%p550) target = $region100
        $region99: #{tpu_custom_call.1} parent=71 // pred_region
          %553 = dma.done [#allocation14], 16
        $region100: #{tpu_custom_call.1} parent=71 // pred_fallthru
          _
        // Predicated region
        $region101: #{tpu_custom_call.1} parent=71 // pred_check
          %p554 = pneg %p204
        $region102: #{tpu_custom_call.1} parent=71 // pred_check_branch
          %556 = sbr.rel (%p554) target = $region104
        $region103: #{tpu_custom_call.1} parent=71 // pred_region
          %557 = dma.done [#allocation17], 16
        $region104: #{tpu_custom_call.1} parent=71 // pred_fallthru
          _
        // Predicated region
        $region105: #{tpu_custom_call.1} parent=71 // pred_check
          %p558 = pneg %p225
        $region106: #{tpu_custom_call.1} parent=71 // pred_check_branch
          %560 = sbr.rel (%p558) target = $region108
        $region107: #{tpu_custom_call.1} parent=71 // pred_region
          %561 = dma.done [#allocation17], 16
        $region108: #{tpu_custom_call.1} parent=71 // pred_fallthru
          _
        // Predicated region
        $region109: #{tpu_custom_call.1} parent=71 // pred_check
          %p562 = pneg %p246
        $region110: #{tpu_custom_call.1} parent=71 // pred_check_branch
          %564 = sbr.rel (%p562) target = $region112
        $region111: #{tpu_custom_call.1} parent=71 // pred_region
          %565 = dma.done [#allocation20], 2048
        $region112: #{tpu_custom_call.1} parent=71 // pred_fallthru
          _
        // Predicated region
        $region113: #{tpu_custom_call.1} parent=71 // pred_check
          %p566 = pneg %p267
        $region114: #{tpu_custom_call.1} parent=71 // pred_check_branch
          %568 = sbr.rel (%p566) target = $region116
        $region115: #{tpu_custom_call.1} parent=71 // pred_region
          %569 = dma.done [#allocation20], 64
        $region116: #{tpu_custom_call.1} parent=71 // pred_fallthru
          _
        // Predicated region
        $region117: #{tpu_custom_call.1} parent=71 // pred_check
          %p570 = pneg %p288
        $region118: #{tpu_custom_call.1} parent=71 // pred_check_branch
          %572 = sbr.rel (%p570) target = $region120
        $region119: #{tpu_custom_call.1} parent=71 // pred_region
          %573 = dma.done [#allocation23], 3072
        $region120: #{tpu_custom_call.1} parent=71 // pred_fallthru
          _
        // Predicated region
        $region121: #{tpu_custom_call.1} parent=71 // pred_check
          %p574 = pneg %p309
        $region122: #{tpu_custom_call.1} parent=71 // pred_check_branch
          %576 = sbr.rel (%p574) target = $region124
        $region123: #{tpu_custom_call.1} parent=71 // pred_region
          %577 = dma.done [#allocation23], 2048
        $region124: #{tpu_custom_call.1} parent=71 // pred_fallthru
          _
        %s578 = sand.u32 %s44, 1
        %s579 = scalar_lea.sflag [#allocation5], %s578
        %s580 = sand.u32 %s44, 1
        %s581 = smul.addr %s580, 8
        %s582 = scalar_lea.vmem [#allocation4], %s581
        %p583 = pneg %p57
        %p584 = pneg %p54
        %p585 = pneg %p78
        %p586 = pneg %p75
        %p587 = pneg %p99
        %p588 = pneg %p96
        %p589 = pneg %p120
        %p590 = pneg %p117
        %p591 = pneg %p141
        %p592 = pneg %p138
        %p593 = pneg %p162
        %p594 = pneg %p159
        %p595 = pneg %p183
        %p596 = pneg %p180
        %p597 = pneg %p204
        %p598 = pneg %p201
        %p599 = pneg %p225
        %p600 = pneg %p222
        %p601 = pneg %p246
        %p602 = pneg %p243
        %p603 = pneg %p267
        %p604 = pneg %p264
        %p605 = pneg %p288
        %p606 = pneg %p285
        %p607 = pneg %p309
        %p608 = pneg %p306
        %p609 = pneg %p335
        %p610 = pneg %p332
        %s611 = sand.u32 %s322, 1
        %s612 = scalar_lea.sflag [#allocation6], %s611
        %s613 = sand.u32 %s322, 1
        %s614 = smul.addr %s613, 8
        %s615 = scalar_lea.vmem [#allocation25], %s614
        %v617 = vld [vmem:[%s525] sm:$0xff]
        %v618 = vpack.c.bf16 %v617, %v617
        %v619 = vld [vmem:[#allocation7] sm:$0xf]
        %v620 = vld [vmem:[#allocation7 + $0x4] sm:$0xf]
        %v621 = vld [vmem:[#allocation7 + $0x8] sm:$0xf]
        %v622 = vld [vmem:[#allocation7 + $0xc] sm:$0xf]
        %v623 = vld [vmem:[#allocation9] sm:$0x1]
        %v625 = vlaneseq
        %v626 = vshrl.u32 %v625, 7
        %v627 = vsub.s32 0, %v626
        %v628 = vrot.slane %v623, %v627
        %v634 = vunpack.c.l.b16 %v619
        %v635 = vunpack.c.l.b16 %v620
        %v636 = vunpack.c.l.b16 %v621
        %v637 = vunpack.c.l.b16 %v622
        %v638 = vpack.c.b16 %v635, %v634
        %v639 = vpack.c.b16 %v637, %v636
        %vm642 = vcmask 261120
        %v644 = vsel %vm642, %v618, 0
        %646 = vmatprep.subr.bf16.mxu0 0
        %647 = vmatpush1.bf16.msra.mxu0 %v638
        %648 = vmatprep.subr.bf16.mxu0 0
        %649 = vmatpush1.bf16.msra.mxu0 %v639
        %650 = vmatprep.subr.bf16.mxu0 0
        %651 = vmatpush1.bf16.msra.mxu0 0
        %652 = vmatprep.subr.bf16.mxu0 0
        %653 = vmatpush1.bf16.msra.mxu0 0
        %654 = vmatprep.subr.bf16.mxu0 0
        %655 = vmatpush1.bf16.msra.mxu0 0
        %656 = vmatprep.subr.bf16.mxu0 0
        %657 = vmatpush1.bf16.msra.mxu0 0
        %658 = vmatprep.subr.bf16.mxu0 0
        %659 = vmatpush1.bf16.msra.mxu0 0
        %660 = vmatprep.subr.bf16.mxu0 0
        %661 = vmatpush1.bf16.msra.mxu0 0
        %662 = vmatprep.subr.bf16.mxu0 0
        %663 = vmatpush1.bf16.msra.mxu0 0
        %664 = vmatprep.subr.bf16.mxu0 0
        %665 = vmatpush1.bf16.msra.mxu0 0
        %666 = vmatprep.subr.bf16.mxu0 0
        %667 = vmatpush1.bf16.msra.mxu0 0
        %668 = vmatprep.subr.bf16.mxu0 0
        %669 = vmatpush1.bf16.msra.mxu0 0
        %670 = vmatprep.subr.bf16.mxu0 0
        %671 = vmatpush1.bf16.msra.mxu0 0
        %672 = vmatprep.subr.bf16.mxu0 0
        %673 = vmatpush1.bf16.msra.mxu0 0
        %674 = vmatprep.subr.bf16.mxu0 0
        %675 = vmatpush1.bf16.msra.mxu0 0
        %676 = vmatprep.subr.bf16.mxu0 0
        %677 = vmatpush1.bf16.msra.mxu0 0
        %678 = vmatprep.mubr.bf16.mxu0 0
        %679 = vmatmul.mubr.bf16.gmra.mrb[0].mxu0 %v644
        %v680 = vpop.f32.mrb[0].mxu0
        %v681 = vadd.f32 %v628, %v680
        %v682 = vpop.f32.mrb[0].mxu0
        %v683 = vpop.f32.mrb[0].mxu0
        %v684 = vpop.f32.mrb[0].mxu0
        %685 = vdwg.mxu0
        %v686 = vpack.c.bf16 %v681, %v681
        %vm687 = vcmask 781312
        %688 = vst.msk [vmem:[#allocation2] sm:$0xf] %vm687, %v686
        %v689 = vlaneseq
        %v690 = vshrl.u32 %v689, 7
        %v691 = vlaneseq
        %v692 = vand.u32 %v691, 127
        %vm693 = vcmp.gt.s32.totalorder %v692, %v690
        %v694 = vld [vmem:[#allocation2] sm:$0xf]
        %v696 = vunpack.c.l.b16 %v694
        %v697 = vpack.c.b16 %v696, %v696
        %698 = vrot.lane.b32.xlu0 %v697, 96
        %v699 = vpop.permute.xlu0 %698
        %vm700 = vcmask 64512
        %v702 = vsel %vm700, %v694, 0
        %v705 = vsel %vm700, %v699, 0
        %707 = vmatprep.subr.bf16.mxu0 0
        %708 = vmatpush1.bf16.xpose.msra.mxu0 %v705
        %709 = vmatprep.subr.bf16.mxu0 0
        %710 = vmatpush1.bf16.xpose.msra.mxu0 0
        %711 = vmatprep.subr.bf16.mxu0 0
        %712 = vmatpush1.bf16.xpose.msra.mxu0 0
        %713 = vmatprep.subr.bf16.mxu0 0
        %714 = vmatpush1.bf16.xpose.msra.mxu0 0
        %715 = vmatprep.subr.bf16.mxu0 0
        %716 = vmatpush1.bf16.xpose.msra.mxu0 0
        %717 = vmatprep.subr.bf16.mxu0 0
        %718 = vmatpush1.bf16.xpose.msra.mxu0 0
        %719 = vmatprep.subr.bf16.mxu0 0
        %720 = vmatpush1.bf16.xpose.msra.mxu0 0
        %721 = vmatprep.subr.bf16.mxu0 0
        %722 = vmatpush1.bf16.xpose.msra.mxu0 0
        %723 = vmatprep.subr.bf16.mxu0 0
        %724 = vmatpush1.bf16.xpose.msra.mxu0 0
        %725 = vmatprep.subr.bf16.mxu0 0
        %726 = vmatpush1.bf16.xpose.msra.mxu0 0
        %727 = vmatprep.subr.bf16.mxu0 0
        %728 = vmatpush1.bf16.xpose.msra.mxu0 0
        %729 = vmatprep.subr.bf16.mxu0 0
        %730 = vmatpush1.bf16.xpose.msra.mxu0 0
        %731 = vmatprep.subr.bf16.mxu0 0
        %732 = vmatpush1.bf16.xpose.msra.mxu0 0
        %733 = vmatprep.subr.bf16.mxu0 0
        %734 = vmatpush1.bf16.xpose.msra.mxu0 0
        %735 = vmatprep.subr.bf16.mxu0 0
        %736 = vmatpush1.bf16.xpose.msra.mxu0 0
        %737 = vmatprep.subr.bf16.mxu0 0
        %738 = vmatpush1.bf16.xpose.msra.mxu0 0
        %739 = vmatprep.mubr.bf16.mxu0 0
        %740 = vmatmul.mubr.bf16.gmra.mrb[0].mxu0 %v702
        %v741 = vpop.f32.mrb[0].mxu0
        %v742 = vadd.f32 0.0, %v741
        %v743 = vpop.f32.mrb[0].mxu0
        %v744 = vpop.f32.mrb[0].mxu0
        %v745 = vpop.f32.mrb[0].mxu0
        %746 = vdwg.mxu0
        %v747 = vsel %vm693, -1e+30, %v742
        %v748 = vsel %vm700, %v747, -inf
        %749 = vmax.xlane.f32.xlu0 %v748
        %v750 = vpop.xlane.xlu0 %749
        %v751 = vsub.f32 %v747, %v750
        %v752 = vmul.f32 %v751, 1.442695
        %v753 = vpow.pop %v752
        %v754 = vsel %vm700, %v753, 0.0
        %755 = vadd.xlane.f32.xlu0 %v754
        %v756 = vpop.xlane.xlu0 %755
        %v757 = vpack.c.bf16 %v753, %v753
        %758 = vrot.lane.b32.xlu0 %v697, 64
        %v759 = vpop.permute.xlu0 %758
        %v761 = vsel %vm700, %v757, 0
        %vm763 = vcmask 1043456
        %v765 = vsel %vm763, %v759, 0
        %767 = vmatprep.subr.bf16.mxu0 0
        %768 = vmatpush1.bf16.msra.mxu0 %v765
        %769 = vmatprep.subr.bf16.mxu0 0
        %770 = vmatpush1.bf16.msra.mxu0 0
        %771 = vmatprep.subr.bf16.mxu0 0
        %772 = vmatpush1.bf16.msra.mxu0 0
        %773 = vmatprep.subr.bf16.mxu0 0
        %774 = vmatpush1.bf16.msra.mxu0 0
        %775 = vmatprep.subr.bf16.mxu0 0
        %776 = vmatpush1.bf16.msra.mxu0 0
        %777 = vmatprep.subr.bf16.mxu0 0
        %778 = vmatpush1.bf16.msra.mxu0 0
        %779 = vmatprep.subr.bf16.mxu0 0
        %780 = vmatpush1.bf16.msra.mxu0 0
        %781 = vmatprep.subr.bf16.mxu0 0
        %782 = vmatpush1.bf16.msra.mxu0 0
        %783 = vmatprep.subr.bf16.mxu0 0
        %784 = vmatpush1.bf16.msra.mxu0 0
        %785 = vmatprep.subr.bf16.mxu0 0
        %786 = vmatpush1.bf16.msra.mxu0 0
        %787 = vmatprep.subr.bf16.mxu0 0
        %788 = vmatpush1.bf16.msra.mxu0 0
        %789 = vmatprep.subr.bf16.mxu0 0
        %790 = vmatpush1.bf16.msra.mxu0 0
        %791 = vmatprep.subr.bf16.mxu0 0
        %792 = vmatpush1.bf16.msra.mxu0 0
        %793 = vmatprep.subr.bf16.mxu0 0
        %794 = vmatpush1.bf16.msra.mxu0 0
        %795 = vmatprep.subr.bf16.mxu0 0
        %796 = vmatpush1.bf16.msra.mxu0 0
        %797 = vmatprep.subr.bf16.mxu0 0
        %798 = vmatpush1.bf16.msra.mxu0 0
        %799 = vmatprep.mubr.bf16.mxu0 0
        %800 = vmatmul.mubr.bf16.gmra.mrb[0].mxu0 %v761
        %v801 = vpop.f32.mrb[0].mxu0
        %v802 = vadd.f32 0.0, %v801
        %v803 = vpop.f32.mrb[0].mxu0
        %v804 = vpop.f32.mrb[0].mxu0
        %v805 = vpop.f32.mrb[0].mxu0
        %806 = vdwg.mxu0
        %v807 = vrcp.pop %v756
        %v808 = vmul.f32 %v802, %v807
        %v809 = vpack.c.bf16 %v808, %v808
        %vm810 = vcmask 60416
        %811 = vst.msk [vmem:[#allocation3] sm:$0xf] %vm810, %v809
        %v812 = vld [vmem:[#allocation2] sm:$0xf]
        %v814 = vunpack.c.l.b16 %v812
        %v815 = vpack.c.b16 %v814, %v814
        %816 = vrot.lane.b32.xlu0 %v815, 120
        %v817 = vpop.permute.xlu0 %816
        %818 = vrot.lane.b32.xlu0 %v815, 88
        %v819 = vpop.permute.xlu0 %818
        %v821 = vsel %vm700, %v817, 0
        %v824 = vsel %vm700, %v819, 0
        %826 = vmatprep.subr.bf16.mxu0 0
        %827 = vmatpush1.bf16.xpose.msra.mxu0 %v824
        %828 = vmatprep.subr.bf16.mxu0 0
        %829 = vmatpush1.bf16.xpose.msra.mxu0 0
        %830 = vmatprep.subr.bf16.mxu0 0
        %831 = vmatpush1.bf16.xpose.msra.mxu0 0
        %832 = vmatprep.subr.bf16.mxu0 0
        %833 = vmatpush1.bf16.xpose.msra.mxu0 0
        %834 = vmatprep.subr.bf16.mxu0 0
        %835 = vmatpush1.bf16.xpose.msra.mxu0 0
        %836 = vmatprep.subr.bf16.mxu0 0
        %837 = vmatpush1.bf16.xpose.msra.mxu0 0
        %838 = vmatprep.subr.bf16.mxu0 0
        %839 = vmatpush1.bf16.xpose.msra.mxu0 0
        %840 = vmatprep.subr.bf16.mxu0 0
        %841 = vmatpush1.bf16.xpose.msra.mxu0 0
        %842 = vmatprep.subr.bf16.mxu0 0
        %843 = vmatpush1.bf16.xpose.msra.mxu0 0
        %844 = vmatprep.subr.bf16.mxu0 0
        %845 = vmatpush1.bf16.xpose.msra.mxu0 0
        %846 = vmatprep.subr.bf16.mxu0 0
        %847 = vmatpush1.bf16.xpose.msra.mxu0 0
        %848 = vmatprep.subr.bf16.mxu0 0
        %849 = vmatpush1.bf16.xpose.msra.mxu0 0
        %850 = vmatprep.subr.bf16.mxu0 0
        %851 = vmatpush1.bf16.xpose.msra.mxu0 0
        %852 = vmatprep.subr.bf16.mxu0 0
        %853 = vmatpush1.bf16.xpose.msra.mxu0 0
        %854 = vmatprep.subr.bf16.mxu0 0
        %855 = vmatpush1.bf16.xpose.msra.mxu0 0
        %856 = vmatprep.subr.bf16.mxu0 0
        %857 = vmatpush1.bf16.xpose.msra.mxu0 0
        %858 = vmatprep.mubr.bf16.mxu0 0
        %859 = vmatmul.mubr.bf16.gmra.mrb[0].mxu0 %v821
        %v860 = vpop.f32.mrb[0].mxu0
        %v861 = vadd.f32 0.0, %v860
        %v862 = vpop.f32.mrb[0].mxu0
        %v863 = vpop.f32.mrb[0].mxu0
        %v864 = vpop.f32.mrb[0].mxu0
        %865 = vdwg.mxu0
        %v866 = vsel %vm693, -1e+30, %v861
        %v867 = vsel %vm700, %v866, -inf
        %868 = vmax.xlane.f32.xlu0 %v867
        %v869 = vpop.xlane.xlu0 %868
        %v870 = vsub.f32 %v866, %v869
        %v871 = vmul.f32 %v870, 1.442695
        %v872 = vpow.pop %v871
        %v873 = vsel %vm700, %v872, 0.0
        %874 = vadd.xlane.f32.xlu0 %v873
        %v875 = vpop.xlane.xlu0 %874
        %v876 = vpack.c.bf16 %v872, %v872
        %877 = vrot.lane.b32.xlu0 %v815, 56
        %v878 = vpop.permute.xlu0 %877
        %v880 = vsel %vm700, %v876, 0
        %v883 = vsel %vm763, %v878, 0
        %885 = vmatprep.subr.bf16.mxu0 0
        %886 = vmatpush1.bf16.msra.mxu0 %v883
        %887 = vmatprep.subr.bf16.mxu0 0
        %888 = vmatpush1.bf16.msra.mxu0 0
        %889 = vmatprep.subr.bf16.mxu0 0
        %890 = vmatpush1.bf16.msra.mxu0 0
        %891 = vmatprep.subr.bf16.mxu0 0
        %892 = vmatpush1.bf16.msra.mxu0 0
        %893 = vmatprep.subr.bf16.mxu0 0
        %894 = vmatpush1.bf16.msra.mxu0 0
        %895 = vmatprep.subr.bf16.mxu0 0
        %896 = vmatpush1.bf16.msra.mxu0 0
        %897 = vmatprep.subr.bf16.mxu0 0
        %898 = vmatpush1.bf16.msra.mxu0 0
        %899 = vmatprep.subr.bf16.mxu0 0
        %900 = vmatpush1.bf16.msra.mxu0 0
        %901 = vmatprep.subr.bf16.mxu0 0
        %902 = vmatpush1.bf16.msra.mxu0 0
        %903 = vmatprep.subr.bf16.mxu0 0
        %904 = vmatpush1.bf16.msra.mxu0 0
        %905 = vmatprep.subr.bf16.mxu0 0
        %906 = vmatpush1.bf16.msra.mxu0 0
        %907 = vmatprep.subr.bf16.mxu0 0
        %908 = vmatpush1.bf16.msra.mxu0 0
        %909 = vmatprep.subr.bf16.mxu0 0
        %910 = vmatpush1.bf16.msra.mxu0 0
        %911 = vmatprep.subr.bf16.mxu0 0
        %912 = vmatpush1.bf16.msra.mxu0 0
        %913 = vmatprep.subr.bf16.mxu0 0
        %914 = vmatpush1.bf16.msra.mxu0 0
        %915 = vmatprep.subr.bf16.mxu0 0
        %916 = vmatpush1.bf16.msra.mxu0 0
        %917 = vmatprep.mubr.bf16.mxu0 0
        %918 = vmatmul.mubr.bf16.gmra.mrb[0].mxu0 %v880
        %v919 = vpop.f32.mrb[0].mxu0
        %v920 = vadd.f32 0.0, %v919
        %v921 = vpop.f32.mrb[0].mxu0
        %v922 = vpop.f32.mrb[0].mxu0
        %v923 = vpop.f32.mrb[0].mxu0
        %924 = vdwg.mxu0
        %v925 = vrcp.pop %v875
        %v926 = vmul.f32 %v920, %v925
        %v927 = vpack.c.bf16 %v926, %v926
        %v929 = vunpack.c.l.b16 %v927
        %v930 = vpack.c.b16 %v929, %v929
        %931 = vrot.lane.b32.xlu0 %v930, 8
        %v932 = vpop.permute.xlu0 %931
        %vm934 = vcmask 126016
        %935 = vst.msk [vmem:[#allocation3] sm:$0xf] %vm934, %v932
        %v936 = vld [vmem:[#allocation2] sm:$0xf]
        %v938 = vunpack.c.l.b16 %v936
        %v939 = vpack.c.b16 %v938, %v938
        %940 = vrot.lane.b32.xlu0 %v939, 112
        %v941 = vpop.permute.xlu0 %940
        %942 = vrot.lane.b32.xlu0 %v939, 80
        %v943 = vpop.permute.xlu0 %942
        %v945 = vsel %vm700, %v941, 0
        %v948 = vsel %vm700, %v943, 0
        %950 = vmatprep.subr.bf16.mxu0 0
        %951 = vmatpush1.bf16.xpose.msra.mxu0 %v948
        %952 = vmatprep.subr.bf16.mxu0 0
        %953 = vmatpush1.bf16.xpose.msra.mxu0 0
        %954 = vmatprep.subr.bf16.mxu0 0
        %955 = vmatpush1.bf16.xpose.msra.mxu0 0
        %956 = vmatprep.subr.bf16.mxu0 0
        %957 = vmatpush1.bf16.xpose.msra.mxu0 0
        %958 = vmatprep.subr.bf16.mxu0 0
        %959 = vmatpush1.bf16.xpose.msra.mxu0 0
        %960 = vmatprep.subr.bf16.mxu0 0
        %961 = vmatpush1.bf16.xpose.msra.mxu0 0
        %962 = vmatprep.subr.bf16.mxu0 0
        %963 = vmatpush1.bf16.xpose.msra.mxu0 0
        %964 = vmatprep.subr.bf16.mxu0 0
        %965 = vmatpush1.bf16.xpose.msra.mxu0 0
        %966 = vmatprep.subr.bf16.mxu0 0
        %967 = vmatpush1.bf16.xpose.msra.mxu0 0
        %968 = vmatprep.subr.bf16.mxu0 0
        %969 = vmatpush1.bf16.xpose.msra.mxu0 0
        %970 = vmatprep.subr.bf16.mxu0 0
        %971 = vmatpush1.bf16.xpose.msra.mxu0 0
        %972 = vmatprep.subr.bf16.mxu0 0
        %973 = vmatpush1.bf16.xpose.msra.mxu0 0
        %974 = vmatprep.subr.bf16.mxu0 0
        %975 = vmatpush1.bf16.xpose.msra.mxu0 0
        %976 = vmatprep.subr.bf16.mxu0 0
        %977 = vmatpush1.bf16.xpose.msra.mxu0 0
        %978 = vmatprep.subr.bf16.mxu0 0
        %979 = vmatpush1.bf16.xpose.msra.mxu0 0
        %980 = vmatprep.subr.bf16.mxu0 0
        %981 = vmatpush1.bf16.xpose.msra.mxu0 0
        %982 = vmatprep.mubr.bf16.mxu0 0
        %983 = vmatmul.mubr.bf16.gmra.mrb[0].mxu0 %v945
        %v984 = vpop.f32.mrb[0].mxu0
        %v985 = vadd.f32 0.0, %v984
        %v986 = vpop.f32.mrb[0].mxu0
        %v987 = vpop.f32.mrb[0].mxu0
        %v988 = vpop.f32.mrb[0].mxu0
        %989 = vdwg.mxu0
        %v990 = vsel %vm693, -1e+30, %v985
        %v991 = vsel %vm700, %v990, -inf
        %992 = vmax.xlane.f32.xlu0 %v991
        %v993 = vpop.xlane.xlu0 %992
        %v994 = vsub.f32 %v990, %v993
        %v995 = vmul.f32 %v994, 1.442695
        %v996 = vpow.pop %v995
        %v997 = vsel %vm700, %v996, 0.0
        %998 = vadd.xlane.f32.xlu0 %v997
        %v999 = vpop.xlane.xlu0 %998
        %v1000 = vpack.c.bf16 %v996, %v996
        %1001 = vrot.lane.b32.xlu0 %v939, 48
        %v1002 = vpop.permute.xlu0 %1001
        %v1004 = vsel %vm700, %v1000, 0
        %v1007 = vsel %vm763, %v1002, 0
        %1009 = vmatprep.subr.bf16.mxu0 0
        %1010 = vmatpush1.bf16.msra.mxu0 %v1007
        %1011 = vmatprep.subr.bf16.mxu0 0
        %1012 = vmatpush1.bf16.msra.mxu0 0
        %1013 = vmatprep.subr.bf16.mxu0 0
        %1014 = vmatpush1.bf16.msra.mxu0 0
        %1015 = vmatprep.subr.bf16.mxu0 0
        %1016 = vmatpush1.bf16.msra.mxu0 0
        %1017 = vmatprep.subr.bf16.mxu0 0
        %1018 = vmatpush1.bf16.msra.mxu0 0
        %1019 = vmatprep.subr.bf16.mxu0 0
        %1020 = vmatpush1.bf16.msra.mxu0 0
        %1021 = vmatprep.subr.bf16.mxu0 0
        %1022 = vmatpush1.bf16.msra.mxu0 0
        %1023 = vmatprep.subr.bf16.mxu0 0
        %1024 = vmatpush1.bf16.msra.mxu0 0
        %1025 = vmatprep.subr.bf16.mxu0 0
        %1026 = vmatpush1.bf16.msra.mxu0 0
        %1027 = vmatprep.subr.bf16.mxu0 0
        %1028 = vmatpush1.bf16.msra.mxu0 0
        %1029 = vmatprep.subr.bf16.mxu0 0
        %1030 = vmatpush1.bf16.msra.mxu0 0
        %1031 = vmatprep.subr.bf16.mxu0 0
        %1032 = vmatpush1.bf16.msra.mxu0 0
        %1033 = vmatprep.subr.bf16.mxu0 0
        %1034 = vmatpush1.bf16.msra.mxu0 0
        %1035 = vmatprep.subr.bf16.mxu0 0
        %1036 = vmatpush1.bf16.msra.mxu0 0
        %1037 = vmatprep.subr.bf16.mxu0 0
        %1038 = vmatpush1.bf16.msra.mxu0 0
        %1039 = vmatprep.subr.bf16.mxu0 0
        %1040 = vmatpush1.bf16.msra.mxu0 0
        %1041 = vmatprep.mubr.bf16.mxu0 0
        %1042 = vmatmul.mubr.bf16.gmra.mrb[0].mxu0 %v1004
        %v1043 = vpop.f32.mrb[0].mxu0
        %v1044 = vadd.f32 0.0, %v1043
        %v1045 = vpop.f32.mrb[0].mxu0
        %v1046 = vpop.f32.mrb[0].mxu0
        %v1047 = vpop.f32.mrb[0].mxu0
        %1048 = vdwg.mxu0
        %v1049 = vrcp.pop %v999
        %v1050 = vmul.f32 %v1044, %v1049
        %v1051 = vpack.c.bf16 %v1050, %v1050
        %v1053 = vunpack.c.l.b16 %v1051
        %v1054 = vpack.c.b16 %v1053, %v1053
        %1055 = vrot.lane.b32.xlu0 %v1054, 16
        %v1056 = vpop.permute.xlu0 %1055
        %vm1058 = vcmask 191616
        %1059 = vst.msk [vmem:[#allocation3] sm:$0xf] %vm1058, %v1056
        %v1060 = vld [vmem:[#allocation2] sm:$0xf]
        %v1062 = vunpack.c.l.b16 %v1060
        %v1063 = vpack.c.b16 %v1062, %v1062
        %1064 = vrot.lane.b32.xlu0 %v1063, 104
        %v1065 = vpop.permute.xlu0 %1064
        %1066 = vrot.lane.b32.xlu0 %v1063, 72
        %v1067 = vpop.permute.xlu0 %1066
        %v1069 = vsel %vm700, %v1065, 0
        %v1072 = vsel %vm700, %v1067, 0
        %1074 = vmatprep.subr.bf16.mxu0 0
        %1075 = vmatpush1.bf16.xpose.msra.mxu0 %v1072
        %1076 = vmatprep.subr.bf16.mxu0 0
        %1077 = vmatpush1.bf16.xpose.msra.mxu0 0
        %1078 = vmatprep.subr.bf16.mxu0 0
        %1079 = vmatpush1.bf16.xpose.msra.mxu0 0
        %1080 = vmatprep.subr.bf16.mxu0 0
        %1081 = vmatpush1.bf16.xpose.msra.mxu0 0
        %1082 = vmatprep.subr.bf16.mxu0 0
        %1083 = vmatpush1.bf16.xpose.msra.mxu0 0
        %1084 = vmatprep.subr.bf16.mxu0 0
        %1085 = vmatpush1.bf16.xpose.msra.mxu0 0
        %1086 = vmatprep.subr.bf16.mxu0 0
        %1087 = vmatpush1.bf16.xpose.msra.mxu0 0
        %1088 = vmatprep.subr.bf16.mxu0 0
        %1089 = vmatpush1.bf16.xpose.msra.mxu0 0
        %1090 = vmatprep.subr.bf16.mxu0 0
        %1091 = vmatpush1.bf16.xpose.msra.mxu0 0
        %1092 = vmatprep.subr.bf16.mxu0 0
        %1093 = vmatpush1.bf16.xpose.msra.mxu0 0
        %1094 = vmatprep.subr.bf16.mxu0 0
        %1095 = vmatpush1.bf16.xpose.msra.mxu0 0
        %1096 = vmatprep.subr.bf16.mxu0 0
        %1097 = vmatpush1.bf16.xpose.msra.mxu0 0
        %1098 = vmatprep.subr.bf16.mxu0 0
        %1099 = vmatpush1.bf16.xpose.msra.mxu0 0
        %1100 = vmatprep.subr.bf16.mxu0 0
        %1101 = vmatpush1.bf16.xpose.msra.mxu0 0
        %1102 = vmatprep.subr.bf16.mxu0 0
        %1103 = vmatpush1.bf16.xpose.msra.mxu0 0
        %1104 = vmatprep.subr.bf16.mxu0 0
        %1105 = vmatpush1.bf16.xpose.msra.mxu0 0
        %1106 = vmatprep.mubr.bf16.mxu0 0
        %1107 = vmatmul.mubr.bf16.gmra.mrb[0].mxu0 %v1069
        %v1108 = vpop.f32.mrb[0].mxu0
        %v1109 = vadd.f32 0.0, %v1108
        %v1110 = vpop.f32.mrb[0].mxu0
        %v1111 = vpop.f32.mrb[0].mxu0
        %v1112 = vpop.f32.mrb[0].mxu0
        %1113 = vdwg.mxu0
        %v1114 = vsel %vm693, -1e+30, %v1109
        %v1115 = vsel %vm700, %v1114, -inf
        %1116 = vmax.xlane.f32.xlu0 %v1115
        %v1117 = vpop.xlane.xlu0 %1116
        %v1118 = vsub.f32 %v1114, %v1117
        %v1119 = vmul.f32 %v1118, 1.442695
        %v1120 = vpow.pop %v1119
        %v1121 = vsel %vm700, %v1120, 0.0
        %1122 = vadd.xlane.f32.xlu0 %v1121
        %v1123 = vpop.xlane.xlu0 %1122
        %v1124 = vpack.c.bf16 %v1120, %v1120
        %1125 = vrot.lane.b32.xlu0 %v1063, 40
        %v1126 = vpop.permute.xlu0 %1125
        %v1128 = vsel %vm700, %v1124, 0
        %v1131 = vsel %vm763, %v1126, 0
        %1133 = vmatprep.subr.bf16.mxu0 0
        %1134 = vmatpush1.bf16.msra.mxu0 %v1131
        %1135 = vmatprep.subr.bf16.mxu0 0
        %1136 = vmatpush1.bf16.msra.mxu0 0
        %1137 = vmatprep.subr.bf16.mxu0 0
        %1138 = vmatpush1.bf16.msra.mxu0 0
        %1139 = vmatprep.subr.bf16.mxu0 0
        %1140 = vmatpush1.bf16.msra.mxu0 0
        %1141 = vmatprep.subr.bf16.mxu0 0
        %1142 = vmatpush1.bf16.msra.mxu0 0
        %1143 = vmatprep.subr.bf16.mxu0 0
        %1144 = vmatpush1.bf16.msra.mxu0 0
        %1145 = vmatprep.subr.bf16.mxu0 0
        %1146 = vmatpush1.bf16.msra.mxu0 0
        %1147 = vmatprep.subr.bf16.mxu0 0
        %1148 = vmatpush1.bf16.msra.mxu0 0
        %1149 = vmatprep.subr.bf16.mxu0 0
        %1150 = vmatpush1.bf16.msra.mxu0 0
        %1151 = vmatprep.subr.bf16.mxu0 0
        %1152 = vmatpush1.bf16.msra.mxu0 0
        %1153 = vmatprep.subr.bf16.mxu0 0
        %1154 = vmatpush1.bf16.msra.mxu0 0
        %1155 = vmatprep.subr.bf16.mxu0 0
        %1156 = vmatpush1.bf16.msra.mxu0 0
        %1157 = vmatprep.subr.bf16.mxu0 0
        %1158 = vmatpush1.bf16.msra.mxu0 0
        %1159 = vmatprep.subr.bf16.mxu0 0
        %1160 = vmatpush1.bf16.msra.mxu0 0
        %1161 = vmatprep.subr.bf16.mxu0 0
        %1162 = vmatpush1.bf16.msra.mxu0 0
        %1163 = vmatprep.subr.bf16.mxu0 0
        %1164 = vmatpush1.bf16.msra.mxu0 0
        %1165 = vmatprep.mubr.bf16.mxu0 0
        %1166 = vmatmul.mubr.bf16.gmra.mrb[0].mxu0 %v1128
        %v1167 = vpop.f32.mrb[0].mxu0
        %v1168 = vadd.f32 0.0, %v1167
        %v1169 = vpop.f32.mrb[0].mxu0
        %v1170 = vpop.f32.mrb[0].mxu0
        %v1171 = vpop.f32.mrb[0].mxu0
        %1172 = vdwg.mxu0
        %v1173 = vrcp.pop %v1123
        %v1174 = vmul.f32 %v1168, %v1173
        %v1175 = vpack.c.bf16 %v1174, %v1174
        %v1177 = vunpack.c.l.b16 %v1175
        %v1178 = vpack.c.b16 %v1177, %v1177
        %1179 = vrot.lane.b32.xlu0 %v1178, 24
        %v1180 = vpop.permute.xlu0 %1179
        %vm1182 = vcmask 257216
        %1183 = vst.msk [vmem:[#allocation3] sm:$0xf] %vm1182, %v1180
        %v1184 = vld [vmem:[#allocation3] sm:$0xf]
        %v1185 = vld [vmem:[#allocation10] sm:$0xf]
        %v1186 = vld [vmem:[#allocation10 + $0x4] sm:$0xf]
        %v1187 = vld [vmem:[#allocation10 + $0x8] sm:$0xf]
        %v1188 = vld [vmem:[#allocation10 + $0xc] sm:$0xf]
        %v1189 = vld [vmem:[#allocation12] sm:$0x1]
        %v1191 = vlaneseq
        %v1192 = vshrl.u32 %v1191, 7
        %v1193 = vsub.s32 0, %v1192
        %v1194 = vrot.slane %v1189, %v1193
        %v1200 = vunpack.c.l.b16 %v1185
        %v1201 = vunpack.c.l.b16 %v1186
        %v1202 = vunpack.c.l.b16 %v1187
        %v1203 = vunpack.c.l.b16 %v1188
        %v1204 = vpack.c.b16 %v1201, %v1200
        %v1205 = vpack.c.b16 %v1203, %v1202
        %v1209 = vsel %vm642, %v1184, 0
        %1211 = vmatprep.subr.bf16.mxu0 0
        %1212 = vmatpush1.bf16.msra.mxu0 %v1204
        %1213 = vmatprep.subr.bf16.mxu0 0
        %1214 = vmatpush1.bf16.msra.mxu0 %v1205
        %1215 = vmatprep.subr.bf16.mxu0 0
        %1216 = vmatpush1.bf16.msra.mxu0 0
        %1217 = vmatprep.subr.bf16.mxu0 0
        %1218 = vmatpush1.bf16.msra.mxu0 0
        %1219 = vmatprep.subr.bf16.mxu0 0
        %1220 = vmatpush1.bf16.msra.mxu0 0
        %1221 = vmatprep.subr.bf16.mxu0 0
        %1222 = vmatpush1.bf16.msra.mxu0 0
        %1223 = vmatprep.subr.bf16.mxu0 0
        %1224 = vmatpush1.bf16.msra.mxu0 0
        %1225 = vmatprep.subr.bf16.mxu0 0
        %1226 = vmatpush1.bf16.msra.mxu0 0
        %1227 = vmatprep.subr.bf16.mxu0 0
        %1228 = vmatpush1.bf16.msra.mxu0 0
        %1229 = vmatprep.subr.bf16.mxu0 0
        %1230 = vmatpush1.bf16.msra.mxu0 0
        %1231 = vmatprep.subr.bf16.mxu0 0
        %1232 = vmatpush1.bf16.msra.mxu0 0
        %1233 = vmatprep.subr.bf16.mxu0 0
        %1234 = vmatpush1.bf16.msra.mxu0 0
        %1235 = vmatprep.subr.bf16.mxu0 0
        %1236 = vmatpush1.bf16.msra.mxu0 0
        %1237 = vmatprep.subr.bf16.mxu0 0
        %1238 = vmatpush1.bf16.msra.mxu0 0
        %1239 = vmatprep.subr.bf16.mxu0 0
        %1240 = vmatpush1.bf16.msra.mxu0 0
        %1241 = vmatprep.subr.bf16.mxu0 0
        %1242 = vmatpush1.bf16.msra.mxu0 0
        %1243 = vmatprep.mubr.bf16.mxu0 0
        %1244 = vmatmul.mubr.bf16.gmra.mrb[0].mxu0 %v1209
        %v1245 = vpop.f32.mrb[0].mxu0
        %v1246 = vadd.f32 %v1194, %v1245
        %v1247 = vpop.f32.mrb[0].mxu0
        %v1248 = vpop.f32.mrb[0].mxu0
        %v1249 = vpop.f32.mrb[0].mxu0
        %1250 = vdwg.mxu0
        %v1251 = vadd.f32 %v617, %v1246
        %v1252 = vld [vmem:[#allocation13] sm:$0x1]
        %v1253 = vld [vmem:[#allocation15] sm:$0x1]
        %v1254 = vsel %vm642, %v1251, 0.0
        %1255 = vadd.xlane.f32.xlu0 %v1254
        %v1256 = vpop.xlane.xlu0 %1255
        %v1257 = vrcp.pop 32.0
        %v1258 = vmul.f32 %v1256, %v1257
        %v1259 = vsub.f32 %v1251, %v1258
        %v1260 = vmul.f32 %v1259, %v1259
        %v1261 = vsel %vm642, %v1260, 0.0
        %1262 = vadd.xlane.f32.xlu0 %v1261
        %v1263 = vpop.xlane.xlu0 %1262
        %v1264 = vmul.f32 %v1263, %v1257
        %v1265 = vadd.f32 %v1264, 1e-05
        %v1266 = vrsqrt.pop %v1265
        %v1267 = vmul.f32 %v1259, %v1266
        %v1269 = vlaneseq
        %v1270 = vshrl.u32 %v1269, 7
        %v1271 = vsub.s32 0, %v1270
        %v1272 = vrot.slane %v1252, %v1271
        %v1274 = vmul.f32 %v1267, %v1272
        %v1276 = vlaneseq
        %v1277 = vshrl.u32 %v1276, 7
        %v1278 = vsub.s32 0, %v1277
        %v1279 = vrot.slane %v1253, %v1278
        %v1281 = vadd.f32 %v1274, %v1279
        %v1282 = vpack.c.bf16 %v1246, %v1246
        %1284 = vrot.lane.b32.xlu0 %v1282, 32
        %v1285 = vpop.permute.xlu0 %1284
        %v1287 = vsel %vm642, %v618, %v1285
        %v1288 = vld [vmem:[#allocation19] sm:$0xff]
        %v1289 = vld [vmem:[#allocation19 + $0x8] sm:$0xff]
        %v1290 = vld [vmem:[#allocation19 + $0x10] sm:$0xff]
        %v1291 = vld [vmem:[#allocation19 + $0x18] sm:$0xff]
        %v1292 = vld [vmem:[#allocation19 + $0x20] sm:$0xff]
        %v1293 = vld [vmem:[#allocation19 + $0x28] sm:$0xff]
        %v1294 = vld [vmem:[#allocation19 + $0x30] sm:$0xff]
        %v1295 = vld [vmem:[#allocation19 + $0x38] sm:$0xff]
        %v1296 = vld [vmem:[#allocation19 + $0x40] sm:$0xff]
        %v1297 = vld [vmem:[#allocation19 + $0x48] sm:$0xff]
        %v1298 = vld [vmem:[#allocation19 + $0x50] sm:$0xff]
        %v1299 = vld [vmem:[#allocation19 + $0x58] sm:$0xff]
        %v1300 = vld [vmem:[#allocation19 + $0x60] sm:$0xff]
        %v1301 = vld [vmem:[#allocation19 + $0x68] sm:$0xff]
        %v1302 = vld [vmem:[#allocation19 + $0x70] sm:$0xff]
        %v1303 = vld [vmem:[#allocation19 + $0x78] sm:$0xff]
        %v1304 = vld [vmem:[#allocation21] sm:$0xf]
        %v1306 = vlaneseq
        %v1307 = vshrl.u32 %v1306, 7
        %v1308 = vsub.s32 0, %v1307
        %v1309 = vrot.slane %v1304, %v1308
        %v1310 = vlaneseq
        %v1311 = vshrl.u32 %v1310, 7
        %v1312 = vsub.s32 1, %v1311
        %v1313 = vrot.slane %v1304, %v1312
        %v1314 = vlaneseq
        %v1315 = vshrl.u32 %v1314, 7
        %v1316 = vsub.s32 2, %v1315
        %v1317 = vrot.slane %v1304, %v1316
        %v1318 = vlaneseq
        %v1319 = vshrl.u32 %v1318, 7
        %v1320 = vsub.s32 3, %v1319
        %v1321 = vrot.slane %v1304, %v1320
        %v1342 = vunpack.c.l.b16 %v1288
        %v1343 = vunpack.c.h.b16 %v1288
        %v1344 = vunpack.c.l.b16 %v1289
        %v1345 = vunpack.c.h.b16 %v1289
        %v1346 = vunpack.c.l.b16 %v1290
        %v1347 = vunpack.c.h.b16 %v1290
        %v1348 = vunpack.c.l.b16 %v1291
        %v1349 = vunpack.c.h.b16 %v1291
        %v1350 = vunpack.c.l.b16 %v1292
        %v1351 = vunpack.c.h.b16 %v1292
        %v1352 = vunpack.c.l.b16 %v1293
        %v1353 = vunpack.c.h.b16 %v1293
        %v1354 = vunpack.c.l.b16 %v1294
        %v1355 = vunpack.c.h.b16 %v1294
        %v1356 = vunpack.c.l.b16 %v1295
        %v1357 = vunpack.c.h.b16 %v1295
        %v1358 = vunpack.c.l.b16 %v1296
        %v1359 = vunpack.c.h.b16 %v1296
        %v1360 = vunpack.c.l.b16 %v1297
        %v1361 = vunpack.c.h.b16 %v1297
        %v1362 = vunpack.c.l.b16 %v1298
        %v1363 = vunpack.c.h.b16 %v1298
        %v1364 = vunpack.c.l.b16 %v1299
        %v1365 = vunpack.c.h.b16 %v1299
        %v1366 = vunpack.c.l.b16 %v1300
        %v1367 = vunpack.c.h.b16 %v1300
        %v1368 = vunpack.c.l.b16 %v1301
        %v1369 = vunpack.c.h.b16 %v1301
        %v1370 = vunpack.c.l.b16 %v1302
        %v1371 = vunpack.c.h.b16 %v1302
        %v1372 = vunpack.c.l.b16 %v1303
        %v1373 = vunpack.c.h.b16 %v1303
        %v1374 = vpack.c.b16 %v1346, %v1342
        %v1375 = vpack.c.b16 %v1347, %v1343
        %v1376 = vpack.c.b16 %v1348, %v1344
        %v1377 = vpack.c.b16 %v1349, %v1345
        %v1378 = vpack.c.b16 %v1354, %v1350
        %v1379 = vpack.c.b16 %v1355, %v1351
        %v1380 = vpack.c.b16 %v1356, %v1352
        %v1381 = vpack.c.b16 %v1357, %v1353
        %v1382 = vpack.c.b16 %v1362, %v1358
        %v1383 = vpack.c.b16 %v1363, %v1359
        %v1384 = vpack.c.b16 %v1364, %v1360
        %v1385 = vpack.c.b16 %v1365, %v1361
        %v1386 = vpack.c.b16 %v1370, %v1366
        %v1387 = vpack.c.b16 %v1371, %v1367
        %v1388 = vpack.c.b16 %v1372, %v1368
        %v1389 = vpack.c.b16 %v1373, %v1369
        %vm1406 = vcmask 523264
        %v1407 = vsel %vm1406, %v1287, 0
        %1409 = vmatprep.subr.bf16.mxu0 %v1375
        %1410 = vmatpush1.bf16.msra.mxu0 %v1374
        %1411 = vmatprep.subr.bf16.mxu0 %v1379
        %1412 = vmatpush1.bf16.msra.mxu0 %v1378
        %1413 = vmatprep.subr.bf16.mxu0 %v1383
        %1414 = vmatpush1.bf16.msra.mxu0 %v1382
        %1415 = vmatprep.subr.bf16.mxu0 %v1387
        %1416 = vmatpush1.bf16.msra.mxu0 %v1386
        %1417 = vmatprep.subr.bf16.mxu0 0
        %1418 = vmatpush1.bf16.msra.mxu0 0
        %1419 = vmatprep.subr.bf16.mxu0 0
        %1420 = vmatpush1.bf16.msra.mxu0 0
        %1421 = vmatprep.subr.bf16.mxu0 0
        %1422 = vmatpush1.bf16.msra.mxu0 0
        %1423 = vmatprep.subr.bf16.mxu0 0
        %1424 = vmatpush1.bf16.msra.mxu0 0
        %1425 = vmatprep.subr.bf16.mxu0 0
        %1426 = vmatpush1.bf16.msra.mxu0 0
        %1427 = vmatprep.subr.bf16.mxu0 0
        %1428 = vmatpush1.bf16.msra.mxu0 0
        %1429 = vmatprep.subr.bf16.mxu0 0
        %1430 = vmatpush1.bf16.msra.mxu0 0
        %1431 = vmatprep.subr.bf16.mxu0 0
        %1432 = vmatpush1.bf16.msra.mxu0 0
        %1433 = vmatprep.subr.bf16.mxu0 0
        %1434 = vmatpush1.bf16.msra.mxu0 0
        %1435 = vmatprep.subr.bf16.mxu0 0
        %1436 = vmatpush1.bf16.msra.mxu0 0
        %1437 = vmatprep.subr.bf16.mxu0 0
        %1438 = vmatpush1.bf16.msra.mxu0 0
        %1439 = vmatprep.subr.bf16.mxu0 0
        %1440 = vmatpush1.bf16.msra.mxu0 0
        %1441 = vmatprep.mubr.bf16.mxu0 0
        %1442 = vmatmul.mubr.bf16.gmra.mrb[0].mxu0 %v1407
        %v1443 = vpop.f32.mrb[0].mxu0
        %v1444 = vadd.f32 %v1309, %v1443
        %v1445 = vpop.f32.mrb[0].mxu0
        %v1446 = vadd.f32 %v1313, %v1445
        %v1447 = vpop.f32.mrb[0].mxu0
        %v1448 = vpop.f32.mrb[0].mxu0
        %1449 = vdwg.mxu0
        %1450 = vmatprep.subr.bf16.mxu0 %v1377
        %1451 = vmatpush1.bf16.msra.mxu0 %v1376
        %1452 = vmatprep.subr.bf16.mxu0 %v1381
        %1453 = vmatpush1.bf16.msra.mxu0 %v1380
        %1454 = vmatprep.subr.bf16.mxu0 %v1385
        %1455 = vmatpush1.bf16.msra.mxu0 %v1384
        %1456 = vmatprep.subr.bf16.mxu0 %v1389
        %1457 = vmatpush1.bf16.msra.mxu0 %v1388
        %1458 = vmatprep.subr.bf16.mxu0 0
        %1459 = vmatpush1.bf16.msra.mxu0 0
        %1460 = vmatprep.subr.bf16.mxu0 0
        %1461 = vmatpush1.bf16.msra.mxu0 0
        %1462 = vmatprep.subr.bf16.mxu0 0
        %1463 = vmatpush1.bf16.msra.mxu0 0
        %1464 = vmatprep.subr.bf16.mxu0 0
        %1465 = vmatpush1.bf16.msra.mxu0 0
        %1466 = vmatprep.subr.bf16.mxu0 0
        %1467 = vmatpush1.bf16.msra.mxu0 0
        %1468 = vmatprep.subr.bf16.mxu0 0
        %1469 = vmatpush1.bf16.msra.mxu0 0
        %1470 = vmatprep.subr.bf16.mxu0 0
        %1471 = vmatpush1.bf16.msra.mxu0 0
        %1472 = vmatprep.subr.bf16.mxu0 0
        %1473 = vmatpush1.bf16.msra.mxu0 0
        %1474 = vmatprep.subr.bf16.mxu0 0
        %1475 = vmatpush1.bf16.msra.mxu0 0
        %1476 = vmatprep.subr.bf16.mxu0 0
        %1477 = vmatpush1.bf16.msra.mxu0 0
        %1478 = vmatprep.subr.bf16.mxu0 0
        %1479 = vmatpush1.bf16.msra.mxu0 0
        %1480 = vmatprep.subr.bf16.mxu0 0
        %1481 = vmatpush1.bf16.msra.mxu0 0
        %1482 = vmatprep.mubr.bf16.mxu0 0
        %1483 = vmatmul.mubr.bf16.gmra.mrb[0].mxu0 %v1407
        %v1484 = vpop.f32.mrb[0].mxu0
        %v1485 = vadd.f32 %v1317, %v1484
        %v1486 = vpop.f32.mrb[0].mxu0
        %v1487 = vadd.f32 %v1321, %v1486
        %v1488 = vpop.f32.mrb[0].mxu0
        %v1489 = vpop.f32.mrb[0].mxu0
        %1490 = vdwg.mxu0
        %vm1491 = vcmp.ge.f32.partialorder %v1444, 0.0
        %v1492 = vmul.f32 %v1444, 0.01
        %v1493 = vsel %vm1491, %v1444, %v1492
        %v1494 = vpack.c.bf16 %v1493, %v1493
        %v1495 = vld [vmem:[#allocation22] sm:$0xff]
        %v1496 = vld [vmem:[#allocation22 + $0x8] sm:$0xf]
        %v1497 = vld [vmem:[#allocation22 + $0xc] sm:$0xff]
        %v1498 = vld [vmem:[#allocation22 + $0x14] sm:$0xf]
        %v1499 = vld [vmem:[#allocation22 + $0x18] sm:$0xff]
        %v1500 = vld [vmem:[#allocation22 + $0x20] sm:$0xf]
        %v1501 = vld [vmem:[#allocation22 + $0x24] sm:$0xff]
        %v1502 = vld [vmem:[#allocation22 + $0x2c] sm:$0xf]
        %v1503 = vld [vmem:[#allocation22 + $0x30] sm:$0xff]
        %v1504 = vld [vmem:[#allocation22 + $0x38] sm:$0xf]
        %v1505 = vld [vmem:[#allocation22 + $0x3c] sm:$0xff]
        %v1506 = vld [vmem:[#allocation22 + $0x44] sm:$0xf]
        %v1507 = vld [vmem:[#allocation22 + $0x48] sm:$0xff]
        %v1508 = vld [vmem:[#allocation22 + $0x50] sm:$0xf]
        %v1509 = vld [vmem:[#allocation22 + $0x54] sm:$0xff]
        %v1510 = vld [vmem:[#allocation22 + $0x5c] sm:$0xf]
        %v1511 = vld [vmem:[#allocation22 + $0x60] sm:$0xff]
        %v1512 = vld [vmem:[#allocation22 + $0x68] sm:$0xf]
        %v1513 = vld [vmem:[#allocation22 + $0x6c] sm:$0xff]
        %v1514 = vld [vmem:[#allocation22 + $0x74] sm:$0xf]
        %v1515 = vld [vmem:[#allocation22 + $0x78] sm:$0xff]
        %v1516 = vld [vmem:[#allocation22 + $0x80] sm:$0xf]
        %v1517 = vld [vmem:[#allocation22 + $0x84] sm:$0xff]
        %v1518 = vld [vmem:[#allocation22 + $0x8c] sm:$0xf]
        %v1519 = vld [vmem:[#allocation22 + $0x90] sm:$0xff]
        %v1520 = vld [vmem:[#allocation22 + $0x98] sm:$0xf]
        %v1521 = vld [vmem:[#allocation22 + $0x9c] sm:$0xff]
        %v1522 = vld [vmem:[#allocation22 + $0xa4] sm:$0xf]
        %v1523 = vld [vmem:[#allocation22 + $0xa8] sm:$0xff]
        %v1524 = vld [vmem:[#allocation22 + $0xb0] sm:$0xf]
        %v1525 = vld [vmem:[#allocation22 + $0xb4] sm:$0xff]
        %v1526 = vld [vmem:[#allocation22 + $0xbc] sm:$0xf]
        %v1559 = vunpack.c.l.b16 %v1495
        %v1560 = vunpack.c.h.b16 %v1495
        %v1561 = vunpack.c.l.b16 %v1496
        %v1562 = vunpack.c.l.b16 %v1497
        %v1563 = vunpack.c.h.b16 %v1497
        %v1564 = vunpack.c.l.b16 %v1498
        %v1565 = vunpack.c.l.b16 %v1499
        %v1566 = vunpack.c.h.b16 %v1499
        %v1567 = vunpack.c.l.b16 %v1500
        %v1568 = vunpack.c.l.b16 %v1501
        %v1569 = vunpack.c.h.b16 %v1501
        %v1570 = vunpack.c.l.b16 %v1502
        %v1571 = vunpack.c.l.b16 %v1503
        %v1572 = vunpack.c.h.b16 %v1503
        %v1573 = vunpack.c.l.b16 %v1504
        %v1574 = vunpack.c.l.b16 %v1505
        %v1575 = vunpack.c.h.b16 %v1505
        %v1576 = vunpack.c.l.b16 %v1506
        %v1577 = vunpack.c.l.b16 %v1507
        %v1578 = vunpack.c.h.b16 %v1507
        %v1579 = vunpack.c.l.b16 %v1508
        %v1580 = vunpack.c.l.b16 %v1509
        %v1581 = vunpack.c.h.b16 %v1509
        %v1582 = vunpack.c.l.b16 %v1510
        %v1583 = vunpack.c.l.b16 %v1511
        %v1584 = vunpack.c.h.b16 %v1511
        %v1585 = vunpack.c.l.b16 %v1512
        %v1586 = vunpack.c.l.b16 %v1513
        %v1587 = vunpack.c.h.b16 %v1513
        %v1588 = vunpack.c.l.b16 %v1514
        %v1589 = vunpack.c.l.b16 %v1515
        %v1590 = vunpack.c.h.b16 %v1515
        %v1591 = vunpack.c.l.b16 %v1516
        %v1592 = vunpack.c.l.b16 %v1517
        %v1593 = vunpack.c.h.b16 %v1517
        %v1594 = vunpack.c.l.b16 %v1518
        %v1595 = vunpack.c.l.b16 %v1519
        %v1596 = vunpack.c.h.b16 %v1519
        %v1597 = vunpack.c.l.b16 %v1520
        %v1598 = vunpack.c.l.b16 %v1521
        %v1599 = vunpack.c.h.b16 %v1521
        %v1600 = vunpack.c.l.b16 %v1522
        %v1601 = vunpack.c.l.b16 %v1523
        %v1602 = vunpack.c.h.b16 %v1523
        %v1603 = vunpack.c.l.b16 %v1524
        %v1604 = vunpack.c.l.b16 %v1525
        %v1605 = vunpack.c.h.b16 %v1525
        %v1606 = vunpack.c.l.b16 %v1526
        %v1607 = vpack.c.b16 %v1562, %v1559
        %v1608 = vpack.c.b16 %v1563, %v1560
        %v1609 = vpack.c.b16 %v1564, %v1561
        %v1610 = vpack.c.b16 %v1568, %v1565
        %v1611 = vpack.c.b16 %v1569, %v1566
        %v1612 = vpack.c.b16 %v1570, %v1567
        %v1613 = vpack.c.b16 %v1574, %v1571
        %v1614 = vpack.c.b16 %v1575, %v1572
        %v1615 = vpack.c.b16 %v1576, %v1573
        %v1616 = vpack.c.b16 %v1580, %v1577
        %v1617 = vpack.c.b16 %v1581, %v1578
        %v1618 = vpack.c.b16 %v1582, %v1579
        %v1619 = vpack.c.b16 %v1586, %v1583
        %v1620 = vpack.c.b16 %v1587, %v1584
        %v1621 = vpack.c.b16 %v1588, %v1585
        %v1622 = vpack.c.b16 %v1592, %v1589
        %v1623 = vpack.c.b16 %v1593, %v1590
        %v1624 = vpack.c.b16 %v1594, %v1591
        %v1625 = vpack.c.b16 %v1598, %v1595
        %v1626 = vpack.c.b16 %v1599, %v1596
        %v1627 = vpack.c.b16 %v1600, %v1597
        %v1628 = vpack.c.b16 %v1604, %v1601
        %v1629 = vpack.c.b16 %v1605, %v1602
        %v1630 = vpack.c.b16 %v1606, %v1603
        %1655 = vmatprep.subr.bf16.mxu0 %v1608
        %1656 = vmatpush1.bf16.msra.mxu0 %v1607
        %1657 = vmatprep.subr.bf16.mxu0 %v1611
        %1658 = vmatpush1.bf16.msra.mxu0 %v1610
        %1659 = vmatprep.subr.bf16.mxu0 %v1614
        %1660 = vmatpush1.bf16.msra.mxu0 %v1613
        %1661 = vmatprep.subr.bf16.mxu0 %v1617
        %1662 = vmatpush1.bf16.msra.mxu0 %v1616
        %1663 = vmatprep.subr.bf16.mxu0 %v1620
        %1664 = vmatpush1.bf16.msra.mxu0 %v1619
        %1665 = vmatprep.subr.bf16.mxu0 %v1623
        %1666 = vmatpush1.bf16.msra.mxu0 %v1622
        %1667 = vmatprep.subr.bf16.mxu0 %v1626
        %1668 = vmatpush1.bf16.msra.mxu0 %v1625
        %1669 = vmatprep.subr.bf16.mxu0 %v1629
        %1670 = vmatpush1.bf16.msra.mxu0 %v1628
        %1671 = vmatprep.subr.bf16.mxu0 0
        %1672 = vmatpush1.bf16.msra.mxu0 0
        %1673 = vmatprep.subr.bf16.mxu0 0
        %1674 = vmatpush1.bf16.msra.mxu0 0
        %1675 = vmatprep.subr.bf16.mxu0 0
        %1676 = vmatpush1.bf16.msra.mxu0 0
        %1677 = vmatprep.subr.bf16.mxu0 0
        %1678 = vmatpush1.bf16.msra.mxu0 0
        %1679 = vmatprep.subr.bf16.mxu0 0
        %1680 = vmatpush1.bf16.msra.mxu0 0
        %1681 = vmatprep.subr.bf16.mxu0 0
        %1682 = vmatpush1.bf16.msra.mxu0 0
        %1683 = vmatprep.subr.bf16.mxu0 0
        %1684 = vmatpush1.bf16.msra.mxu0 0
        %1685 = vmatprep.subr.bf16.mxu0 0
        %1686 = vmatpush1.bf16.msra.mxu0 0
        %1687 = vmatprep.mubr.bf16.mxu0 0
        %1688 = vmatmul.mubr.bf16.gmra.mrb[0].mxu0 %v1494
        %v1689 = vpop.f32.mrb[0].mxu0
        %v1690 = vadd.f32 0.0, %v1689
        %v1691 = vpop.f32.mrb[0].mxu0
        %v1692 = vadd.f32 0.0, %v1691
        %v1693 = vpop.f32.mrb[0].mxu0
        %v1694 = vpop.f32.mrb[0].mxu0
        %1695 = vdwg.mxu0
        %1696 = vmatprep.subr.bf16.mxu0 0
        %1697 = vmatpush1.bf16.msra.mxu0 %v1609
        %1698 = vmatprep.subr.bf16.mxu0 0
        %1699 = vmatpush1.bf16.msra.mxu0 %v1612
        %1700 = vmatprep.subr.bf16.mxu0 0
        %1701 = vmatpush1.bf16.msra.mxu0 %v1615
        %1702 = vmatprep.subr.bf16.mxu0 0
        %1703 = vmatpush1.bf16.msra.mxu0 %v1618
        %1704 = vmatprep.subr.bf16.mxu0 0
        %1705 = vmatpush1.bf16.msra.mxu0 %v1621
        %1706 = vmatprep.subr.bf16.mxu0 0
        %1707 = vmatpush1.bf16.msra.mxu0 %v1624
        %1708 = vmatprep.subr.bf16.mxu0 0
        %1709 = vmatpush1.bf16.msra.mxu0 %v1627
        %1710 = vmatprep.subr.bf16.mxu0 0
        %1711 = vmatpush1.bf16.msra.mxu0 %v1630
        %1712 = vmatprep.subr.bf16.mxu0 0
        %1713 = vmatpush1.bf16.msra.mxu0 0
        %1714 = vmatprep.subr.bf16.mxu0 0
        %1715 = vmatpush1.bf16.msra.mxu0 0
        %1716 = vmatprep.subr.bf16.mxu0 0
        %1717 = vmatpush1.bf16.msra.mxu0 0
        %1718 = vmatprep.subr.bf16.mxu0 0
        %1719 = vmatpush1.bf16.msra.mxu0 0
        %1720 = vmatprep.subr.bf16.mxu0 0
        %1721 = vmatpush1.bf16.msra.mxu0 0
        %1722 = vmatprep.subr.bf16.mxu0 0
        %1723 = vmatpush1.bf16.msra.mxu0 0
        %1724 = vmatprep.subr.bf16.mxu0 0
        %1725 = vmatpush1.bf16.msra.mxu0 0
        %1726 = vmatprep.subr.bf16.mxu0 0
        %1727 = vmatpush1.bf16.msra.mxu0 0
        %1728 = vmatprep.mubr.bf16.mxu0 0
        %1729 = vmatmul.mubr.bf16.gmra.mrb[0].mxu0 %v1494
        %v1730 = vpop.f32.mrb[0].mxu0
        %v1731 = vadd.f32 0.0, %v1730
        %v1732 = vpop.f32.mrb[0].mxu0
        %v1733 = vpop.f32.mrb[0].mxu0
        %v1734 = vpop.f32.mrb[0].mxu0
        %1735 = vdwg.mxu0
        %v1736 = vadd.f32 %v1446, %v1690
        %v1737 = vadd.f32 %v1485, %v1692
        %vm1738 = vcmp.ge.f32.partialorder %v1736, 0.0
        %vm1739 = vcmp.ge.f32.partialorder %v1737, 0.0
        %v1740 = vmul.f32 %v1736, 0.01
        %v1741 = vmul.f32 %v1737, 0.01
        %v1742 = vsel %vm1738, %v1736, %v1740
        %v1743 = vsel %vm1739, %v1737, %v1741
        %v1744 = vadd.f32 %v1487, %v1731
        %v1745 = vpack.c.bf16 %v1742, %v1742
        %v1746 = vpack.c.bf16 %v1743, %v1743
        %v1747 = vld [vmem:[#allocation24] sm:$0xf]
        %v1748 = vld [vmem:[#allocation24 + $0x4] sm:$0xf]
        %v1749 = vld [vmem:[#allocation24 + $0x8] sm:$0xf]
        %v1750 = vld [vmem:[#allocation24 + $0xc] sm:$0xf]
        %v1751 = vld [vmem:[#allocation24 + $0x10] sm:$0xf]
        %v1752 = vld [vmem:[#allocation24 + $0x14] sm:$0xf]
        %v1753 = vld [vmem:[#allocation24 + $0x18] sm:$0xf]
        %v1754 = vld [vmem:[#allocation24 + $0x1c] sm:$0xf]
        %v1755 = vld [vmem:[#allocation24 + $0x20] sm:$0xf]
        %v1756 = vld [vmem:[#allocation24 + $0x24] sm:$0xf]
        %v1757 = vld [vmem:[#allocation24 + $0x28] sm:$0xf]
        %v1758 = vld [vmem:[#allocation24 + $0x2c] sm:$0xf]
        %v1759 = vld [vmem:[#allocation24 + $0x30] sm:$0xf]
        %v1760 = vld [vmem:[#allocation24 + $0x34] sm:$0xf]
        %v1761 = vld [vmem:[#allocation24 + $0x38] sm:$0xf]
        %v1762 = vld [vmem:[#allocation24 + $0x3c] sm:$0xf]
        %v1763 = vld [vmem:[#allocation24 + $0x40] sm:$0xf]
        %v1764 = vld [vmem:[#allocation24 + $0x44] sm:$0xf]
        %v1765 = vld [vmem:[#allocation24 + $0x48] sm:$0xf]
        %v1766 = vld [vmem:[#allocation24 + $0x4c] sm:$0xf]
        %v1767 = vld [vmem:[#allocation24 + $0x50] sm:$0xf]
        %v1768 = vld [vmem:[#allocation24 + $0x54] sm:$0xf]
        %v1769 = vld [vmem:[#allocation24 + $0x58] sm:$0xf]
        %v1770 = vld [vmem:[#allocation24 + $0x5c] sm:$0xf]
        %v1771 = vld [vmem:[#allocation24 + $0x60] sm:$0xf]
        %v1772 = vld [vmem:[#allocation24 + $0x64] sm:$0xf]
        %v1773 = vld [vmem:[#allocation24 + $0x68] sm:$0xf]
        %v1774 = vld [vmem:[#allocation24 + $0x6c] sm:$0xf]
        %v1775 = vld [vmem:[#allocation24 + $0x70] sm:$0xf]
        %v1776 = vld [vmem:[#allocation24 + $0x74] sm:$0xf]
        %v1777 = vld [vmem:[#allocation24 + $0x78] sm:$0xf]
        %v1778 = vld [vmem:[#allocation24 + $0x7c] sm:$0xf]
        %v1811 = vunpack.c.l.b16 %v1747
        %v1812 = vunpack.c.l.b16 %v1748
        %v1813 = vunpack.c.l.b16 %v1749
        %v1814 = vunpack.c.l.b16 %v1750
        %v1815 = vunpack.c.l.b16 %v1751
        %v1816 = vunpack.c.l.b16 %v1752
        %v1817 = vunpack.c.l.b16 %v1753
        %v1818 = vunpack.c.l.b16 %v1754
        %v1819 = vunpack.c.l.b16 %v1755
        %v1820 = vunpack.c.l.b16 %v1756
        %v1821 = vunpack.c.l.b16 %v1757
        %v1822 = vunpack.c.l.b16 %v1758
        %v1823 = vunpack.c.l.b16 %v1759
        %v1824 = vunpack.c.l.b16 %v1760
        %v1825 = vunpack.c.l.b16 %v1761
        %v1826 = vunpack.c.l.b16 %v1762
        %v1827 = vunpack.c.l.b16 %v1763
        %v1828 = vunpack.c.l.b16 %v1764
        %v1829 = vunpack.c.l.b16 %v1765
        %v1830 = vunpack.c.l.b16 %v1766
        %v1831 = vunpack.c.l.b16 %v1767
        %v1832 = vunpack.c.l.b16 %v1768
        %v1833 = vunpack.c.l.b16 %v1769
        %v1834 = vunpack.c.l.b16 %v1770
        %v1835 = vunpack.c.l.b16 %v1771
        %v1836 = vunpack.c.l.b16 %v1772
        %v1837 = vunpack.c.l.b16 %v1773
        %v1838 = vunpack.c.l.b16 %v1774
        %v1839 = vunpack.c.l.b16 %v1775
        %v1840 = vunpack.c.l.b16 %v1776
        %v1841 = vunpack.c.l.b16 %v1777
        %v1842 = vunpack.c.l.b16 %v1778
        %v1843 = vpack.c.b16 %v1812, %v1811
        %v1844 = vpack.c.b16 %v1814, %v1813
        %v1845 = vpack.c.b16 %v1816, %v1815
        %v1846 = vpack.c.b16 %v1818, %v1817
        %v1847 = vpack.c.b16 %v1820, %v1819
        %v1848 = vpack.c.b16 %v1822, %v1821
        %v1849 = vpack.c.b16 %v1824, %v1823
        %v1850 = vpack.c.b16 %v1826, %v1825
        %v1851 = vpack.c.b16 %v1828, %v1827
        %v1852 = vpack.c.b16 %v1830, %v1829
        %v1853 = vpack.c.b16 %v1832, %v1831
        %v1854 = vpack.c.b16 %v1834, %v1833
        %v1855 = vpack.c.b16 %v1836, %v1835
        %v1856 = vpack.c.b16 %v1838, %v1837
        %v1857 = vpack.c.b16 %v1840, %v1839
        %v1858 = vpack.c.b16 %v1842, %v1841
        %1875 = vmatprep.subr.bf16.mxu0 0
        %1876 = vmatpush1.bf16.msra.mxu0 %v1843
        %1877 = vmatprep.subr.bf16.mxu0 0
        %1878 = vmatpush1.bf16.msra.mxu0 %v1844
        %1879 = vmatprep.subr.bf16.mxu0 0
        %1880 = vmatpush1.bf16.msra.mxu0 %v1845
        %1881 = vmatprep.subr.bf16.mxu0 0
        %1882 = vmatpush1.bf16.msra.mxu0 %v1846
        %1883 = vmatprep.subr.bf16.mxu0 0
        %1884 = vmatpush1.bf16.msra.mxu0 %v1847
        %1885 = vmatprep.subr.bf16.mxu0 0
        %1886 = vmatpush1.bf16.msra.mxu0 %v1848
        %1887 = vmatprep.subr.bf16.mxu0 0
        %1888 = vmatpush1.bf16.msra.mxu0 %v1849
        %1889 = vmatprep.subr.bf16.mxu0 0
        %1890 = vmatpush1.bf16.msra.mxu0 %v1850
        %1891 = vmatprep.subr.bf16.mxu0 0
        %1892 = vmatpush1.bf16.msra.mxu0 %v1851
        %1893 = vmatprep.subr.bf16.mxu0 0
        %1894 = vmatpush1.bf16.msra.mxu0 %v1852
        %1895 = vmatprep.subr.bf16.mxu0 0
        %1896 = vmatpush1.bf16.msra.mxu0 %v1853
        %1897 = vmatprep.subr.bf16.mxu0 0
        %1898 = vmatpush1.bf16.msra.mxu0 %v1854
        %1899 = vmatprep.subr.bf16.mxu0 0
        %1900 = vmatpush1.bf16.msra.mxu0 %v1855
        %1901 = vmatprep.subr.bf16.mxu0 0
        %1902 = vmatpush1.bf16.msra.mxu0 %v1856
        %1903 = vmatprep.subr.bf16.mxu0 0
        %1904 = vmatpush1.bf16.msra.mxu0 %v1857
        %1905 = vmatprep.subr.bf16.mxu0 0
        %1906 = vmatpush1.bf16.msra.mxu0 %v1858
        %1907 = vmatprep.mubr.bf16.mxu0 %v1746
        %1908 = vmatmul.mubr.bf16.gmra.mrb[0].mxu0 %v1745
        %v1909 = vpop.f32.mrb[0].mxu0
        %v1910 = vadd.f32 0.0, %v1909
        %v1911 = vpop.f32.mrb[0].mxu0
        %v1912 = vpop.f32.mrb[0].mxu0
        %v1913 = vpop.f32.mrb[0].mxu0
        %1914 = vdwg.mxu0
        %v1915 = vadd.f32 %v1744, %v1910
        %vm1916 = vcmp.ge.f32.partialorder %v1915, 0.0
        %v1917 = vmul.f32 %v1915, 0.01
        %v1918 = vsel %vm1916, %v1915, %v1917
        %v1919 = vadd.f32 %v1281, %v1918
        %v1920 = vadd.f32 %v1919, %v617
        %v1921 = vld [vmem:[#allocation16] sm:$0x1]
        %v1922 = vld [vmem:[#allocation18] sm:$0x1]
        %v1923 = vsel %vm642, %v1920, 0.0
        %1924 = vadd.xlane.f32.xlu0 %v1923
        %v1925 = vpop.xlane.xlu0 %1924
        %v1926 = vmul.f32 %v1925, %v1257
        %v1927 = vsub.f32 %v1920, %v1926
        %v1928 = vmul.f32 %v1927, %v1927
        %v1929 = vsel %vm642, %v1928, 0.0
        %1930 = vadd.xlane.f32.xlu0 %v1929
        %v1931 = vpop.xlane.xlu0 %1930
        %v1932 = vmul.f32 %v1931, %v1257
        %v1933 = vadd.f32 %v1932, 1e-05
        %v1934 = vrsqrt.pop %v1933
        %v1935 = vmul.f32 %v1927, %v1934
        %v1937 = vlaneseq
        %v1938 = vshrl.u32 %v1937, 7
        %v1939 = vsub.s32 0, %v1938
        %v1940 = vrot.slane %v1921, %v1939
        %v1942 = vmul.f32 %v1935, %v1940
        %v1944 = vlaneseq
        %v1945 = vshrl.u32 %v1944, 7
        %v1946 = vsub.s32 0, %v1945
        %v1947 = vrot.slane %v1922, %v1946
        %v1949 = vadd.f32 %v1942, %v1947
        %1950 = vst.msk [vmem:[%s615] sm:$0xff] %vm642, %v1949
        %s1951 = sand.u32 %s322, 1
        %s1952 = scalar_lea.sflag [#allocation6], %s1951
        %s1953 = sand.u32 %s322, 1
        %s1954 = smul.addr %s1953, 8
        %s1955 = scalar_lea.vmem [#allocation25], %s1954
        // Predicated region
        $region125: #{tpu_custom_call.1} parent=71 // pred_check
          %p1956 = pneg %p332
        $region126: #{tpu_custom_call.1} parent=71 // pred_check_branch
          %1958 = sbr.rel (%p1956) target = $region128
        $region127: #{tpu_custom_call.1} parent=71 // pred_region
          %s1960 = ssub.s32 128, 128
          %1961 = vsyncadd %s1952, %s1960
          %s1962 = smul.addr %s36, 128
          %s1963 = scalar_lea.hbm %s13, %s1962
          %s1965 = sshll.u32 %s1955, 4
          %s1966 = int_to_ptr.vmem [resolvable:$true] %s1965
          %1968 = dma.vmem_to_hbm [thread:$0]  %s1966, 128, %s1963, %s1952
        $region128: #{tpu_custom_call.1} parent=71 // pred_fallthru
          _
      $region72: #{tpu_custom_call.1} parent=5 // pred_fallthru
        _
      %p1969 = scmp.le.s32.totalorder 2, %s31
      // Predicated region
      $region129: #{tpu_custom_call.1} parent=5 // pred_check
        %p1970 = pneg %p1969
      $region130: #{tpu_custom_call.1} parent=5 // pred_check_branch
        %1972 = sbr.rel (%p1970) target = $region132
      $region131: #{tpu_custom_call.1} parent=5 // pred_region
        %s1973 = ssub.s32 %s31, 2
        // Predicated region
        $region133: #{tpu_custom_call.1} parent=131 // pred_check
          %p1974 = pneg %p338
        $region134: #{tpu_custom_call.1} parent=131 // pred_check_branch
          %1976 = sbr.rel (%p1974) target = $region136
        $region135: #{tpu_custom_call.1} parent=131 // pred_region
          %s1977 = sand.u32 %s323, 1
          %s1978 = scalar_lea.sflag [#allocation6], %s1977
          %s1979 = sand.u32 %s323, 1
          %s1980 = smul.addr %s1979, 8
          %s1981 = scalar_lea.vmem [#allocation25], %s1980
          %1982 = dma.done %s1978, 128
        $region136: #{tpu_custom_call.1} parent=131 // pred_fallthru
          _
      $region132: #{tpu_custom_call.1} parent=5 // pred_fallthru
        _
    $region6: #{tpu_custom_call.1} parent=1 // loop_footer
      %s35 = sadd.s32 1, %s31
    $region7: #{tpu_custom_call.1} parent=1 // loop_footer_branch
      %30 = sbr.rel target = $region3
    $region8: #{tpu_custom_call.1} parent=1 // loop_exit
      _
    %1983 = vsyncpa [#allocation5], 1
    %s1984 = scalar_lea.sflag [#allocation5], 1
    %1985 = vsyncpa %s1984, 1
    %1986 = vsyncpa [#allocation8], 1
    %1987 = vsyncpa [#allocation11], 1
    %1988 = vsyncpa [#allocation14], 1
    %1989 = vsyncpa [#allocation17], 1
    %1990 = vsyncpa [#allocation20], 1
    %1991 = vsyncpa [#allocation23], 1
    %1992 = vsyncpa [#allocation6], 1
    %s1993 = scalar_lea.sflag [#allocation6], 1
    %1994 = vsyncpa %s1993, 1

</llo_original>
